<compile_context>
chip_gen: v7x
topology: tpu7x:2x2x1
jax: 0.10.0
libtpu: 0.0.40
codegen_flags: <defaults>
</compile_context>

<pallas_src>
import functools

import jax
import jax.numpy as jnp
from jax.experimental import pallas as pl
from jax.experimental.pallas import tpu as pltpu


NEG_SLOPE = 0.01    # PyTorch F.leaky_relu default
LATENT = 2
MULV_PAD = 128      # lane-dense [mu(2) | logvar(2) | zeros] output
EPS_PAD = 128       # lane-dense eps input
RECON_W = 784       # 6*128 + 16 -> only the final lane group's store is masked


def _round_up(n, m):
    return ((n + m - 1) // m) * m


def _leaky_relu(v):
    return jnp.where(v >= 0, v, NEG_SLOPE * v)


def _lin(h_bf16, w_ref, b_ref):
    # bf16 x bf16 MXU matmul, f32 accumulation, f32 bias broadcast-add.
    return jnp.dot(h_bf16, w_ref[...], preferred_element_type=jnp.float32) + b_ref[...]


def vae_kernel(
    x_ref, eps_ref,
    w1_ref, b1_ref,          # fc1                              (784, 400) bf16
    wenc_ref, benc_ref,      # collapsed fc21A@fc21B | fc22A@fc22B, lane-padded (400, 128) bf16
    w31_ref, b31_ref,        # fc31 kept f32, VPU outer-product path (2, 200)
    w32_ref, b32_ref,        # fc32                             (200, 400) bf16
    w4_ref, b4_ref,          # fc4                              (400, 784) bf16
    recon_ref, mulv_ref,
):
    x = x_ref[...]                                     # (TB, 784) bf16
    eps = eps_ref[:, 0:LATENT]                         # (TB, 2)   f32 (lane-padded input)

    # ---- encode ----
    h1 = _leaky_relu(_lin(x, w1_ref, b1_ref))          # (TB, 400) f32
    # One fused matmul produces [mu | logvar | zeros] (no activation between
    # the stacked encoder linears in the reference, so the collapse is exact).
    mulv = _lin(h1.astype(jnp.bfloat16), wenc_ref, benc_ref)   # (TB, 128) f32
    mulv_ref[...] = mulv.astype(mulv_ref.dtype)        # bf16 writeback

    mu = mulv[:, 0:LATENT]
    logvar = mulv[:, LATENT:2 * LATENT]

    # ---- reparameterize ----
    std = jnp.exp(0.5 * logvar)
    z = mu + eps * std                                 # (TB, 2) f32

    # ---- decode ----
    # fc31 has K=2: two VPU FMAs (outer product) instead of a drain-dominated
    # tiny MXU pass.
    w31 = w31_ref[...]                                 # (2, 200) f32
    h31 = _leaky_relu(z[:, 0:1] * w31[0:1, :]
                      + z[:, 1:2] * w31[1:2, :]
                      + b31_ref[...])                  # (TB, 200)
    h3 = _leaky_relu(_lin(h31.astype(jnp.bfloat16), w32_ref, b32_ref))   # (TB, 400)
    logits = _lin(h3.astype(jnp.bfloat16), w4_ref, b4_ref)               # (TB, 784) f32

    # sigmoid: exp + approx reciprocal both on the EUP; clamp guards the tiny
    # approx-reciprocal overshoot above 1.0 (sigmoid is < 1 anyway).
    recon = pl.reciprocal(1.0 + jnp.exp(-logits), approx=True)
    recon_ref[...] = jnp.minimum(recon, 1.0).astype(recon_ref.dtype)


def init_params(key):
    """Deterministic synthetic parameters.  Weights stored as (in, out), f32."""
    dims = [
        ("fc1", 784, 400),
        ("fc21A", 400, 200),
        ("fc21B", 200, 2),
        ("fc22A", 400, 200),
        ("fc22B", 200, 2),
        ("fc31", 2, 200),
        ("fc32", 200, 400),
        ("fc4", 400, 784),
    ]
    params = []
    for i, (_, d_in, d_out) in enumerate(dims):
        kw, kb = jax.random.split(jax.random.fold_in(key, i))
        w = 0.05 * jax.random.normal(kw, (d_in, d_out), dtype=jnp.float32)
        b = 0.05 * jax.random.normal(kb, (1, d_out), dtype=jnp.float32)
        params += [w, b]
    return params


def pack_params(params):
    """Fuse / pad / cast raw (in,out) f32 params into kernel params."""
    (w1, b1, w21a, b21a, w21b, b21b, w22a, b22a, w22b, b22b,
     w31, b31, w32, b32, w4, b4) = params
    f32, bf16 = jnp.float32, jnp.bfloat16

    # Collapse the stacked encoder linears (reference applies no activation
    # between fc21A->fc21B / fc22A->fc22B):
    #   mu     = h1 @ (W21A @ W21B) + (b21A @ W21B + b21B)
    #   logvar = h1 @ (W22A @ W22B) + (b22A @ W22B + b22B)
    wmu = w21a @ w21b                      # (400, 2)
    bmu = b21a @ w21b + b21b               # (1, 2)
    wlv = w22a @ w22b
    blv = b22a @ w22b + b22b

    # Lane-padded to 128 -> output columns [0:2]=mu, [2:4]=logvar, rest zero.
    wenc = jnp.zeros((400, MULV_PAD), f32)
    wenc = wenc.at[:, 0:LATENT].set(wmu).at[:, LATENT:2 * LATENT].set(wlv)
    benc = jnp.zeros((1, MULV_PAD), f32)
    benc = benc.at[:, 0:LATENT].set(bmu).at[:, LATENT:2 * LATENT].set(blv)

    return (
        w1.astype(bf16), b1,
        wenc.astype(bf16), benc,
        w31, b31,                  # stays f32 (VPU outer-product path)
        w32.astype(bf16), b32,
        w4.astype(bf16), b4,       # no padding: 784-wide store, last group masked
    )


def vae_forward(x, eps, packed, *, block_b=512):
    """x: any shape with prod(trailing dims) == 784 (e.g. (B,1,28,28)).
    eps: (B, 2) standard-normal noise (torch.randn_like equivalent).
    Returns (recon (B,784) bf16, mu (B,2) f32, logvar (B,2) f32)."""
    x2 = x.reshape(-1, 784).astype(jnp.bfloat16)       # bf16 input stream
    B = x2.shape[0]

    # Lane-dense eps block: avoids a 2-lane-wide DMA per grid step.
    eps_p = jnp.pad(eps.astype(jnp.float32), ((0, 0), (0, EPS_PAD - LATENT)))

    # Batch tile: aim for >=2 grid steps so v7x can shard the batch axis over
    # both TensorCores; cap at block_b (512 fills the MXU and amortizes the
    # ~0.35 us per-step overhead on v6e).
    tb = min(block_b, max(8, _round_up(pl.cdiv(B, 2), 8)))
    if tb >= B:
        tb = B          # single full-batch tile (block == full array rows)
    grid = (pl.cdiv(B, tb),)

    def act(feat):
        return pl.BlockSpec((tb, feat), lambda i: (i, 0))

    def resident(arr):
        # Full-array block, constant index -> fetched once, VMEM-resident.
        return pl.BlockSpec(arr.shape, lambda i: (0, 0))

    in_specs = [act(784), act(EPS_PAD)] + [resident(p) for p in packed]
    out_specs = (act(RECON_W), act(MULV_PAD))
    out_shapes = (
        jax.ShapeDtypeStruct((B, RECON_W), jnp.bfloat16),
        jax.ShapeDtypeStruct((B, MULV_PAD), jnp.bfloat16),
    )

    recon, mulv = pl.pallas_call(
        vae_kernel,
        grid=grid,
        in_specs=in_specs,
        out_specs=out_specs,
        out_shape=out_shapes,
        compiler_params=pltpu.CompilerParams(
            dimension_semantics=("parallel",),
            # TB=512 with bf16 x/recon + f32 intermediates peaks around ~15 MB;
            # 48 MiB gives margin, exceeds v5e's 16 MiB default, and stays
            # under v7x's 64 MiB physical VMEM.
            vmem_limit_bytes=48 * 1024 * 1024,
        ),
    )(x2, eps_p, *packed)

    mu = mulv[:, :LATENT].astype(jnp.float32)
    logvar = mulv[:, LATENT:2 * LATENT].astype(jnp.float32)
    return recon, mu, logvar


if __name__ == "__main__":
    key = jax.random.PRNGKey(0)
    k_params, k_x, k_eps = jax.random.split(key, 3)

    params = init_params(k_params)
    packed = pack_params(params)

    B = 16   # two grid steps at tb=8 -> exercises the pipelined / megacore path
    x = jax.random.uniform(k_x, (B, 1, 28, 28), dtype=jnp.float32)   # NCHW-ish
    eps = jax.random.normal(k_eps, (B, LATENT), dtype=jnp.float32)   # randn_like(std)

    fwd = jax.jit(functools.partial(vae_forward, block_b=512))
    recon, mu, logvar = fwd(x, eps, packed)
    jax.block_until_ready((recon, mu, logvar))

    recon_f32 = recon.astype(jnp.float32)
    assert recon.shape == (B, 784)
    assert mu.shape == (B, LATENT) and logvar.shape == (B, LATENT)
    assert bool(jnp.all(jnp.isfinite(recon_f32)))
    assert bool(jnp.all(jnp.isfinite(mu))) and bool(jnp.all(jnp.isfinite(logvar)))
    assert bool(jnp.all((recon_f32 >= 0.0) & (recon_f32 <= 1.0)))

    print("KERNEL_OK")
</pallas_src>

<mosaic_0001>
module attributes {stable_mosaic.version = 11 : i64} {
  func.func @vae_kernel(%arg0: i32, %arg1: memref<8x784xbf16, #tpu.memory_space<vmem>>, %arg2: memref<8x128xf32, #tpu.memory_space<vmem>>, %arg3: memref<784x400xbf16, #tpu.memory_space<vmem>>, %arg4: memref<1x400xf32, #tpu.memory_space<vmem>>, %arg5: memref<400x128xbf16, #tpu.memory_space<vmem>>, %arg6: memref<1x128xf32, #tpu.memory_space<vmem>>, %arg7: memref<2x200xf32, #tpu.memory_space<vmem>>, %arg8: memref<1x200xf32, #tpu.memory_space<vmem>>, %arg9: memref<200x400xbf16, #tpu.memory_space<vmem>>, %arg10: memref<1x400xf32, #tpu.memory_space<vmem>>, %arg11: memref<400x784xbf16, #tpu.memory_space<vmem>>, %arg12: memref<1x784xf32, #tpu.memory_space<vmem>>, %arg13: memref<8x784xbf16, #tpu.memory_space<vmem>>, %arg14: memref<8x128xbf16, #tpu.memory_space<vmem>>) attributes {dimension_semantics = [#tpu.dimension_semantics<parallel>], iteration_bounds = array<i64: 2>, scalar_prefetch = 0 : i64, scratch_operands = 0 : i64, tpu.core_type = #tpu.core_type<tc>, window_params = [{transform_indices = @transform_0, window_bounds = array<i64: 8, 784>}, {transform_indices = @transform_1, window_bounds = array<i64: 8, 128>}, {pipeline_mode = #tpu.pipeline_mode<synchronous>, transform_indices = @transform_2, window_bounds = array<i64: 784, 400>}, {pipeline_mode = #tpu.pipeline_mode<synchronous>, transform_indices = @transform_3, window_bounds = array<i64: 1, 400>}, {pipeline_mode = #tpu.pipeline_mode<synchronous>, transform_indices = @transform_4, window_bounds = array<i64: 400, 128>}, {pipeline_mode = #tpu.pipeline_mode<synchronous>, transform_indices = @transform_5, window_bounds = array<i64: 1, 128>}, {pipeline_mode = #tpu.pipeline_mode<synchronous>, transform_indices = @transform_6, window_bounds = array<i64: 2, 200>}, {pipeline_mode = #tpu.pipeline_mode<synchronous>, transform_indices = @transform_7, window_bounds = array<i64: 1, 200>}, {pipeline_mode = #tpu.pipeline_mode<synchronous>, transform_indices = @transform_8, window_bounds = array<i64: 200, 400>}, {pipeline_mode = #tpu.pipeline_mode<synchronous>, transform_indices = @transform_9, window_bounds = array<i64: 1, 400>}, {pipeline_mode = #tpu.pipeline_mode<synchronous>, transform_indices = @transform_10, window_bounds = array<i64: 400, 784>}, {pipeline_mode = #tpu.pipeline_mode<synchronous>, transform_indices = @transform_11, window_bounds = array<i64: 1, 784>}, {transform_indices = @transform_12, window_bounds = array<i64: 8, 784>}, {transform_indices = @transform_13, window_bounds = array<i64: 8, 128>}]} {
    %c0 = arith.constant 0 : index
    %c0_0 = arith.constant 0 : index
    %0 = vector.load %arg1[%c0, %c0_0] : memref<8x784xbf16, #tpu.memory_space<vmem>>, vector<8x784xbf16>
    %c0_1 = arith.constant 0 : index
    %c0_2 = arith.constant 0 : index
    %1 = vector.load %arg2[%c0_1, %c0_2] : memref<8x128xf32, #tpu.memory_space<vmem>>, vector<8x2xf32>
    %c0_3 = arith.constant 0 : index
    %c0_4 = arith.constant 0 : index
    %2 = vector.load %arg3[%c0_3, %c0_4] : memref<784x400xbf16, #tpu.memory_space<vmem>>, vector<784x400xbf16>
    %cst = arith.constant dense<0.000000e+00> : vector<8x400xf32>
    %3 = tpu.matmul %0, %2, %cst {dimension_numbers = #tpu.dot_dimension_numbers<[1], [0], [0], [1], [0, 0, 1, 1], [], []>} : vector<8x784xbf16>, vector<784x400xbf16>, vector<8x400xf32> -> vector<8x400xf32>
    %c0_5 = arith.constant 0 : index
    %c0_6 = arith.constant 0 : index
    %4 = vector.load %arg4[%c0_5, %c0_6] : memref<1x400xf32, #tpu.memory_space<vmem>>, vector<1x400xf32>
    %5 = vector.broadcast %4 : vector<1x400xf32> to vector<8x400xf32>
    %6 = arith.addf %3, %5 : vector<8x400xf32>
    %cst_7 = arith.constant 0.000000e+00 : f32
    %7 = vector.broadcast %cst_7 : f32 to vector<8x400xf32>
    %8 = arith.cmpf oge, %6, %7 : vector<8x400xf32>
    %cst_8 = arith.constant 0.00999999977 : f32
    %9 = vector.broadcast %cst_8 : f32 to vector<8x400xf32>
    %10 = arith.mulf %9, %6 : vector<8x400xf32>
    %11 = arith.select %8, %6, %10 : vector<8x400xi1>, vector<8x400xf32>
    %12 = arith.truncf %11 : vector<8x400xf32> to vector<8x400xbf16>
    %c0_9 = arith.constant 0 : index
    %c0_10 = arith.constant 0 : index
    %13 = vector.load %arg5[%c0_9, %c0_10] : memref<400x128xbf16, #tpu.memory_space<vmem>>, vector<400x128xbf16>
    %cst_11 = arith.constant dense<0.000000e+00> : vector<8x128xf32>
    %14 = tpu.matmul %12, %13, %cst_11 {dimension_numbers = #tpu.dot_dimension_numbers<[1], [0], [0], [1], [0, 0, 1, 1], [], []>} : vector<8x400xbf16>, vector<400x128xbf16>, vector<8x128xf32> -> vector<8x128xf32>
    %c0_12 = arith.constant 0 : index
    %c0_13 = arith.constant 0 : index
    %15 = vector.load %arg6[%c0_12, %c0_13] : memref<1x128xf32, #tpu.memory_space<vmem>>, vector<1x128xf32>
    %16 = vector.broadcast %15 : vector<1x128xf32> to vector<8x128xf32>
    %17 = arith.addf %14, %16 : vector<8x128xf32>
    %18 = arith.truncf %17 : vector<8x128xf32> to vector<8x128xbf16>
    %c0_14 = arith.constant 0 : index
    %c0_15 = arith.constant 0 : index
    %19 = vector.load %arg14[%c0_14, %c0_15] : memref<8x128xbf16, #tpu.memory_space<vmem>>, vector<8x128xbf16>
    tpu.vector_store %arg14[%c0_14, %c0_15], %18 {strides = array<i32>} : memref<8x128xbf16, #tpu.memory_space<vmem>>, vector<8x128xbf16>,
    %20 = vector.extract_strided_slice %17 {offsets = [0, 0], sizes = [8, 2], strides = [1, 1]} : vector<8x128xf32> to vector<8x2xf32>
    %21 = vector.extract_strided_slice %17 {offsets = [0, 2], sizes = [8, 2], strides = [1, 1]} : vector<8x128xf32> to vector<8x2xf32>
    %cst_16 = arith.constant 5.000000e-01 : f32
    %22 = vector.broadcast %cst_16 : f32 to vector<8x2xf32>
    %23 = arith.mulf %22, %21 : vector<8x2xf32>
    %24 = math.exp %23 : vector<8x2xf32>
    %25 = arith.mulf %1, %24 : vector<8x2xf32>
    %26 = arith.addf %20, %25 : vector<8x2xf32>
    %c0_17 = arith.constant 0 : index
    %c0_18 = arith.constant 0 : index
    %27 = vector.load %arg7[%c0_17, %c0_18] : memref<2x200xf32, #tpu.memory_space<vmem>>, vector<2x200xf32>
    %28 = vector.extract_strided_slice %26 {offsets = [0, 0], sizes = [8, 1], strides = [1, 1]} : vector<8x2xf32> to vector<8x1xf32>
    %29 = vector.extract_strided_slice %27 {offsets = [0, 0], sizes = [1, 200], strides = [1, 1]} : vector<2x200xf32> to vector<1x200xf32>
    %30 = vector.broadcast %28 : vector<8x1xf32> to vector<8x200xf32>
    %31 = vector.broadcast %29 : vector<1x200xf32> to vector<8x200xf32>
    %32 = arith.mulf %30, %31 : vector<8x200xf32>
    %33 = vector.extract_strided_slice %26 {offsets = [0, 1], sizes = [8, 1], strides = [1, 1]} : vector<8x2xf32> to vector<8x1xf32>
    %34 = vector.extract_strided_slice %27 {offsets = [1, 0], sizes = [1, 200], strides = [1, 1]} : vector<2x200xf32> to vector<1x200xf32>
    %35 = vector.broadcast %33 : vector<8x1xf32> to vector<8x200xf32>
    %36 = vector.broadcast %34 : vector<1x200xf32> to vector<8x200xf32>
    %37 = arith.mulf %35, %36 : vector<8x200xf32>
    %38 = arith.addf %32, %37 : vector<8x200xf32>
    %c0_19 = arith.constant 0 : index
    %c0_20 = arith.constant 0 : index
    %39 = vector.load %arg8[%c0_19, %c0_20] : memref<1x200xf32, #tpu.memory_space<vmem>>, vector<1x200xf32>
    %40 = vector.broadcast %39 : vector<1x200xf32> to vector<8x200xf32>
    %41 = arith.addf %38, %40 : vector<8x200xf32>
    %cst_21 = arith.constant 0.000000e+00 : f32
    %42 = vector.broadcast %cst_21 : f32 to vector<8x200xf32>
    %43 = arith.cmpf oge, %41, %42 : vector<8x200xf32>
    %cst_22 = arith.constant 0.00999999977 : f32
    %44 = vector.broadcast %cst_22 : f32 to vector<8x200xf32>
    %45 = arith.mulf %44, %41 : vector<8x200xf32>
    %46 = arith.select %43, %41, %45 : vector<8x200xi1>, vector<8x200xf32>
    %47 = arith.truncf %46 : vector<8x200xf32> to vector<8x200xbf16>
    %c0_23 = arith.constant 0 : index
    %c0_24 = arith.constant 0 : index
    %48 = vector.load %arg9[%c0_23, %c0_24] : memref<200x400xbf16, #tpu.memory_space<vmem>>, vector<200x400xbf16>
    %cst_25 = arith.constant dense<0.000000e+00> : vector<8x400xf32>
    %49 = tpu.matmul %47, %48, %cst_25 {dimension_numbers = #tpu.dot_dimension_numbers<[1], [0], [0], [1], [0, 0, 1, 1], [], []>} : vector<8x200xbf16>, vector<200x400xbf16>, vector<8x400xf32> -> vector<8x400xf32>
    %c0_26 = arith.constant 0 : index
    %c0_27 = arith.constant 0 : index
    %50 = vector.load %arg10[%c0_26, %c0_27] : memref<1x400xf32, #tpu.memory_space<vmem>>, vector<1x400xf32>
    %51 = vector.broadcast %50 : vector<1x400xf32> to vector<8x400xf32>
    %52 = arith.addf %49, %51 : vector<8x400xf32>
    %cst_28 = arith.constant 0.000000e+00 : f32
    %53 = vector.broadcast %cst_28 : f32 to vector<8x400xf32>
    %54 = arith.cmpf oge, %52, %53 : vector<8x400xf32>
    %cst_29 = arith.constant 0.00999999977 : f32
    %55 = vector.broadcast %cst_29 : f32 to vector<8x400xf32>
    %56 = arith.mulf %55, %52 : vector<8x400xf32>
    %57 = arith.select %54, %52, %56 : vector<8x400xi1>, vector<8x400xf32>
    %58 = arith.truncf %57 : vector<8x400xf32> to vector<8x400xbf16>
    %c0_30 = arith.constant 0 : index
    %c0_31 = arith.constant 0 : index
    %59 = vector.load %arg11[%c0_30, %c0_31] : memref<400x784xbf16, #tpu.memory_space<vmem>>, vector<400x784xbf16>
    %cst_32 = arith.constant dense<0.000000e+00> : vector<8x784xf32>
    %60 = tpu.matmul %58, %59, %cst_32 {dimension_numbers = #tpu.dot_dimension_numbers<[1], [0], [0], [1], [0, 0, 1, 1], [], []>} : vector<8x400xbf16>, vector<400x784xbf16>, vector<8x784xf32> -> vector<8x784xf32>
    %c0_33 = arith.constant 0 : index
    %c0_34 = arith.constant 0 : index
    %61 = vector.load %arg12[%c0_33, %c0_34] : memref<1x784xf32, #tpu.memory_space<vmem>>, vector<1x784xf32>
    %62 = vector.broadcast %61 : vector<1x784xf32> to vector<8x784xf32>
    %63 = arith.addf %60, %62 : vector<8x784xf32>
    %cst_35 = arith.constant 0.000000e+00 : f32
    %64 = vector.broadcast %cst_35 : f32 to vector<8x784xf32>
    %65 = arith.subf %64, %63 : vector<8x784xf32>
    %66 = math.exp %65 : vector<8x784xf32>
    %cst_36 = arith.constant 1.000000e+00 : f32
    %67 = vector.broadcast %cst_36 : f32 to vector<8x784xf32>
    %68 = arith.addf %67, %66 : vector<8x784xf32>
    %69 = tpu.reciprocal %68 {approx = true} : vector<8x784xf32> -> vector<8x784xf32>
    %cst_37 = arith.constant 1.000000e+00 : f32
    %70 = vector.broadcast %cst_37 : f32 to vector<8x784xf32>
    %71 = arith.minimumf %69, %70 : vector<8x784xf32>
    %72 = arith.truncf %71 : vector<8x784xf32> to vector<8x784xbf16>
    %c0_38 = arith.constant 0 : index
    %c0_39 = arith.constant 0 : index
    %73 = vector.load %arg13[%c0_38, %c0_39] : memref<8x784xbf16, #tpu.memory_space<vmem>>, vector<8x784xbf16>
    tpu.vector_store %arg13[%c0_38, %c0_39], %72 {strides = array<i32>} : memref<8x784xbf16, #tpu.memory_space<vmem>>, vector<8x784xbf16>,
    return
  }
  func.func @transform_0(%arg0: i32) -> (i32, i32) {
    %c0_i32 = arith.constant 0 : i32
    %c0_i32_0 = arith.constant 0 : i32
    return %arg0, %c0_i32 : i32, i32
  }
  func.func @transform_1(%arg0: i32) -> (i32, i32) {
    %c0_i32 = arith.constant 0 : i32
    %c0_i32_0 = arith.constant 0 : i32
    return %arg0, %c0_i32 : i32, i32
  }
  func.func @transform_2(%arg0: i32) -> (i32, i32) {
    %c0_i32 = arith.constant 0 : i32
    %c0_i32_0 = arith.constant 0 : i32
    %c0_i32_1 = arith.constant 0 : i32
    return %c0_i32, %c0_i32_0 : i32, i32
  }
  func.func @transform_3(%arg0: i32) -> (i32, i32) {
    %c0_i32 = arith.constant 0 : i32
    %c0_i32_0 = arith.constant 0 : i32
    %c0_i32_1 = arith.constant 0 : i32
    return %c0_i32, %c0_i32_0 : i32, i32
  }
  func.func @transform_4(%arg0: i32) -> (i32, i32) {
    %c0_i32 = arith.constant 0 : i32
    %c0_i32_0 = arith.constant 0 : i32
    %c0_i32_1 = arith.constant 0 : i32
    return %c0_i32, %c0_i32_0 : i32, i32
  }
  func.func @transform_5(%arg0: i32) -> (i32, i32) {
    %c0_i32 = arith.constant 0 : i32
    %c0_i32_0 = arith.constant 0 : i32
    %c0_i32_1 = arith.constant 0 : i32
    return %c0_i32, %c0_i32_0 : i32, i32
  }
  func.func @transform_6(%arg0: i32) -> (i32, i32) {
    %c0_i32 = arith.constant 0 : i32
    %c0_i32_0 = arith.constant 0 : i32
    %c0_i32_1 = arith.constant 0 : i32
    return %c0_i32, %c0_i32_0 : i32, i32
  }
  func.func @transform_7(%arg0: i32) -> (i32, i32) {
    %c0_i32 = arith.constant 0 : i32
    %c0_i32_0 = arith.constant 0 : i32
    %c0_i32_1 = arith.constant 0 : i32
    return %c0_i32, %c0_i32_0 : i32, i32
  }
  func.func @transform_8(%arg0: i32) -> (i32, i32) {
    %c0_i32 = arith.constant 0 : i32
    %c0_i32_0 = arith.constant 0 : i32
    %c0_i32_1 = arith.constant 0 : i32
    return %c0_i32, %c0_i32_0 : i32, i32
  }
  func.func @transform_9(%arg0: i32) -> (i32, i32) {
    %c0_i32 = arith.constant 0 : i32
    %c0_i32_0 = arith.constant 0 : i32
    %c0_i32_1 = arith.constant 0 : i32
    return %c0_i32, %c0_i32_0 : i32, i32
  }
  func.func @transform_10(%arg0: i32) -> (i32, i32) {
    %c0_i32 = arith.constant 0 : i32
    %c0_i32_0 = arith.constant 0 : i32
    %c0_i32_1 = arith.constant 0 : i32
    return %c0_i32, %c0_i32_0 : i32, i32
  }
  func.func @transform_11(%arg0: i32) -> (i32, i32) {
    %c0_i32 = arith.constant 0 : i32
    %c0_i32_0 = arith.constant 0 : i32
    %c0_i32_1 = arith.constant 0 : i32
    return %c0_i32, %c0_i32_0 : i32, i32
  }
  func.func @transform_12(%arg0: i32) -> (i32, i32) {
    %c0_i32 = arith.constant 0 : i32
    %c0_i32_0 = arith.constant 0 : i32
    return %arg0, %c0_i32 : i32, i32
  }
  func.func @transform_13(%arg0: i32) -> (i32, i32) {
    %c0_i32 = arith.constant 0 : i32
    %c0_i32_0 = arith.constant 0 : i32
    return %arg0, %c0_i32 : i32, i32
  }
}

</mosaic_0001>

<llo_original>
// kernel: vae_forward.1
$region0: #{vae_forward.1}
  #allocation0 [shape = 'u32[]', space=smem, size = 0x4, offset = 0x4, fixed_abs, tag = 'smem constant byte address 0x4 - core index']
  #allocation1 [shape = 'u32[144,128]{1,0:T(1,128)}', space=vmem, size = 0x12000, scoped, tag = 'internal scratch']
  %s0 = inlined_call_operand.vmem [shape: bf16[16,784], index: 0, kind: input, shape index: {}]
  %s1 = inlined_call_operand.vmem [shape: f32[16,128], index: 1, kind: input, shape index: {}]
  %s2 = inlined_call_operand.vmem [shape: bf16[784,400], index: 2, kind: input, shape index: {}]
  %s3 = inlined_call_operand.vmem [shape: f32[1,400], index: 3, kind: input, shape index: {}]
  %s4 = inlined_call_operand.vmem [shape: bf16[400,128], index: 4, kind: input, shape index: {}]
  %s5 = inlined_call_operand.vmem [shape: f32[1,128], index: 5, kind: input, shape index: {}]
  %s6 = inlined_call_operand.vmem [shape: f32[2,200], index: 6, kind: input, shape index: {}]
  %s7 = inlined_call_operand.vmem [shape: f32[1,200], index: 7, kind: input, shape index: {}]
  %s8 = inlined_call_operand.vmem [shape: bf16[200,400], index: 8, kind: input, shape index: {}]
  %s9 = inlined_call_operand.vmem [shape: f32[1,400], index: 9, kind: input, shape index: {}]
  %s10 = inlined_call_operand.vmem [shape: bf16[400,784], index: 10, kind: input, shape index: {}]
  %s11 = inlined_call_operand.vmem [shape: f32[1,784], index: 11, kind: input, shape index: {}]
  %s12 = inlined_call_operand.hbm [shape: bf16[16,784], index: 12, kind: output, shape index: {0}]
  %s13 = inlined_call_operand.vmem [shape: bf16[16,128], index: 13, kind: output, shape index: {1}]
  %14 = xla_tuple %s12, %s13
  %s15 = sld [smem:[#allocation0]]
  $region89: #{vae_forward.1} parent=0
    _
  %s17 = ssub.s32 1, %s15
  %s18 = scalar_select 0, %s17, %s15
  $region1: #{vae_forward.1} parent=0
    #allocation2 [shape = 'u8[28672]{0}', space=vmem, size = 0x7000, scoped, tag = 'output window, operand 0']
    #allocation3 [shape = 's32[2]{0}', space=sflag, size = 0x8, scoped, tag = 'scoped memory for vae_forward.1']
    %19 = vsyncpa [#allocation3], 0
    %s20 = scalar_lea.sflag [#allocation3], 1
    %21 = vsyncpa %s20, 0
    loop: start=0, step=1, limit=4
    $region2: #{vae_forward.1} parent=1 // loop_pre_header
      _
    $region3: #{vae_forward.1} parent=1 // loop_header
      %s23 = sphi 0, %s27
      %p24 = scmp.ge.s32.totalorder %s23, 4
      %s33 = sphi 0, %s35
      %s36 = sphi 0, %s33
      %s37 = sphi 0, %s36
      %s53 = sphi 0, %s37
      %s59 = sphi 0, %s61
      %s62 = sphi 0, %s59
      %s63 = sphi 0, %s62
      %s79 = sphi 0, %s63
      %s83 = sphi 0, %s83
      %s85 = sphi 0, %s83
      %s86 = sphi 0, %s85
      %s100 = sphi 0, %s86
      %s104 = sphi 0, %s104
      %s106 = sphi 0, %s104
      %s107 = sphi 0, %s106
      %s121 = sphi 0, %s107
      %s125 = sphi 0, %s125
      %s127 = sphi 0, %s125
      %s128 = sphi 0, %s127
      %s142 = sphi 0, %s128
      %s146 = sphi 0, %s146
      %s148 = sphi 0, %s146
      %s149 = sphi 0, %s148
      %s163 = sphi 0, %s149
      %s167 = sphi 0, %s167
      %s169 = sphi 0, %s167
      %s170 = sphi 0, %s169
      %s184 = sphi 0, %s170
      %s188 = sphi 0, %s188
      %s190 = sphi 0, %s188
      %s191 = sphi 0, %s190
      %s205 = sphi 0, %s191
      %s209 = sphi 0, %s209
      %s211 = sphi 0, %s209
      %s212 = sphi 0, %s211
      %s226 = sphi 0, %s212
      %s230 = sphi 0, %s230
      %s232 = sphi 0, %s230
      %s233 = sphi 0, %s232
      %s247 = sphi 0, %s233
      %s251 = sphi 0, %s251
      %s253 = sphi 0, %s251
      %s254 = sphi 0, %s253
      %s268 = sphi 0, %s254
      %s272 = sphi 0, %s272
      %s274 = sphi 0, %s272
      %s275 = sphi 0, %s274
      %s289 = sphi 0, %s275
      %s295 = sphi 0, %s297
      %s298 = sphi 0, %s295
      %s299 = sphi 0, %s298
      %s315 = sphi 0, %s299
      %s321 = sphi 0, %s323
      %s324 = sphi 0, %s321
      %s325 = sphi 0, %s324
      %s341 = sphi 0, %s325
    $region4: #{vae_forward.1} parent=1 // loop_header_branch
      %26 = sbr.rel (%p24) target = $region8
    $region5: #{vae_forward.1} parent=1 // loop_body
      %s28 = ssub.s32 %s23, 1
      %s29 = ssub.s32 %s23, 2
      %s30 = sadd.s32 %s23, 1
      %s31 = ssub.s32 %s23, %s30
      %p32 = scmp.eq.s32.totalorder %s31, 0
      %s34 = sadd.s32 %s33, 1
      %s35 = scalar_select %p32, %s33, %s34
      %p38 = pneg %p32
      %p39 = scmp.eq.s32.totalorder %s23, 1
      %p40 = por %p38, %p39
      %p41 = scmp.ne.s32.totalorder %s33, %s36
      %p42 = scmp.eq.s32.totalorder %s23, 0
      %p43 = por %p41, %p42
      %p44 = scmp.ne.s32.totalorder %s33, %s36
      %p45 = scmp.eq.s32.totalorder %s28, 1
      %p46 = por %p44, %p45
      %p47 = scmp.ne.s32.totalorder %s36, %s37
      %p48 = scmp.eq.s32.totalorder %s28, 0
      %p49 = por %p47, %p48
      %p50 = scmp.ne.s32.totalorder %s36, %s37
      %p51 = scmp.eq.s32.totalorder %s29, 1
      %p52 = por %p50, %p51
      %p54 = scmp.ne.s32.totalorder %s37, %s53
      %p55 = scmp.eq.s32.totalorder %s29, 0
      %p56 = por %p54, %p55
      %s57 = ssub.s32 %s23, %s30
      %p58 = scmp.eq.s32.totalorder %s57, 0
      %s60 = sadd.s32 %s59, 1
      %s61 = scalar_select %p58, %s59, %s60
      %p64 = pneg %p58
      %p65 = scmp.eq.s32.totalorder %s23, 1
      %p66 = por %p64, %p65
      %p67 = scmp.ne.s32.totalorder %s59, %s62
      %p68 = scmp.eq.s32.totalorder %s23, 0
      %p69 = por %p67, %p68
      %p70 = scmp.ne.s32.totalorder %s59, %s62
      %p71 = scmp.eq.s32.totalorder %s28, 1
      %p72 = por %p70, %p71
      %p73 = scmp.ne.s32.totalorder %s62, %s63
      %p74 = scmp.eq.s32.totalorder %s28, 0
      %p75 = por %p73, %p74
      %p76 = scmp.ne.s32.totalorder %s62, %s63
      %p77 = scmp.eq.s32.totalorder %s29, 1
      %p78 = por %p76, %p77
      %p80 = scmp.ne.s32.totalorder %s63, %s79
      %p81 = scmp.eq.s32.totalorder %s29, 0
      %p82 = por %p80, %p81
      %s84 = sadd.s32 %s83, 1
      %p87 = scmp.eq.s32.totalorder %s23, 1
      %p88 = scmp.ne.s32.totalorder %s83, %s85
      %p89 = scmp.eq.s32.totalorder %s23, 0
      %p90 = por %p88, %p89
      %p91 = scmp.ne.s32.totalorder %s83, %s85
      %p92 = scmp.eq.s32.totalorder %s28, 1
      %p93 = por %p91, %p92
      %p94 = scmp.ne.s32.totalorder %s85, %s86
      %p95 = scmp.eq.s32.totalorder %s28, 0
      %p96 = por %p94, %p95
      %p97 = scmp.ne.s32.totalorder %s85, %s86
      %p98 = scmp.eq.s32.totalorder %s29, 1
      %p99 = por %p97, %p98
      %p101 = scmp.ne.s32.totalorder %s86, %s100
      %p102 = scmp.eq.s32.totalorder %s29, 0
      %p103 = por %p101, %p102
      %s105 = sadd.s32 %s104, 1
      %p108 = scmp.eq.s32.totalorder %s23, 1
      %p109 = scmp.ne.s32.totalorder %s104, %s106
      %p110 = scmp.eq.s32.totalorder %s23, 0
      %p111 = por %p109, %p110
      %p112 = scmp.ne.s32.totalorder %s104, %s106
      %p113 = scmp.eq.s32.totalorder %s28, 1
      %p114 = por %p112, %p113
      %p115 = scmp.ne.s32.totalorder %s106, %s107
      %p116 = scmp.eq.s32.totalorder %s28, 0
      %p117 = por %p115, %p116
      %p118 = scmp.ne.s32.totalorder %s106, %s107
      %p119 = scmp.eq.s32.totalorder %s29, 1
      %p120 = por %p118, %p119
      %p122 = scmp.ne.s32.totalorder %s107, %s121
      %p123 = scmp.eq.s32.totalorder %s29, 0
      %p124 = por %p122, %p123
      %s126 = sadd.s32 %s125, 1
      %p129 = scmp.eq.s32.totalorder %s23, 1
      %p130 = scmp.ne.s32.totalorder %s125, %s127
      %p131 = scmp.eq.s32.totalorder %s23, 0
      %p132 = por %p130, %p131
      %p133 = scmp.ne.s32.totalorder %s125, %s127
      %p134 = scmp.eq.s32.totalorder %s28, 1
      %p135 = por %p133, %p134
      %p136 = scmp.ne.s32.totalorder %s127, %s128
      %p137 = scmp.eq.s32.totalorder %s28, 0
      %p138 = por %p136, %p137
      %p139 = scmp.ne.s32.totalorder %s127, %s128
      %p140 = scmp.eq.s32.totalorder %s29, 1
      %p141 = por %p139, %p140
      %p143 = scmp.ne.s32.totalorder %s128, %s142
      %p144 = scmp.eq.s32.totalorder %s29, 0
      %p145 = por %p143, %p144
      %s147 = sadd.s32 %s146, 1
      %p150 = scmp.eq.s32.totalorder %s23, 1
      %p151 = scmp.ne.s32.totalorder %s146, %s148
      %p152 = scmp.eq.s32.totalorder %s23, 0
      %p153 = por %p151, %p152
      %p154 = scmp.ne.s32.totalorder %s146, %s148
      %p155 = scmp.eq.s32.totalorder %s28, 1
      %p156 = por %p154, %p155
      %p157 = scmp.ne.s32.totalorder %s148, %s149
      %p158 = scmp.eq.s32.totalorder %s28, 0
      %p159 = por %p157, %p158
      %p160 = scmp.ne.s32.totalorder %s148, %s149
      %p161 = scmp.eq.s32.totalorder %s29, 1
      %p162 = por %p160, %p161
      %p164 = scmp.ne.s32.totalorder %s149, %s163
      %p165 = scmp.eq.s32.totalorder %s29, 0
      %p166 = por %p164, %p165
      %s168 = sadd.s32 %s167, 1
      %p171 = scmp.eq.s32.totalorder %s23, 1
      %p172 = scmp.ne.s32.totalorder %s167, %s169
      %p173 = scmp.eq.s32.totalorder %s23, 0
      %p174 = por %p172, %p173
      %p175 = scmp.ne.s32.totalorder %s167, %s169
      %p176 = scmp.eq.s32.totalorder %s28, 1
      %p177 = por %p175, %p176
      %p178 = scmp.ne.s32.totalorder %s169, %s170
      %p179 = scmp.eq.s32.totalorder %s28, 0
      %p180 = por %p178, %p179
      %p181 = scmp.ne.s32.totalorder %s169, %s170
      %p182 = scmp.eq.s32.totalorder %s29, 1
      %p183 = por %p181, %p182
      %p185 = scmp.ne.s32.totalorder %s170, %s184
      %p186 = scmp.eq.s32.totalorder %s29, 0
      %p187 = por %p185, %p186
      %s189 = sadd.s32 %s188, 1
      %p192 = scmp.eq.s32.totalorder %s23, 1
      %p193 = scmp.ne.s32.totalorder %s188, %s190
      %p194 = scmp.eq.s32.totalorder %s23, 0
      %p195 = por %p193, %p194
      %p196 = scmp.ne.s32.totalorder %s188, %s190
      %p197 = scmp.eq.s32.totalorder %s28, 1
      %p198 = por %p196, %p197
      %p199 = scmp.ne.s32.totalorder %s190, %s191
      %p200 = scmp.eq.s32.totalorder %s28, 0
      %p201 = por %p199, %p200
      %p202 = scmp.ne.s32.totalorder %s190, %s191
      %p203 = scmp.eq.s32.totalorder %s29, 1
      %p204 = por %p202, %p203
      %p206 = scmp.ne.s32.totalorder %s191, %s205
      %p207 = scmp.eq.s32.totalorder %s29, 0
      %p208 = por %p206, %p207
      %s210 = sadd.s32 %s209, 1
      %p213 = scmp.eq.s32.totalorder %s23, 1
      %p214 = scmp.ne.s32.totalorder %s209, %s211
      %p215 = scmp.eq.s32.totalorder %s23, 0
      %p216 = por %p214, %p215
      %p217 = scmp.ne.s32.totalorder %s209, %s211
      %p218 = scmp.eq.s32.totalorder %s28, 1
      %p219 = por %p217, %p218
      %p220 = scmp.ne.s32.totalorder %s211, %s212
      %p221 = scmp.eq.s32.totalorder %s28, 0
      %p222 = por %p220, %p221
      %p223 = scmp.ne.s32.totalorder %s211, %s212
      %p224 = scmp.eq.s32.totalorder %s29, 1
      %p225 = por %p223, %p224
      %p227 = scmp.ne.s32.totalorder %s212, %s226
      %p228 = scmp.eq.s32.totalorder %s29, 0
      %p229 = por %p227, %p228
      %s231 = sadd.s32 %s230, 1
      %p234 = scmp.eq.s32.totalorder %s23, 1
      %p235 = scmp.ne.s32.totalorder %s230, %s232
      %p236 = scmp.eq.s32.totalorder %s23, 0
      %p237 = por %p235, %p236
      %p238 = scmp.ne.s32.totalorder %s230, %s232
      %p239 = scmp.eq.s32.totalorder %s28, 1
      %p240 = por %p238, %p239
      %p241 = scmp.ne.s32.totalorder %s232, %s233
      %p242 = scmp.eq.s32.totalorder %s28, 0
      %p243 = por %p241, %p242
      %p244 = scmp.ne.s32.totalorder %s232, %s233
      %p245 = scmp.eq.s32.totalorder %s29, 1
      %p246 = por %p244, %p245
      %p248 = scmp.ne.s32.totalorder %s233, %s247
      %p249 = scmp.eq.s32.totalorder %s29, 0
      %p250 = por %p248, %p249
      %s252 = sadd.s32 %s251, 1
      %p255 = scmp.eq.s32.totalorder %s23, 1
      %p256 = scmp.ne.s32.totalorder %s251, %s253
      %p257 = scmp.eq.s32.totalorder %s23, 0
      %p258 = por %p256, %p257
      %p259 = scmp.ne.s32.totalorder %s251, %s253
      %p260 = scmp.eq.s32.totalorder %s28, 1
      %p261 = por %p259, %p260
      %p262 = scmp.ne.s32.totalorder %s253, %s254
      %p263 = scmp.eq.s32.totalorder %s28, 0
      %p264 = por %p262, %p263
      %p265 = scmp.ne.s32.totalorder %s253, %s254
      %p266 = scmp.eq.s32.totalorder %s29, 1
      %p267 = por %p265, %p266
      %p269 = scmp.ne.s32.totalorder %s254, %s268
      %p270 = scmp.eq.s32.totalorder %s29, 0
      %p271 = por %p269, %p270
      %s273 = sadd.s32 %s272, 1
      %p276 = scmp.eq.s32.totalorder %s23, 1
      %p277 = scmp.ne.s32.totalorder %s272, %s274
      %p278 = scmp.eq.s32.totalorder %s23, 0
      %p279 = por %p277, %p278
      %p280 = scmp.ne.s32.totalorder %s272, %s274
      %p281 = scmp.eq.s32.totalorder %s28, 1
      %p282 = por %p280, %p281
      %p283 = scmp.ne.s32.totalorder %s274, %s275
      %p284 = scmp.eq.s32.totalorder %s28, 0
      %p285 = por %p283, %p284
      %p286 = scmp.ne.s32.totalorder %s274, %s275
      %p287 = scmp.eq.s32.totalorder %s29, 1
      %p288 = por %p286, %p287
      %p290 = scmp.ne.s32.totalorder %s275, %s289
      %p291 = scmp.eq.s32.totalorder %s29, 0
      %p292 = por %p290, %p291
      %s293 = ssub.s32 %s23, %s30
      %p294 = scmp.eq.s32.totalorder %s293, 0
      %s296 = sadd.s32 %s295, 1
      %s297 = scalar_select %p294, %s295, %s296
      %p300 = pneg %p294
      %p301 = scmp.eq.s32.totalorder %s23, 1
      %p302 = por %p300, %p301
      %p303 = scmp.ne.s32.totalorder %s295, %s298
      %p304 = scmp.eq.s32.totalorder %s23, 0
      %p305 = por %p303, %p304
      %p306 = scmp.ne.s32.totalorder %s295, %s298
      %p307 = scmp.eq.s32.totalorder %s28, 1
      %p308 = por %p306, %p307
      %p309 = scmp.ne.s32.totalorder %s298, %s299
      %p310 = scmp.eq.s32.totalorder %s28, 0
      %p311 = por %p309, %p310
      %p312 = scmp.ne.s32.totalorder %s298, %s299
      %p313 = scmp.eq.s32.totalorder %s29, 1
      %p314 = por %p312, %p313
      %p316 = scmp.ne.s32.totalorder %s299, %s315
      %p317 = scmp.eq.s32.totalorder %s29, 0
      %p318 = por %p316, %p317
      %s319 = ssub.s32 %s23, %s30
      %p320 = scmp.eq.s32.totalorder %s319, 0
      %s322 = sadd.s32 %s321, 1
      %s323 = scalar_select %p320, %s321, %s322
      %p326 = pneg %p320
      %p327 = scmp.eq.s32.totalorder %s23, 1
      %p328 = por %p326, %p327
      %p329 = scmp.ne.s32.totalorder %s321, %s324
      %p330 = scmp.eq.s32.totalorder %s23, 0
      %p331 = por %p329, %p330
      %p332 = scmp.ne.s32.totalorder %s321, %s324
      %p333 = scmp.eq.s32.totalorder %s28, 1
      %p334 = por %p332, %p333
      %p335 = scmp.ne.s32.totalorder %s324, %s325
      %p336 = scmp.eq.s32.totalorder %s28, 0
      %p337 = por %p335, %p336
      %p338 = scmp.ne.s32.totalorder %s324, %s325
      %p339 = scmp.eq.s32.totalorder %s29, 1
      %p340 = por %p338, %p339
      %p342 = scmp.ne.s32.totalorder %s325, %s341
      %p343 = scmp.eq.s32.totalorder %s29, 0
      %p344 = por %p342, %p343
      %p345 = scmp.le.s32.totalorder 1, %s23
      %p346 = scmp.lt.s32.totalorder %s23, 3
      %p347 = pnand %p345, %p346
      %p348 = pneg %p347
      // Predicated region
      $region9: #{vae_forward.1} parent=5 // pred_check
        _
      $region10: #{vae_forward.1} parent=5 // pred_check_branch
        %350 = sbr.rel (%p347) target = $region12
      $region11: #{vae_forward.1} parent=5 // pred_region
        %s351 = ssub.s32 %s23, 1
        // Predicated region
        $region13: #{vae_forward.1} parent=11 // pred_check
          %p352 = pneg %p96
        $region14: #{vae_forward.1} parent=11 // pred_check_branch
          %354 = sbr.rel (%p352) target = $region16
        $region15: #{vae_forward.1} parent=11 // pred_region
          _
        $region16: #{vae_forward.1} parent=11 // pred_fallthru
          _
        // Predicated region
        $region17: #{vae_forward.1} parent=11 // pred_check
          %p355 = pneg %p117
        $region18: #{vae_forward.1} parent=11 // pred_check_branch
          %357 = sbr.rel (%p355) target = $region20
        $region19: #{vae_forward.1} parent=11 // pred_region
          _
        $region20: #{vae_forward.1} parent=11 // pred_fallthru
          _
        // Predicated region
        $region21: #{vae_forward.1} parent=11 // pred_check
          %p358 = pneg %p138
        $region22: #{vae_forward.1} parent=11 // pred_check_branch
          %360 = sbr.rel (%p358) target = $region24
        $region23: #{vae_forward.1} parent=11 // pred_region
          _
        $region24: #{vae_forward.1} parent=11 // pred_fallthru
          _
        // Predicated region
        $region25: #{vae_forward.1} parent=11 // pred_check
          %p361 = pneg %p159
        $region26: #{vae_forward.1} parent=11 // pred_check_branch
          %363 = sbr.rel (%p361) target = $region28
        $region27: #{vae_forward.1} parent=11 // pred_region
          _
        $region28: #{vae_forward.1} parent=11 // pred_fallthru
          _
        // Predicated region
        $region29: #{vae_forward.1} parent=11 // pred_check
          %p364 = pneg %p180
        $region30: #{vae_forward.1} parent=11 // pred_check_branch
          %366 = sbr.rel (%p364) target = $region32
        $region31: #{vae_forward.1} parent=11 // pred_region
          _
        $region32: #{vae_forward.1} parent=11 // pred_fallthru
          _
        // Predicated region
        $region33: #{vae_forward.1} parent=11 // pred_check
          %p367 = pneg %p201
        $region34: #{vae_forward.1} parent=11 // pred_check_branch
          %369 = sbr.rel (%p367) target = $region36
        $region35: #{vae_forward.1} parent=11 // pred_region
          _
        $region36: #{vae_forward.1} parent=11 // pred_fallthru
          _
        // Predicated region
        $region37: #{vae_forward.1} parent=11 // pred_check
          %p370 = pneg %p222
        $region38: #{vae_forward.1} parent=11 // pred_check_branch
          %372 = sbr.rel (%p370) target = $region40
        $region39: #{vae_forward.1} parent=11 // pred_region
          _
        $region40: #{vae_forward.1} parent=11 // pred_fallthru
          _
        // Predicated region
        $region41: #{vae_forward.1} parent=11 // pred_check
          %p373 = pneg %p243
        $region42: #{vae_forward.1} parent=11 // pred_check_branch
          %375 = sbr.rel (%p373) target = $region44
        $region43: #{vae_forward.1} parent=11 // pred_region
          _
        $region44: #{vae_forward.1} parent=11 // pred_fallthru
          _
        // Predicated region
        $region45: #{vae_forward.1} parent=11 // pred_check
          %p376 = pneg %p264
        $region46: #{vae_forward.1} parent=11 // pred_check_branch
          %378 = sbr.rel (%p376) target = $region48
        $region47: #{vae_forward.1} parent=11 // pred_region
          _
        $region48: #{vae_forward.1} parent=11 // pred_fallthru
          _
        // Predicated region
        $region49: #{vae_forward.1} parent=11 // pred_check
          %p379 = pneg %p285
        $region50: #{vae_forward.1} parent=11 // pred_check_branch
          %381 = sbr.rel (%p379) target = $region52
        $region51: #{vae_forward.1} parent=11 // pred_region
          _
        $region52: #{vae_forward.1} parent=11 // pred_fallthru
          _
      $region12: #{vae_forward.1} parent=5 // pred_fallthru
        _
      %p382 = scmp.lt.s32.totalorder %s23, 2
      // Predicated region
      $region53: #{vae_forward.1} parent=5 // pred_check
        %p383 = pneg %p382
      $region54: #{vae_forward.1} parent=5 // pred_check_branch
        %385 = sbr.rel (%p383) target = $region56
      $region55: #{vae_forward.1} parent=5 // pred_region
        // Predicated region
        $region57: #{vae_forward.1} parent=55 // pred_check
          %p386 = pneg %p43
        $region58: #{vae_forward.1} parent=55 // pred_check_branch
          %388 = sbr.rel (%p386) target = $region60
        $region59: #{vae_forward.1} parent=55 // pred_region
          %p389 = scmp.lt.s32.totalorder %s23, 1
          %s390 = scalar_select %p389, %s23, 1
          %s391 = smul.addr %s390, 7
          %s392 = smul.addr %s391, 4
          %s393 = scalar_lea.vmem %s0, %s392
        $region60: #{vae_forward.1} parent=55 // pred_fallthru
          _
        // Predicated region
        $region61: #{vae_forward.1} parent=55 // pred_check
          %p394 = pneg %p69
        $region62: #{vae_forward.1} parent=55 // pred_check_branch
          %396 = sbr.rel (%p394) target = $region64
        $region63: #{vae_forward.1} parent=55 // pred_region
          %p397 = scmp.lt.s32.totalorder %s23, 1
          %s398 = scalar_select %p397, %s23, 1
          %s399 = smul.addr %s398, 8
          %s400 = scalar_lea.vmem %s1, %s399
        $region64: #{vae_forward.1} parent=55 // pred_fallthru
          _
      $region56: #{vae_forward.1} parent=5 // pred_fallthru
        _
      %p401 = scmp.le.s32.totalorder 1, %s23
      %p402 = scmp.lt.s32.totalorder %s23, 3
      %p403 = pnand %p401, %p402
      %p404 = pneg %p403
      // Predicated region
      $region65: #{vae_forward.1} parent=5 // pred_check
        _
      $region66: #{vae_forward.1} parent=5 // pred_check_branch
        %406 = sbr.rel (%p403) target = $region68
      $region67: #{vae_forward.1} parent=5 // pred_region
        %s407 = ssub.s32 %s23, 1
        %p408 = scmp.lt.s32.totalorder %s28, 1
        %s409 = scalar_select %p408, %s28, 1
        %s410 = smul.addr %s409, 7
        %s411 = smul.addr %s410, 4
        %s412 = scalar_lea.vmem %s0, %s411
        %p413 = pneg %p49
        %p414 = pneg %p46
        %p415 = scmp.lt.s32.totalorder %s28, 1
        %s416 = scalar_select %p415, %s28, 1
        %s417 = smul.addr %s416, 8
        %s418 = scalar_lea.vmem %s1, %s417
        %p419 = pneg %p75
        %p420 = pneg %p72
        %p421 = pneg %p96
        %p422 = pneg %p93
        %p423 = pneg %p117
        %p424 = pneg %p114
        %p425 = pneg %p138
        %p426 = pneg %p135
        %p427 = pneg %p159
        %p428 = pneg %p156
        %p429 = pneg %p180
        %p430 = pneg %p177
        %p431 = pneg %p201
        %p432 = pneg %p198
        %p433 = pneg %p222
        %p434 = pneg %p219
        %p435 = pneg %p243
        %p436 = pneg %p240
        %p437 = pneg %p264
        %p438 = pneg %p261
        %p439 = pneg %p285
        %p440 = pneg %p282
        %p441 = pneg %p311
        %p442 = pneg %p308
        %s443 = sand.u32 %s298, 1
        %s444 = scalar_lea.sflag [#allocation3], %s443
        %s445 = sand.u32 %s298, 1
        %s446 = smul.addr %s445, 28
        %s447 = scalar_lea.vmem [#allocation2], %s446
        %p448 = pneg %p337
        %p449 = pneg %p334
        %p450 = scmp.lt.s32.totalorder %s28, 1
        %s451 = scalar_select %p450, %s28, 1
        %s452 = smul.addr %s451, 4
        %s453 = scalar_lea.vmem %s13, %s452
        %p454 = scmp.lt.s32.totalorder %s28, 1
        %s455 = scalar_select %p454, %s28, 1
        %s456 = smul.addr %s455, 7
        %s457 = smul.addr %s456, 4
        %s458 = scalar_lea.vmem %s0, %s457
        %p459 = scmp.lt.s32.totalorder %s28, 1
        %s460 = scalar_select %p459, %s28, 1
        %s461 = smul.addr %s460, 8
        %s462 = scalar_lea.vmem %s1, %s461
        %p463 = scmp.lt.s32.totalorder %s28, 1
        %s464 = scalar_select %p463, %s28, 1
        %s465 = smul.addr %s464, 4
        %s466 = scalar_lea.vmem %s13, %s465
        %v468 = vld [vmem:[%s458] sm:$0xff]
        %v469 = vld [vmem:[%s458 + $0x8] sm:$0xff]
        %v470 = vld [vmem:[%s458 + $0x10] sm:$0xff]
        %v471 = vld [vmem:[%s458 + $0x18] sm:$0xf]
        %v472 = vld [vmem:[%s462] sm:$0xff]
        %v473 = vld [vmem:[%s2] sm:$0xff]
        %v474 = vld [vmem:[%s2 + $0x8] sm:$0xff]
        %v475 = vld [vmem:[%s2 + $0x10] sm:$0xff]
        %v476 = vld [vmem:[%s2 + $0x18] sm:$0xff]
        %v477 = vld [vmem:[%s2 + $0x20] sm:$0xff]
        %v478 = vld [vmem:[%s2 + $0x28] sm:$0xff]
        %v479 = vld [vmem:[%s2 + $0x30] sm:$0xff]
        %v480 = vld [vmem:[%s2 + $0x38] sm:$0xff]
        %v481 = vld [vmem:[%s2 + $0x40] sm:$0xff]
        %v482 = vld [vmem:[%s2 + $0x48] sm:$0xff]
        %v483 = vld [vmem:[%s2 + $0x50] sm:$0xff]
        %v484 = vld [vmem:[%s2 + $0x58] sm:$0xff]
        %v485 = vld [vmem:[%s2 + $0x60] sm:$0xff]
        %v486 = vld [vmem:[%s2 + $0x68] sm:$0xff]
        %v487 = vld [vmem:[%s2 + $0x70] sm:$0xff]
        %v488 = vld [vmem:[%s2 + $0x78] sm:$0xff]
        %v489 = vld [vmem:[%s2 + $0x80] sm:$0xff]
        %v490 = vld [vmem:[%s2 + $0x88] sm:$0xff]
        %v491 = vld [vmem:[%s2 + $0x90] sm:$0xff]
        %v492 = vld [vmem:[%s2 + $0x98] sm:$0xff]
        %v493 = vld [vmem:[%s2 + $0xa0] sm:$0xff]
        %v494 = vld [vmem:[%s2 + $0xa8] sm:$0xff]
        %v495 = vld [vmem:[%s2 + $0xb0] sm:$0xff]
        %v496 = vld [vmem:[%s2 + $0xb8] sm:$0xff]
        %v497 = vld [vmem:[%s2 + $0xc0] sm:$0xff]
        %v498 = vld [vmem:[%s2 + $0xc8] sm:$0xff]
        %v499 = vld [vmem:[%s2 + $0xd0] sm:$0xff]
        %v500 = vld [vmem:[%s2 + $0xd8] sm:$0xff]
        %v501 = vld [vmem:[%s2 + $0xe0] sm:$0xff]
        %v502 = vld [vmem:[%s2 + $0xe8] sm:$0xff]
        %v503 = vld [vmem:[%s2 + $0xf0] sm:$0xff]
        %v504 = vld [vmem:[%s2 + $0xf8] sm:$0xff]
        %v505 = vld [vmem:[%s2 + $0x100] sm:$0xff]
        %v506 = vld [vmem:[%s2 + $0x108] sm:$0xff]
        %v507 = vld [vmem:[%s2 + $0x110] sm:$0xff]
        %v508 = vld [vmem:[%s2 + $0x118] sm:$0xff]
        %v509 = vld [vmem:[%s2 + $0x120] sm:$0xff]
        %v510 = vld [vmem:[%s2 + $0x128] sm:$0xff]
        %v511 = vld [vmem:[%s2 + $0x130] sm:$0xff]
        %v512 = vld [vmem:[%s2 + $0x138] sm:$0xff]
        %v513 = vld [vmem:[%s2 + $0x140] sm:$0xff]
        %v514 = vld [vmem:[%s2 + $0x148] sm:$0xff]
        %v515 = vld [vmem:[%s2 + $0x150] sm:$0xff]
        %v516 = vld [vmem:[%s2 + $0x158] sm:$0xff]
        %v517 = vld [vmem:[%s2 + $0x160] sm:$0xff]
        %v518 = vld [vmem:[%s2 + $0x168] sm:$0xff]
        %v519 = vld [vmem:[%s2 + $0x170] sm:$0xff]
        %v520 = vld [vmem:[%s2 + $0x178] sm:$0xff]
        %v521 = vld [vmem:[%s2 + $0x180] sm:$0xff]
        %v522 = vld [vmem:[%s2 + $0x188] sm:$0xff]
        %v523 = vld [vmem:[%s2 + $0x190] sm:$0xff]
        %v524 = vld [vmem:[%s2 + $0x198] sm:$0xff]
        %v525 = vld [vmem:[%s2 + $0x1a0] sm:$0xff]
        %v526 = vld [vmem:[%s2 + $0x1a8] sm:$0xff]
        %v527 = vld [vmem:[%s2 + $0x1b0] sm:$0xff]
        %v528 = vld [vmem:[%s2 + $0x1b8] sm:$0xff]
        %v529 = vld [vmem:[%s2 + $0x1c0] sm:$0xff]
        %v530 = vld [vmem:[%s2 + $0x1c8] sm:$0xff]
        %v531 = vld [vmem:[%s2 + $0x1d0] sm:$0xff]
        %v532 = vld [vmem:[%s2 + $0x1d8] sm:$0xff]
        %v533 = vld [vmem:[%s2 + $0x1e0] sm:$0xff]
        %v534 = vld [vmem:[%s2 + $0x1e8] sm:$0xff]
        %v535 = vld [vmem:[%s2 + $0x1f0] sm:$0xff]
        %v536 = vld [vmem:[%s2 + $0x1f8] sm:$0xff]
        %v537 = vld [vmem:[%s2 + $0x200] sm:$0xff]
        %v538 = vld [vmem:[%s2 + $0x208] sm:$0xff]
        %v539 = vld [vmem:[%s2 + $0x210] sm:$0xff]
        %v540 = vld [vmem:[%s2 + $0x218] sm:$0xff]
        %v541 = vld [vmem:[%s2 + $0x220] sm:$0xff]
        %v542 = vld [vmem:[%s2 + $0x228] sm:$0xff]
        %v543 = vld [vmem:[%s2 + $0x230] sm:$0xff]
        %v544 = vld [vmem:[%s2 + $0x238] sm:$0xff]
        %v545 = vld [vmem:[%s2 + $0x240] sm:$0xff]
        %v546 = vld [vmem:[%s2 + $0x248] sm:$0xff]
        %v547 = vld [vmem:[%s2 + $0x250] sm:$0xff]
        %v548 = vld [vmem:[%s2 + $0x258] sm:$0xff]
        %v549 = vld [vmem:[%s2 + $0x260] sm:$0xff]
        %v550 = vld [vmem:[%s2 + $0x268] sm:$0xff]
        %v551 = vld [vmem:[%s2 + $0x270] sm:$0xff]
        %v552 = vld [vmem:[%s2 + $0x278] sm:$0xff]
        %v553 = vld [vmem:[%s2 + $0x280] sm:$0xff]
        %v554 = vld [vmem:[%s2 + $0x288] sm:$0xff]
        %v555 = vld [vmem:[%s2 + $0x290] sm:$0xff]
        %v556 = vld [vmem:[%s2 + $0x298] sm:$0xff]
        %v557 = vld [vmem:[%s2 + $0x2a0] sm:$0xff]
        %v558 = vld [vmem:[%s2 + $0x2a8] sm:$0xff]
        %v559 = vld [vmem:[%s2 + $0x2b0] sm:$0xff]
        %v560 = vld [vmem:[%s2 + $0x2b8] sm:$0xff]
        %v561 = vld [vmem:[%s2 + $0x2c0] sm:$0xff]
        %v562 = vld [vmem:[%s2 + $0x2c8] sm:$0xff]
        %v563 = vld [vmem:[%s2 + $0x2d0] sm:$0xff]
        %v564 = vld [vmem:[%s2 + $0x2d8] sm:$0xff]
        %v565 = vld [vmem:[%s2 + $0x2e0] sm:$0xff]
        %v566 = vld [vmem:[%s2 + $0x2e8] sm:$0xff]
        %v567 = vld [vmem:[%s2 + $0x2f0] sm:$0xff]
        %v568 = vld [vmem:[%s2 + $0x2f8] sm:$0xff]
        %v569 = vld [vmem:[%s2 + $0x300] sm:$0xff]
        %v570 = vld [vmem:[%s2 + $0x308] sm:$0xff]
        %v571 = vld [vmem:[%s2 + $0x310] sm:$0xff]
        %v572 = vld [vmem:[%s2 + $0x318] sm:$0xff]
        %v573 = vld [vmem:[%s2 + $0x320] sm:$0xff]
        %v574 = vld [vmem:[%s2 + $0x328] sm:$0xff]
        %v575 = vld [vmem:[%s2 + $0x330] sm:$0xff]
        %v576 = vld [vmem:[%s2 + $0x338] sm:$0xff]
        %v577 = vld [vmem:[%s2 + $0x340] sm:$0xff]
        %v578 = vld [vmem:[%s2 + $0x348] sm:$0xff]
        %v579 = vld [vmem:[%s2 + $0x350] sm:$0xff]
        %v580 = vld [vmem:[%s2 + $0x358] sm:$0xff]
        %v581 = vld [vmem:[%s2 + $0x360] sm:$0xff]
        %v582 = vld [vmem:[%s2 + $0x368] sm:$0xff]
        %v583 = vld [vmem:[%s2 + $0x370] sm:$0xff]
        %v584 = vld [vmem:[%s2 + $0x378] sm:$0xff]
        %v585 = vld [vmem:[%s2 + $0x380] sm:$0xff]
        %v586 = vld [vmem:[%s2 + $0x388] sm:$0xff]
        %v587 = vld [vmem:[%s2 + $0x390] sm:$0xff]
        %v588 = vld [vmem:[%s2 + $0x398] sm:$0xff]
        %v589 = vld [vmem:[%s2 + $0x3a0] sm:$0xff]
        %v590 = vld [vmem:[%s2 + $0x3a8] sm:$0xff]
        %v591 = vld [vmem:[%s2 + $0x3b0] sm:$0xff]
        %v592 = vld [vmem:[%s2 + $0x3b8] sm:$0xff]
        %v593 = vld [vmem:[%s2 + $0x3c0] sm:$0xff]
        %v594 = vld [vmem:[%s2 + $0x3c8] sm:$0xff]
        %v595 = vld [vmem:[%s2 + $0x3d0] sm:$0xff]
        %v596 = vld [vmem:[%s2 + $0x3d8] sm:$0xff]
        %v597 = vld [vmem:[%s2 + $0x3e0] sm:$0xff]
        %v598 = vld [vmem:[%s2 + $0x3e8] sm:$0xff]
        %v599 = vld [vmem:[%s2 + $0x3f0] sm:$0xff]
        %v600 = vld [vmem:[%s2 + $0x3f8] sm:$0xff]
        %v601 = vld [vmem:[%s2 + $0x400] sm:$0xff]
        %v602 = vld [vmem:[%s2 + $0x408] sm:$0xff]
        %v603 = vld [vmem:[%s2 + $0x410] sm:$0xff]
        %v604 = vld [vmem:[%s2 + $0x418] sm:$0xff]
        %v605 = vld [vmem:[%s2 + $0x420] sm:$0xff]
        %v606 = vld [vmem:[%s2 + $0x428] sm:$0xff]
        %v607 = vld [vmem:[%s2 + $0x430] sm:$0xff]
        %v608 = vld [vmem:[%s2 + $0x438] sm:$0xff]
        %v609 = vld [vmem:[%s2 + $0x440] sm:$0xff]
        %v610 = vld [vmem:[%s2 + $0x448] sm:$0xff]
        %v611 = vld [vmem:[%s2 + $0x450] sm:$0xff]
        %v612 = vld [vmem:[%s2 + $0x458] sm:$0xff]
        %v613 = vld [vmem:[%s2 + $0x460] sm:$0xff]
        %v614 = vld [vmem:[%s2 + $0x468] sm:$0xff]
        %v615 = vld [vmem:[%s2 + $0x470] sm:$0xff]
        %v616 = vld [vmem:[%s2 + $0x478] sm:$0xff]
        %v617 = vld [vmem:[%s2 + $0x480] sm:$0xff]
        %v618 = vld [vmem:[%s2 + $0x488] sm:$0xff]
        %v619 = vld [vmem:[%s2 + $0x490] sm:$0xff]
        %v620 = vld [vmem:[%s2 + $0x498] sm:$0xff]
        %v621 = vld [vmem:[%s2 + $0x4a0] sm:$0xff]
        %v622 = vld [vmem:[%s2 + $0x4a8] sm:$0xff]
        %v623 = vld [vmem:[%s2 + $0x4b0] sm:$0xff]
        %v624 = vld [vmem:[%s2 + $0x4b8] sm:$0xff]
        %v625 = vld [vmem:[%s2 + $0x4c0] sm:$0xff]
        %v626 = vld [vmem:[%s2 + $0x4c8] sm:$0xff]
        %v627 = vld [vmem:[%s2 + $0x4d0] sm:$0xff]
        %v628 = vld [vmem:[%s2 + $0x4d8] sm:$0xff]
        %v629 = vld [vmem:[%s2 + $0x4e0] sm:$0xff]
        %v630 = vld [vmem:[%s2 + $0x4e8] sm:$0xff]
        %v631 = vld [vmem:[%s2 + $0x4f0] sm:$0xff]
        %v632 = vld [vmem:[%s2 + $0x4f8] sm:$0xff]
        %v633 = vld [vmem:[%s2 + $0x500] sm:$0xff]
        %v634 = vld [vmem:[%s2 + $0x508] sm:$0xff]
        %v635 = vld [vmem:[%s2 + $0x510] sm:$0xff]
        %v636 = vld [vmem:[%s2 + $0x518] sm:$0xff]
        %v637 = vld [vmem:[%s2 + $0x520] sm:$0xff]
        %v638 = vld [vmem:[%s2 + $0x528] sm:$0xff]
        %v639 = vld [vmem:[%s2 + $0x530] sm:$0xff]
        %v640 = vld [vmem:[%s2 + $0x538] sm:$0xff]
        %v641 = vld [vmem:[%s2 + $0x540] sm:$0xff]
        %v642 = vld [vmem:[%s2 + $0x548] sm:$0xff]
        %v643 = vld [vmem:[%s2 + $0x550] sm:$0xff]
        %v644 = vld [vmem:[%s2 + $0x558] sm:$0xff]
        %v645 = vld [vmem:[%s2 + $0x560] sm:$0xff]
        %v646 = vld [vmem:[%s2 + $0x568] sm:$0xff]
        %v647 = vld [vmem:[%s2 + $0x570] sm:$0xff]
        %v648 = vld [vmem:[%s2 + $0x578] sm:$0xff]
        %v649 = vld [vmem:[%s2 + $0x580] sm:$0xff]
        %v650 = vld [vmem:[%s2 + $0x588] sm:$0xff]
        %v651 = vld [vmem:[%s2 + $0x590] sm:$0xff]
        %v652 = vld [vmem:[%s2 + $0x598] sm:$0xff]
        %v653 = vld [vmem:[%s2 + $0x5a0] sm:$0xff]
        %v654 = vld [vmem:[%s2 + $0x5a8] sm:$0xff]
        %v655 = vld [vmem:[%s2 + $0x5b0] sm:$0xff]
        %v656 = vld [vmem:[%s2 + $0x5b8] sm:$0xff]
        %v657 = vld [vmem:[%s2 + $0x5c0] sm:$0xff]
        %v658 = vld [vmem:[%s2 + $0x5c8] sm:$0xff]
        %v659 = vld [vmem:[%s2 + $0x5d0] sm:$0xff]
        %v660 = vld [vmem:[%s2 + $0x5d8] sm:$0xff]
        %v661 = vld [vmem:[%s2 + $0x5e0] sm:$0xff]
        %v662 = vld [vmem:[%s2 + $0x5e8] sm:$0xff]
        %v663 = vld [vmem:[%s2 + $0x5f0] sm:$0xff]
        %v664 = vld [vmem:[%s2 + $0x5f8] sm:$0xff]
        %v665 = vld [vmem:[%s2 + $0x600] sm:$0xff]
        %v666 = vld [vmem:[%s2 + $0x608] sm:$0xff]
        %v667 = vld [vmem:[%s2 + $0x610] sm:$0xff]
        %v668 = vld [vmem:[%s2 + $0x618] sm:$0xff]
        %v669 = vld [vmem:[%s3] sm:$0xf]
        %v671 = vlaneseq
        %v672 = vshrl.u32 %v671, 7
        %v673 = vsub.s32 0, %v672
        %v674 = vrot.slane %v669, %v673
        %v675 = vlaneseq
        %v676 = vshrl.u32 %v675, 7
        %v677 = vsub.s32 1, %v676
        %v678 = vrot.slane %v669, %v677
        %v679 = vlaneseq
        %v680 = vshrl.u32 %v679, 7
        %v681 = vsub.s32 2, %v680
        %v682 = vrot.slane %v669, %v681
        %v683 = vlaneseq
        %v684 = vshrl.u32 %v683, 7
        %v685 = vsub.s32 3, %v684
        %v686 = vrot.slane %v669, %v685
        %v695 = vunpack.c.l.b16 %v468
        %v696 = vunpack.c.h.b16 %v468
        %v697 = vunpack.c.l.b16 %v469
        %v698 = vunpack.c.h.b16 %v469
        %v699 = vunpack.c.l.b16 %v470
        %v700 = vunpack.c.h.b16 %v470
        %v701 = vunpack.c.l.b16 %v471
        %v702 = vpack.c.b16 %v695, %v695
        %v703 = vpack.c.b16 %v696, %v696
        %v704 = vpack.c.b16 %v697, %v697
        %v705 = vpack.c.b16 %v698, %v698
        %v706 = vpack.c.b16 %v699, %v699
        %v707 = vpack.c.b16 %v700, %v700
        %v708 = vpack.c.b16 %v701, %v701
        %v911 = vunpack.c.l.b16 %v473
        %v912 = vunpack.c.h.b16 %v473
        %v913 = vunpack.c.l.b16 %v474
        %v914 = vunpack.c.h.b16 %v474
        %v915 = vunpack.c.l.b16 %v475
        %v916 = vunpack.c.h.b16 %v475
        %v917 = vunpack.c.l.b16 %v476
        %v918 = vunpack.c.h.b16 %v476
        %v919 = vunpack.c.l.b16 %v477
        %v920 = vunpack.c.h.b16 %v477
        %v921 = vunpack.c.l.b16 %v478
        %v922 = vunpack.c.h.b16 %v478
        %v923 = vunpack.c.l.b16 %v479
        %v924 = vunpack.c.h.b16 %v479
        %v925 = vunpack.c.l.b16 %v480
        %v926 = vunpack.c.h.b16 %v480
        %v927 = vunpack.c.l.b16 %v481
        %v928 = vunpack.c.h.b16 %v481
        %v929 = vunpack.c.l.b16 %v482
        %v930 = vunpack.c.h.b16 %v482
        %v931 = vunpack.c.l.b16 %v483
        %v932 = vunpack.c.h.b16 %v483
        %v933 = vunpack.c.l.b16 %v484
        %v934 = vunpack.c.h.b16 %v484
        %v935 = vunpack.c.l.b16 %v485
        %v936 = vunpack.c.h.b16 %v485
        %v937 = vunpack.c.l.b16 %v486
        %v938 = vunpack.c.h.b16 %v486
        %v939 = vunpack.c.l.b16 %v487
        %v940 = vunpack.c.h.b16 %v487
        %v941 = vunpack.c.l.b16 %v488
        %v942 = vunpack.c.h.b16 %v488
        %v943 = vunpack.c.l.b16 %v489
        %v944 = vunpack.c.h.b16 %v489
        %v945 = vunpack.c.l.b16 %v490
        %v946 = vunpack.c.h.b16 %v490
        %v947 = vunpack.c.l.b16 %v491
        %v948 = vunpack.c.h.b16 %v491
        %v949 = vunpack.c.l.b16 %v492
        %v950 = vunpack.c.h.b16 %v492
        %v951 = vunpack.c.l.b16 %v493
        %v952 = vunpack.c.h.b16 %v493
        %v953 = vunpack.c.l.b16 %v494
        %v954 = vunpack.c.h.b16 %v494
        %v955 = vunpack.c.l.b16 %v495
        %v956 = vunpack.c.h.b16 %v495
        %v957 = vunpack.c.l.b16 %v496
        %v958 = vunpack.c.h.b16 %v496
        %v959 = vunpack.c.l.b16 %v497
        %v960 = vunpack.c.h.b16 %v497
        %v961 = vunpack.c.l.b16 %v498
        %v962 = vunpack.c.h.b16 %v498
        %v963 = vunpack.c.l.b16 %v499
        %v964 = vunpack.c.h.b16 %v499
        %v965 = vunpack.c.l.b16 %v500
        %v966 = vunpack.c.h.b16 %v500
        %v967 = vunpack.c.l.b16 %v501
        %v968 = vunpack.c.h.b16 %v501
        %v969 = vunpack.c.l.b16 %v502
        %v970 = vunpack.c.h.b16 %v502
        %v971 = vunpack.c.l.b16 %v503
        %v972 = vunpack.c.h.b16 %v503
        %v973 = vunpack.c.l.b16 %v504
        %v974 = vunpack.c.h.b16 %v504
        %v975 = vunpack.c.l.b16 %v505
        %v976 = vunpack.c.h.b16 %v505
        %v977 = vunpack.c.l.b16 %v506
        %v978 = vunpack.c.h.b16 %v506
        %v979 = vunpack.c.l.b16 %v507
        %v980 = vunpack.c.h.b16 %v507
        %v981 = vunpack.c.l.b16 %v508
        %v982 = vunpack.c.h.b16 %v508
        %v983 = vunpack.c.l.b16 %v509
        %v984 = vunpack.c.h.b16 %v509
        %v985 = vunpack.c.l.b16 %v510
        %v986 = vunpack.c.h.b16 %v510
        %v987 = vunpack.c.l.b16 %v511
        %v988 = vunpack.c.h.b16 %v511
        %v989 = vunpack.c.l.b16 %v512
        %v990 = vunpack.c.h.b16 %v512
        %v991 = vunpack.c.l.b16 %v513
        %v992 = vunpack.c.h.b16 %v513
        %v993 = vunpack.c.l.b16 %v514
        %v994 = vunpack.c.h.b16 %v514
        %v995 = vunpack.c.l.b16 %v515
        %v996 = vunpack.c.h.b16 %v515
        %v997 = vunpack.c.l.b16 %v516
        %v998 = vunpack.c.h.b16 %v516
        %v999 = vunpack.c.l.b16 %v517
        %v1000 = vunpack.c.h.b16 %v517
        %v1001 = vunpack.c.l.b16 %v518
        %v1002 = vunpack.c.h.b16 %v518
        %v1003 = vunpack.c.l.b16 %v519
        %v1004 = vunpack.c.h.b16 %v519
        %v1005 = vunpack.c.l.b16 %v520
        %v1006 = vunpack.c.h.b16 %v520
        %v1007 = vunpack.c.l.b16 %v521
        %v1008 = vunpack.c.h.b16 %v521
        %v1009 = vunpack.c.l.b16 %v522
        %v1010 = vunpack.c.h.b16 %v522
        %v1011 = vunpack.c.l.b16 %v523
        %v1012 = vunpack.c.h.b16 %v523
        %v1013 = vunpack.c.l.b16 %v524
        %v1014 = vunpack.c.h.b16 %v524
        %v1015 = vunpack.c.l.b16 %v525
        %v1016 = vunpack.c.h.b16 %v525
        %v1017 = vunpack.c.l.b16 %v526
        %v1018 = vunpack.c.h.b16 %v526
        %v1019 = vunpack.c.l.b16 %v527
        %v1020 = vunpack.c.h.b16 %v527
        %v1021 = vunpack.c.l.b16 %v528
        %v1022 = vunpack.c.h.b16 %v528
        %v1023 = vunpack.c.l.b16 %v529
        %v1024 = vunpack.c.h.b16 %v529
        %v1025 = vunpack.c.l.b16 %v530
        %v1026 = vunpack.c.h.b16 %v530
        %v1027 = vunpack.c.l.b16 %v531
        %v1028 = vunpack.c.h.b16 %v531
        %v1029 = vunpack.c.l.b16 %v532
        %v1030 = vunpack.c.h.b16 %v532
        %v1031 = vunpack.c.l.b16 %v533
        %v1032 = vunpack.c.h.b16 %v533
        %v1033 = vunpack.c.l.b16 %v534
        %v1034 = vunpack.c.h.b16 %v534
        %v1035 = vunpack.c.l.b16 %v535
        %v1036 = vunpack.c.h.b16 %v535
        %v1037 = vunpack.c.l.b16 %v536
        %v1038 = vunpack.c.h.b16 %v536
        %v1039 = vunpack.c.l.b16 %v537
        %v1040 = vunpack.c.h.b16 %v537
        %v1041 = vunpack.c.l.b16 %v538
        %v1042 = vunpack.c.h.b16 %v538
        %v1043 = vunpack.c.l.b16 %v539
        %v1044 = vunpack.c.h.b16 %v539
        %v1045 = vunpack.c.l.b16 %v540
        %v1046 = vunpack.c.h.b16 %v540
        %v1047 = vunpack.c.l.b16 %v541
        %v1048 = vunpack.c.h.b16 %v541
        %v1049 = vunpack.c.l.b16 %v542
        %v1050 = vunpack.c.h.b16 %v542
        %v1051 = vunpack.c.l.b16 %v543
        %v1052 = vunpack.c.h.b16 %v543
        %v1053 = vunpack.c.l.b16 %v544
        %v1054 = vunpack.c.h.b16 %v544
        %v1055 = vunpack.c.l.b16 %v545
        %v1056 = vunpack.c.h.b16 %v545
        %v1057 = vunpack.c.l.b16 %v546
        %v1058 = vunpack.c.h.b16 %v546
        %v1059 = vunpack.c.l.b16 %v547
        %v1060 = vunpack.c.h.b16 %v547
        %v1061 = vunpack.c.l.b16 %v548
        %v1062 = vunpack.c.h.b16 %v548
        %v1063 = vunpack.c.l.b16 %v549
        %v1064 = vunpack.c.h.b16 %v549
        %v1065 = vunpack.c.l.b16 %v550
        %v1066 = vunpack.c.h.b16 %v550
        %v1067 = vunpack.c.l.b16 %v551
        %v1068 = vunpack.c.h.b16 %v551
        %v1069 = vunpack.c.l.b16 %v552
        %v1070 = vunpack.c.h.b16 %v552
        %v1071 = vunpack.c.l.b16 %v553
        %v1072 = vunpack.c.h.b16 %v553
        %v1073 = vunpack.c.l.b16 %v554
        %v1074 = vunpack.c.h.b16 %v554
        %v1075 = vunpack.c.l.b16 %v555
        %v1076 = vunpack.c.h.b16 %v555
        %v1077 = vunpack.c.l.b16 %v556
        %v1078 = vunpack.c.h.b16 %v556
        %v1079 = vunpack.c.l.b16 %v557
        %v1080 = vunpack.c.h.b16 %v557
        %v1081 = vunpack.c.l.b16 %v558
        %v1082 = vunpack.c.h.b16 %v558
        %v1083 = vunpack.c.l.b16 %v559
        %v1084 = vunpack.c.h.b16 %v559
        %v1085 = vunpack.c.l.b16 %v560
        %v1086 = vunpack.c.h.b16 %v560
        %v1087 = vunpack.c.l.b16 %v561
        %v1088 = vunpack.c.h.b16 %v561
        %v1089 = vunpack.c.l.b16 %v562
        %v1090 = vunpack.c.h.b16 %v562
        %v1091 = vunpack.c.l.b16 %v563
        %v1092 = vunpack.c.h.b16 %v563
        %v1093 = vunpack.c.l.b16 %v564
        %v1094 = vunpack.c.h.b16 %v564
        %v1095 = vunpack.c.l.b16 %v565
        %v1096 = vunpack.c.h.b16 %v565
        %v1097 = vunpack.c.l.b16 %v566
        %v1098 = vunpack.c.h.b16 %v566
        %v1099 = vunpack.c.l.b16 %v567
        %v1100 = vunpack.c.h.b16 %v567
        %v1101 = vunpack.c.l.b16 %v568
        %v1102 = vunpack.c.h.b16 %v568
        %v1103 = vunpack.c.l.b16 %v569
        %v1104 = vunpack.c.h.b16 %v569
        %v1105 = vunpack.c.l.b16 %v570
        %v1106 = vunpack.c.h.b16 %v570
        %v1107 = vunpack.c.l.b16 %v571
        %v1108 = vunpack.c.h.b16 %v571
        %v1109 = vunpack.c.l.b16 %v572
        %v1110 = vunpack.c.h.b16 %v572
        %v1111 = vunpack.c.l.b16 %v573
        %v1112 = vunpack.c.h.b16 %v573
        %v1113 = vunpack.c.l.b16 %v574
        %v1114 = vunpack.c.h.b16 %v574
        %v1115 = vunpack.c.l.b16 %v575
        %v1116 = vunpack.c.h.b16 %v575
        %v1117 = vunpack.c.l.b16 %v576
        %v1118 = vunpack.c.h.b16 %v576
        %v1119 = vunpack.c.l.b16 %v577
        %v1120 = vunpack.c.h.b16 %v577
        %v1121 = vunpack.c.l.b16 %v578
        %v1122 = vunpack.c.h.b16 %v578
        %v1123 = vunpack.c.l.b16 %v579
        %v1124 = vunpack.c.h.b16 %v579
        %v1125 = vunpack.c.l.b16 %v580
        %v1126 = vunpack.c.h.b16 %v580
        %v1127 = vunpack.c.l.b16 %v581
        %v1128 = vunpack.c.h.b16 %v581
        %v1129 = vunpack.c.l.b16 %v582
        %v1130 = vunpack.c.h.b16 %v582
        %v1131 = vunpack.c.l.b16 %v583
        %v1132 = vunpack.c.h.b16 %v583
        %v1133 = vunpack.c.l.b16 %v584
        %v1134 = vunpack.c.h.b16 %v584
        %v1135 = vunpack.c.l.b16 %v585
        %v1136 = vunpack.c.h.b16 %v585
        %v1137 = vunpack.c.l.b16 %v586
        %v1138 = vunpack.c.h.b16 %v586
        %v1139 = vunpack.c.l.b16 %v587
        %v1140 = vunpack.c.h.b16 %v587
        %v1141 = vunpack.c.l.b16 %v588
        %v1142 = vunpack.c.h.b16 %v588
        %v1143 = vunpack.c.l.b16 %v589
        %v1144 = vunpack.c.h.b16 %v589
        %v1145 = vunpack.c.l.b16 %v590
        %v1146 = vunpack.c.h.b16 %v590
        %v1147 = vunpack.c.l.b16 %v591
        %v1148 = vunpack.c.h.b16 %v591
        %v1149 = vunpack.c.l.b16 %v592
        %v1150 = vunpack.c.h.b16 %v592
        %v1151 = vunpack.c.l.b16 %v593
        %v1152 = vunpack.c.h.b16 %v593
        %v1153 = vunpack.c.l.b16 %v594
        %v1154 = vunpack.c.h.b16 %v594
        %v1155 = vunpack.c.l.b16 %v595
        %v1156 = vunpack.c.h.b16 %v595
        %v1157 = vunpack.c.l.b16 %v596
        %v1158 = vunpack.c.h.b16 %v596
        %v1159 = vunpack.c.l.b16 %v597
        %v1160 = vunpack.c.h.b16 %v597
        %v1161 = vunpack.c.l.b16 %v598
        %v1162 = vunpack.c.h.b16 %v598
        %v1163 = vunpack.c.l.b16 %v599
        %v1164 = vunpack.c.h.b16 %v599
        %v1165 = vunpack.c.l.b16 %v600
        %v1166 = vunpack.c.h.b16 %v600
        %v1167 = vunpack.c.l.b16 %v601
        %v1168 = vunpack.c.h.b16 %v601
        %v1169 = vunpack.c.l.b16 %v602
        %v1170 = vunpack.c.h.b16 %v602
        %v1171 = vunpack.c.l.b16 %v603
        %v1172 = vunpack.c.h.b16 %v603
        %v1173 = vunpack.c.l.b16 %v604
        %v1174 = vunpack.c.h.b16 %v604
        %v1175 = vunpack.c.l.b16 %v605
        %v1176 = vunpack.c.h.b16 %v605
        %v1177 = vunpack.c.l.b16 %v606
        %v1178 = vunpack.c.h.b16 %v606
        %v1179 = vunpack.c.l.b16 %v607
        %v1180 = vunpack.c.h.b16 %v607
        %v1181 = vunpack.c.l.b16 %v608
        %v1182 = vunpack.c.h.b16 %v608
        %v1183 = vunpack.c.l.b16 %v609
        %v1184 = vunpack.c.h.b16 %v609
        %v1185 = vunpack.c.l.b16 %v610
        %v1186 = vunpack.c.h.b16 %v610
        %v1187 = vunpack.c.l.b16 %v611
        %v1188 = vunpack.c.h.b16 %v611
        %v1189 = vunpack.c.l.b16 %v612
        %v1190 = vunpack.c.h.b16 %v612
        %v1191 = vunpack.c.l.b16 %v613
        %v1192 = vunpack.c.h.b16 %v613
        %v1193 = vunpack.c.l.b16 %v614
        %v1194 = vunpack.c.h.b16 %v614
        %v1195 = vunpack.c.l.b16 %v615
        %v1196 = vunpack.c.h.b16 %v615
        %v1197 = vunpack.c.l.b16 %v616
        %v1198 = vunpack.c.h.b16 %v616
        %v1199 = vunpack.c.l.b16 %v617
        %v1200 = vunpack.c.h.b16 %v617
        %v1201 = vunpack.c.l.b16 %v618
        %v1202 = vunpack.c.h.b16 %v618
        %v1203 = vunpack.c.l.b16 %v619
        %v1204 = vunpack.c.h.b16 %v619
        %v1205 = vunpack.c.l.b16 %v620
        %v1206 = vunpack.c.h.b16 %v620
        %v1207 = vunpack.c.l.b16 %v621
        %v1208 = vunpack.c.h.b16 %v621
        %v1209 = vunpack.c.l.b16 %v622
        %v1210 = vunpack.c.h.b16 %v622
        %v1211 = vunpack.c.l.b16 %v623
        %v1212 = vunpack.c.h.b16 %v623
        %v1213 = vunpack.c.l.b16 %v624
        %v1214 = vunpack.c.h.b16 %v624
        %v1215 = vunpack.c.l.b16 %v625
        %v1216 = vunpack.c.h.b16 %v625
        %v1217 = vunpack.c.l.b16 %v626
        %v1218 = vunpack.c.h.b16 %v626
        %v1219 = vunpack.c.l.b16 %v627
        %v1220 = vunpack.c.h.b16 %v627
        %v1221 = vunpack.c.l.b16 %v628
        %v1222 = vunpack.c.h.b16 %v628
        %v1223 = vunpack.c.l.b16 %v629
        %v1224 = vunpack.c.h.b16 %v629
        %v1225 = vunpack.c.l.b16 %v630
        %v1226 = vunpack.c.h.b16 %v630
        %v1227 = vunpack.c.l.b16 %v631
        %v1228 = vunpack.c.h.b16 %v631
        %v1229 = vunpack.c.l.b16 %v632
        %v1230 = vunpack.c.h.b16 %v632
        %v1231 = vunpack.c.l.b16 %v633
        %v1232 = vunpack.c.h.b16 %v633
        %v1233 = vunpack.c.l.b16 %v634
        %v1234 = vunpack.c.h.b16 %v634
        %v1235 = vunpack.c.l.b16 %v635
        %v1236 = vunpack.c.h.b16 %v635
        %v1237 = vunpack.c.l.b16 %v636
        %v1238 = vunpack.c.h.b16 %v636
        %v1239 = vunpack.c.l.b16 %v637
        %v1240 = vunpack.c.h.b16 %v637
        %v1241 = vunpack.c.l.b16 %v638
        %v1242 = vunpack.c.h.b16 %v638
        %v1243 = vunpack.c.l.b16 %v639
        %v1244 = vunpack.c.h.b16 %v639
        %v1245 = vunpack.c.l.b16 %v640
        %v1246 = vunpack.c.h.b16 %v640
        %v1247 = vunpack.c.l.b16 %v641
        %v1248 = vunpack.c.h.b16 %v641
        %v1249 = vunpack.c.l.b16 %v642
        %v1250 = vunpack.c.h.b16 %v642
        %v1251 = vunpack.c.l.b16 %v643
        %v1252 = vunpack.c.h.b16 %v643
        %v1253 = vunpack.c.l.b16 %v644
        %v1254 = vunpack.c.h.b16 %v644
        %v1255 = vunpack.c.l.b16 %v645
        %v1256 = vunpack.c.h.b16 %v645
        %v1257 = vunpack.c.l.b16 %v646
        %v1258 = vunpack.c.h.b16 %v646
        %v1259 = vunpack.c.l.b16 %v647
        %v1260 = vunpack.c.h.b16 %v647
        %v1261 = vunpack.c.l.b16 %v648
        %v1262 = vunpack.c.h.b16 %v648
        %v1263 = vunpack.c.l.b16 %v649
        %v1264 = vunpack.c.h.b16 %v649
        %v1265 = vunpack.c.l.b16 %v650
        %v1266 = vunpack.c.h.b16 %v650
        %v1267 = vunpack.c.l.b16 %v651
        %v1268 = vunpack.c.h.b16 %v651
        %v1269 = vunpack.c.l.b16 %v652
        %v1270 = vunpack.c.h.b16 %v652
        %v1271 = vunpack.c.l.b16 %v653
        %v1272 = vunpack.c.h.b16 %v653
        %v1273 = vunpack.c.l.b16 %v654
        %v1274 = vunpack.c.h.b16 %v654
        %v1275 = vunpack.c.l.b16 %v655
        %v1276 = vunpack.c.h.b16 %v655
        %v1277 = vunpack.c.l.b16 %v656
        %v1278 = vunpack.c.h.b16 %v656
        %v1279 = vunpack.c.l.b16 %v657
        %v1280 = vunpack.c.h.b16 %v657
        %v1281 = vunpack.c.l.b16 %v658
        %v1282 = vunpack.c.h.b16 %v658
        %v1283 = vunpack.c.l.b16 %v659
        %v1284 = vunpack.c.h.b16 %v659
        %v1285 = vunpack.c.l.b16 %v660
        %v1286 = vunpack.c.h.b16 %v660
        %v1287 = vunpack.c.l.b16 %v661
        %v1288 = vunpack.c.h.b16 %v661
        %v1289 = vunpack.c.l.b16 %v662
        %v1290 = vunpack.c.h.b16 %v662
        %v1291 = vunpack.c.l.b16 %v663
        %v1292 = vunpack.c.h.b16 %v663
        %v1293 = vunpack.c.l.b16 %v664
        %v1294 = vunpack.c.h.b16 %v664
        %v1295 = vunpack.c.l.b16 %v665
        %v1296 = vunpack.c.h.b16 %v665
        %v1297 = vunpack.c.l.b16 %v666
        %v1298 = vunpack.c.h.b16 %v666
        %v1299 = vunpack.c.l.b16 %v667
        %v1300 = vunpack.c.h.b16 %v667
        %v1301 = vunpack.c.l.b16 %v668
        %v1302 = vunpack.c.h.b16 %v668
        %v1303 = vpack.c.b16 %v915, %v911
        %v1304 = vpack.c.b16 %v916, %v912
        %v1305 = vpack.c.b16 %v917, %v913
        %v1306 = vpack.c.b16 %v918, %v914
        %v1307 = vpack.c.b16 %v923, %v919
        %v1308 = vpack.c.b16 %v924, %v920
        %v1309 = vpack.c.b16 %v925, %v921
        %v1310 = vpack.c.b16 %v926, %v922
        %v1311 = vpack.c.b16 %v931, %v927
        %v1312 = vpack.c.b16 %v932, %v928
        %v1313 = vpack.c.b16 %v933, %v929
        %v1314 = vpack.c.b16 %v934, %v930
        %v1315 = vpack.c.b16 %v939, %v935
        %v1316 = vpack.c.b16 %v940, %v936
        %v1317 = vpack.c.b16 %v941, %v937
        %v1318 = vpack.c.b16 %v942, %v938
        %v1319 = vpack.c.b16 %v947, %v943
        %v1320 = vpack.c.b16 %v948, %v944
        %v1321 = vpack.c.b16 %v949, %v945
        %v1322 = vpack.c.b16 %v950, %v946
        %v1323 = vpack.c.b16 %v955, %v951
        %v1324 = vpack.c.b16 %v956, %v952
        %v1325 = vpack.c.b16 %v957, %v953
        %v1326 = vpack.c.b16 %v958, %v954
        %v1327 = vpack.c.b16 %v963, %v959
        %v1328 = vpack.c.b16 %v964, %v960
        %v1329 = vpack.c.b16 %v965, %v961
        %v1330 = vpack.c.b16 %v966, %v962
        %v1331 = vpack.c.b16 %v971, %v967
        %v1332 = vpack.c.b16 %v972, %v968
        %v1333 = vpack.c.b16 %v973, %v969
        %v1334 = vpack.c.b16 %v974, %v970
        %v1335 = vpack.c.b16 %v979, %v975
        %v1336 = vpack.c.b16 %v980, %v976
        %v1337 = vpack.c.b16 %v981, %v977
        %v1338 = vpack.c.b16 %v982, %v978
        %v1339 = vpack.c.b16 %v987, %v983
        %v1340 = vpack.c.b16 %v988, %v984
        %v1341 = vpack.c.b16 %v989, %v985
        %v1342 = vpack.c.b16 %v990, %v986
        %v1343 = vpack.c.b16 %v995, %v991
        %v1344 = vpack.c.b16 %v996, %v992
        %v1345 = vpack.c.b16 %v997, %v993
        %v1346 = vpack.c.b16 %v998, %v994
        %v1347 = vpack.c.b16 %v1003, %v999
        %v1348 = vpack.c.b16 %v1004, %v1000
        %v1349 = vpack.c.b16 %v1005, %v1001
        %v1350 = vpack.c.b16 %v1006, %v1002
        %v1351 = vpack.c.b16 %v1011, %v1007
        %v1352 = vpack.c.b16 %v1012, %v1008
        %v1353 = vpack.c.b16 %v1013, %v1009
        %v1354 = vpack.c.b16 %v1014, %v1010
        %v1355 = vpack.c.b16 %v1019, %v1015
        %v1356 = vpack.c.b16 %v1020, %v1016
        %v1357 = vpack.c.b16 %v1021, %v1017
        %v1358 = vpack.c.b16 %v1022, %v1018
        %v1359 = vpack.c.b16 %v1027, %v1023
        %v1360 = vpack.c.b16 %v1028, %v1024
        %v1361 = vpack.c.b16 %v1029, %v1025
        %v1362 = vpack.c.b16 %v1030, %v1026
        %v1363 = vpack.c.b16 %v1035, %v1031
        %v1364 = vpack.c.b16 %v1036, %v1032
        %v1365 = vpack.c.b16 %v1037, %v1033
        %v1366 = vpack.c.b16 %v1038, %v1034
        %v1367 = vpack.c.b16 %v1043, %v1039
        %v1368 = vpack.c.b16 %v1044, %v1040
        %v1369 = vpack.c.b16 %v1045, %v1041
        %v1370 = vpack.c.b16 %v1046, %v1042
        %v1371 = vpack.c.b16 %v1051, %v1047
        %v1372 = vpack.c.b16 %v1052, %v1048
        %v1373 = vpack.c.b16 %v1053, %v1049
        %v1374 = vpack.c.b16 %v1054, %v1050
        %v1375 = vpack.c.b16 %v1059, %v1055
        %v1376 = vpack.c.b16 %v1060, %v1056
        %v1377 = vpack.c.b16 %v1061, %v1057
        %v1378 = vpack.c.b16 %v1062, %v1058
        %v1379 = vpack.c.b16 %v1067, %v1063
        %v1380 = vpack.c.b16 %v1068, %v1064
        %v1381 = vpack.c.b16 %v1069, %v1065
        %v1382 = vpack.c.b16 %v1070, %v1066
        %v1383 = vpack.c.b16 %v1075, %v1071
        %v1384 = vpack.c.b16 %v1076, %v1072
        %v1385 = vpack.c.b16 %v1077, %v1073
        %v1386 = vpack.c.b16 %v1078, %v1074
        %v1387 = vpack.c.b16 %v1083, %v1079
        %v1388 = vpack.c.b16 %v1084, %v1080
        %v1389 = vpack.c.b16 %v1085, %v1081
        %v1390 = vpack.c.b16 %v1086, %v1082
        %v1391 = vpack.c.b16 %v1091, %v1087
        %v1392 = vpack.c.b16 %v1092, %v1088
        %v1393 = vpack.c.b16 %v1093, %v1089
        %v1394 = vpack.c.b16 %v1094, %v1090
        %v1395 = vpack.c.b16 %v1099, %v1095
        %v1396 = vpack.c.b16 %v1100, %v1096
        %v1397 = vpack.c.b16 %v1101, %v1097
        %v1398 = vpack.c.b16 %v1102, %v1098
        %v1399 = vpack.c.b16 %v1107, %v1103
        %v1400 = vpack.c.b16 %v1108, %v1104
        %v1401 = vpack.c.b16 %v1109, %v1105
        %v1402 = vpack.c.b16 %v1110, %v1106
        %v1403 = vpack.c.b16 %v1115, %v1111
        %v1404 = vpack.c.b16 %v1116, %v1112
        %v1405 = vpack.c.b16 %v1117, %v1113
        %v1406 = vpack.c.b16 %v1118, %v1114
        %v1407 = vpack.c.b16 %v1123, %v1119
        %v1408 = vpack.c.b16 %v1124, %v1120
        %v1409 = vpack.c.b16 %v1125, %v1121
        %v1410 = vpack.c.b16 %v1126, %v1122
        %v1411 = vpack.c.b16 %v1131, %v1127
        %v1412 = vpack.c.b16 %v1132, %v1128
        %v1413 = vpack.c.b16 %v1133, %v1129
        %v1414 = vpack.c.b16 %v1134, %v1130
        %v1415 = vpack.c.b16 %v1139, %v1135
        %v1416 = vpack.c.b16 %v1140, %v1136
        %v1417 = vpack.c.b16 %v1141, %v1137
        %v1418 = vpack.c.b16 %v1142, %v1138
        %v1419 = vpack.c.b16 %v1147, %v1143
        %v1420 = vpack.c.b16 %v1148, %v1144
        %v1421 = vpack.c.b16 %v1149, %v1145
        %v1422 = vpack.c.b16 %v1150, %v1146
        %v1423 = vpack.c.b16 %v1155, %v1151
        %v1424 = vpack.c.b16 %v1156, %v1152
        %v1425 = vpack.c.b16 %v1157, %v1153
        %v1426 = vpack.c.b16 %v1158, %v1154
        %v1427 = vpack.c.b16 %v1163, %v1159
        %v1428 = vpack.c.b16 %v1164, %v1160
        %v1429 = vpack.c.b16 %v1165, %v1161
        %v1430 = vpack.c.b16 %v1166, %v1162
        %v1431 = vpack.c.b16 %v1171, %v1167
        %v1432 = vpack.c.b16 %v1172, %v1168
        %v1433 = vpack.c.b16 %v1173, %v1169
        %v1434 = vpack.c.b16 %v1174, %v1170
        %v1435 = vpack.c.b16 %v1179, %v1175
        %v1436 = vpack.c.b16 %v1180, %v1176
        %v1437 = vpack.c.b16 %v1181, %v1177
        %v1438 = vpack.c.b16 %v1182, %v1178
        %v1439 = vpack.c.b16 %v1187, %v1183
        %v1440 = vpack.c.b16 %v1188, %v1184
        %v1441 = vpack.c.b16 %v1189, %v1185
        %v1442 = vpack.c.b16 %v1190, %v1186
        %v1443 = vpack.c.b16 %v1195, %v1191
        %v1444 = vpack.c.b16 %v1196, %v1192
        %v1445 = vpack.c.b16 %v1197, %v1193
        %v1446 = vpack.c.b16 %v1198, %v1194
        %v1447 = vpack.c.b16 %v1203, %v1199
        %v1448 = vpack.c.b16 %v1204, %v1200
        %v1449 = vpack.c.b16 %v1205, %v1201
        %v1450 = vpack.c.b16 %v1206, %v1202
        %v1451 = vpack.c.b16 %v1211, %v1207
        %v1452 = vpack.c.b16 %v1212, %v1208
        %v1453 = vpack.c.b16 %v1213, %v1209
        %v1454 = vpack.c.b16 %v1214, %v1210
        %v1455 = vpack.c.b16 %v1219, %v1215
        %v1456 = vpack.c.b16 %v1220, %v1216
        %v1457 = vpack.c.b16 %v1221, %v1217
        %v1458 = vpack.c.b16 %v1222, %v1218
        %v1459 = vpack.c.b16 %v1227, %v1223
        %v1460 = vpack.c.b16 %v1228, %v1224
        %v1461 = vpack.c.b16 %v1229, %v1225
        %v1462 = vpack.c.b16 %v1230, %v1226
        %v1463 = vpack.c.b16 %v1235, %v1231
        %v1464 = vpack.c.b16 %v1236, %v1232
        %v1465 = vpack.c.b16 %v1237, %v1233
        %v1466 = vpack.c.b16 %v1238, %v1234
        %v1467 = vpack.c.b16 %v1243, %v1239
        %v1468 = vpack.c.b16 %v1244, %v1240
        %v1469 = vpack.c.b16 %v1245, %v1241
        %v1470 = vpack.c.b16 %v1246, %v1242
        %v1471 = vpack.c.b16 %v1251, %v1247
        %v1472 = vpack.c.b16 %v1252, %v1248
        %v1473 = vpack.c.b16 %v1253, %v1249
        %v1474 = vpack.c.b16 %v1254, %v1250
        %v1475 = vpack.c.b16 %v1259, %v1255
        %v1476 = vpack.c.b16 %v1260, %v1256
        %v1477 = vpack.c.b16 %v1261, %v1257
        %v1478 = vpack.c.b16 %v1262, %v1258
        %v1479 = vpack.c.b16 %v1267, %v1263
        %v1480 = vpack.c.b16 %v1268, %v1264
        %v1481 = vpack.c.b16 %v1269, %v1265
        %v1482 = vpack.c.b16 %v1270, %v1266
        %v1483 = vpack.c.b16 %v1275, %v1271
        %v1484 = vpack.c.b16 %v1276, %v1272
        %v1485 = vpack.c.b16 %v1277, %v1273
        %v1486 = vpack.c.b16 %v1278, %v1274
        %v1487 = vpack.c.b16 %v1283, %v1279
        %v1488 = vpack.c.b16 %v1284, %v1280
        %v1489 = vpack.c.b16 %v1285, %v1281
        %v1490 = vpack.c.b16 %v1286, %v1282
        %v1491 = vpack.c.b16 %v1291, %v1287
        %v1492 = vpack.c.b16 %v1292, %v1288
        %v1493 = vpack.c.b16 %v1293, %v1289
        %v1494 = vpack.c.b16 %v1294, %v1290
        %v1495 = vpack.c.b16 %v1299, %v1295
        %v1496 = vpack.c.b16 %v1300, %v1296
        %v1497 = vpack.c.b16 %v1301, %v1297
        %v1498 = vpack.c.b16 %v1302, %v1298
        %vm1695 = vcmask 130048
        %v1697 = vsel %vm1695, %v708, 0
        %1699 = vmatprep.subr.bf16.mxu0 %v1304
        %1700 = vmatpush1.bf16.msra.mxu0 %v1303
        %1701 = vmatprep.subr.bf16.mxu0 %v1308
        %1702 = vmatpush1.bf16.msra.mxu0 %v1307
        %1703 = vmatprep.subr.bf16.mxu0 %v1312
        %1704 = vmatpush1.bf16.msra.mxu0 %v1311
        %1705 = vmatprep.subr.bf16.mxu0 %v1316
        %1706 = vmatpush1.bf16.msra.mxu0 %v1315
        %1707 = vmatprep.subr.bf16.mxu0 %v1320
        %1708 = vmatpush1.bf16.msra.mxu0 %v1319
        %1709 = vmatprep.subr.bf16.mxu0 %v1324
        %1710 = vmatpush1.bf16.msra.mxu0 %v1323
        %1711 = vmatprep.subr.bf16.mxu0 %v1328
        %1712 = vmatpush1.bf16.msra.mxu0 %v1327
        %1713 = vmatprep.subr.bf16.mxu0 %v1332
        %1714 = vmatpush1.bf16.msra.mxu0 %v1331
        %1715 = vmatprep.subr.bf16.mxu0 %v1336
        %1716 = vmatpush1.bf16.msra.mxu0 %v1335
        %1717 = vmatprep.subr.bf16.mxu0 %v1340
        %1718 = vmatpush1.bf16.msra.mxu0 %v1339
        %1719 = vmatprep.subr.bf16.mxu0 %v1344
        %1720 = vmatpush1.bf16.msra.mxu0 %v1343
        %1721 = vmatprep.subr.bf16.mxu0 %v1348
        %1722 = vmatpush1.bf16.msra.mxu0 %v1347
        %1723 = vmatprep.subr.bf16.mxu0 %v1352
        %1724 = vmatpush1.bf16.msra.mxu0 %v1351
        %1725 = vmatprep.subr.bf16.mxu0 %v1356
        %1726 = vmatpush1.bf16.msra.mxu0 %v1355
        %1727 = vmatprep.subr.bf16.mxu0 %v1360
        %1728 = vmatpush1.bf16.msra.mxu0 %v1359
        %1729 = vmatprep.subr.bf16.mxu0 %v1364
        %1730 = vmatpush1.bf16.msra.mxu0 %v1363
        %1731 = vmatprep.mubr.bf16.mxu0 %v703
        %1732 = vmatmul.mubr.bf16.gmra.mrb[0].mxu0 %v702
        %v1733 = vpop.f32.mrb[0].mxu0
        %v1734 = vadd.f32 %v674, %v1733
        %v1735 = vpop.f32.mrb[0].mxu0
        %v1736 = vadd.f32 %v678, %v1735
        %v1737 = vpop.f32.mrb[0].mxu0
        %v1738 = vpop.f32.mrb[0].mxu0
        %1739 = vdwg.mxu0
        %1740 = vmatprep.subr.bf16.mxu0 %v1368
        %1741 = vmatpush1.bf16.msra.mxu0 %v1367
        %1742 = vmatprep.subr.bf16.mxu0 %v1372
        %1743 = vmatpush1.bf16.msra.mxu0 %v1371
        %1744 = vmatprep.subr.bf16.mxu0 %v1376
        %1745 = vmatpush1.bf16.msra.mxu0 %v1375
        %1746 = vmatprep.subr.bf16.mxu0 %v1380
        %1747 = vmatpush1.bf16.msra.mxu0 %v1379
        %1748 = vmatprep.subr.bf16.mxu0 %v1384
        %1749 = vmatpush1.bf16.msra.mxu0 %v1383
        %1750 = vmatprep.subr.bf16.mxu0 %v1388
        %1751 = vmatpush1.bf16.msra.mxu0 %v1387
        %1752 = vmatprep.subr.bf16.mxu0 %v1392
        %1753 = vmatpush1.bf16.msra.mxu0 %v1391
        %1754 = vmatprep.subr.bf16.mxu0 %v1396
        %1755 = vmatpush1.bf16.msra.mxu0 %v1395
        %1756 = vmatprep.subr.bf16.mxu0 %v1400
        %1757 = vmatpush1.bf16.msra.mxu0 %v1399
        %1758 = vmatprep.subr.bf16.mxu0 %v1404
        %1759 = vmatpush1.bf16.msra.mxu0 %v1403
        %1760 = vmatprep.subr.bf16.mxu0 %v1408
        %1761 = vmatpush1.bf16.msra.mxu0 %v1407
        %1762 = vmatprep.subr.bf16.mxu0 %v1412
        %1763 = vmatpush1.bf16.msra.mxu0 %v1411
        %1764 = vmatprep.subr.bf16.mxu0 %v1416
        %1765 = vmatpush1.bf16.msra.mxu0 %v1415
        %1766 = vmatprep.subr.bf16.mxu0 %v1420
        %1767 = vmatpush1.bf16.msra.mxu0 %v1419
        %1768 = vmatprep.subr.bf16.mxu0 %v1424
        %1769 = vmatpush1.bf16.msra.mxu0 %v1423
        %1770 = vmatprep.subr.bf16.mxu0 %v1428
        %1771 = vmatpush1.bf16.msra.mxu0 %v1427
        %1772 = vmatprep.mubr.bf16.mxu0 %v705
        %1773 = vmatmul.mubr.bf16.gmra.mrb[0].mxu0 %v704
        %v1774 = vpop.f32.mrb[0].mxu0
        %v1775 = vadd.f32 %v1734, %v1774
        %v1776 = vpop.f32.mrb[0].mxu0
        %v1777 = vadd.f32 %v1736, %v1776
        %v1778 = vpop.f32.mrb[0].mxu0
        %v1779 = vpop.f32.mrb[0].mxu0
        %1780 = vdwg.mxu0
        %1781 = vmatprep.subr.bf16.mxu0 %v1432
        %1782 = vmatpush1.bf16.msra.mxu0 %v1431
        %1783 = vmatprep.subr.bf16.mxu0 %v1436
        %1784 = vmatpush1.bf16.msra.mxu0 %v1435
        %1785 = vmatprep.subr.bf16.mxu0 %v1440
        %1786 = vmatpush1.bf16.msra.mxu0 %v1439
        %1787 = vmatprep.subr.bf16.mxu0 %v1444
        %1788 = vmatpush1.bf16.msra.mxu0 %v1443
        %1789 = vmatprep.subr.bf16.mxu0 %v1448
        %1790 = vmatpush1.bf16.msra.mxu0 %v1447
        %1791 = vmatprep.subr.bf16.mxu0 %v1452
        %1792 = vmatpush1.bf16.msra.mxu0 %v1451
        %1793 = vmatprep.subr.bf16.mxu0 %v1456
        %1794 = vmatpush1.bf16.msra.mxu0 %v1455
        %1795 = vmatprep.subr.bf16.mxu0 %v1460
        %1796 = vmatpush1.bf16.msra.mxu0 %v1459
        %1797 = vmatprep.subr.bf16.mxu0 %v1464
        %1798 = vmatpush1.bf16.msra.mxu0 %v1463
        %1799 = vmatprep.subr.bf16.mxu0 %v1468
        %1800 = vmatpush1.bf16.msra.mxu0 %v1467
        %1801 = vmatprep.subr.bf16.mxu0 %v1472
        %1802 = vmatpush1.bf16.msra.mxu0 %v1471
        %1803 = vmatprep.subr.bf16.mxu0 %v1476
        %1804 = vmatpush1.bf16.msra.mxu0 %v1475
        %1805 = vmatprep.subr.bf16.mxu0 %v1480
        %1806 = vmatpush1.bf16.msra.mxu0 %v1479
        %1807 = vmatprep.subr.bf16.mxu0 %v1484
        %1808 = vmatpush1.bf16.msra.mxu0 %v1483
        %1809 = vmatprep.subr.bf16.mxu0 %v1488
        %1810 = vmatpush1.bf16.msra.mxu0 %v1487
        %1811 = vmatprep.subr.bf16.mxu0 %v1492
        %1812 = vmatpush1.bf16.msra.mxu0 %v1491
        %1813 = vmatprep.mubr.bf16.mxu0 %v707
        %1814 = vmatmul.mubr.bf16.gmra.mrb[0].mxu0 %v706
        %v1815 = vpop.f32.mrb[0].mxu0
        %v1816 = vadd.f32 %v1775, %v1815
        %v1817 = vpop.f32.mrb[0].mxu0
        %v1818 = vadd.f32 %v1777, %v1817
        %v1819 = vpop.f32.mrb[0].mxu0
        %v1820 = vpop.f32.mrb[0].mxu0
        %1821 = vdwg.mxu0
        %1822 = vmatprep.subr.bf16.mxu0 %v1496
        %1823 = vmatpush1.bf16.msra.mxu0 %v1495
        %1824 = vmatprep.subr.bf16.mxu0 0
        %1825 = vmatpush1.bf16.msra.mxu0 0
        %1826 = vmatprep.subr.bf16.mxu0 0
        %1827 = vmatpush1.bf16.msra.mxu0 0
        %1828 = vmatprep.subr.bf16.mxu0 0
        %1829 = vmatpush1.bf16.msra.mxu0 0
        %1830 = vmatprep.subr.bf16.mxu0 0
        %1831 = vmatpush1.bf16.msra.mxu0 0
        %1832 = vmatprep.subr.bf16.mxu0 0
        %1833 = vmatpush1.bf16.msra.mxu0 0
        %1834 = vmatprep.subr.bf16.mxu0 0
        %1835 = vmatpush1.bf16.msra.mxu0 0
        %1836 = vmatprep.subr.bf16.mxu0 0
        %1837 = vmatpush1.bf16.msra.mxu0 0
        %1838 = vmatprep.subr.bf16.mxu0 0
        %1839 = vmatpush1.bf16.msra.mxu0 0
        %1840 = vmatprep.subr.bf16.mxu0 0
        %1841 = vmatpush1.bf16.msra.mxu0 0
        %1842 = vmatprep.subr.bf16.mxu0 0
        %1843 = vmatpush1.bf16.msra.mxu0 0
        %1844 = vmatprep.subr.bf16.mxu0 0
        %1845 = vmatpush1.bf16.msra.mxu0 0
        %1846 = vmatprep.subr.bf16.mxu0 0
        %1847 = vmatpush1.bf16.msra.mxu0 0
        %1848 = vmatprep.subr.bf16.mxu0 0
        %1849 = vmatpush1.bf16.msra.mxu0 0
        %1850 = vmatprep.subr.bf16.mxu0 0
        %1851 = vmatpush1.bf16.msra.mxu0 0
        %1852 = vmatprep.subr.bf16.mxu0 0
        %1853 = vmatpush1.bf16.msra.mxu0 0
        %1854 = vmatprep.mubr.bf16.mxu0 0
        %1855 = vmatmul.mubr.bf16.gmra.mrb[0].mxu0 %v1697
        %v1856 = vpop.f32.mrb[0].mxu0
        %v1857 = vadd.f32 %v1816, %v1856
        %v1858 = vpop.f32.mrb[0].mxu0
        %v1859 = vadd.f32 %v1818, %v1858
        %v1860 = vpop.f32.mrb[0].mxu0
        %v1861 = vpop.f32.mrb[0].mxu0
        %1862 = vdwg.mxu0
        %1863 = vmatprep.subr.bf16.mxu0 %v1306
        %1864 = vmatpush1.bf16.msra.mxu0 %v1305
        %1865 = vmatprep.subr.bf16.mxu0 %v1310
        %1866 = vmatpush1.bf16.msra.mxu0 %v1309
        %1867 = vmatprep.subr.bf16.mxu0 %v1314
        %1868 = vmatpush1.bf16.msra.mxu0 %v1313
        %1869 = vmatprep.subr.bf16.mxu0 %v1318
        %1870 = vmatpush1.bf16.msra.mxu0 %v1317
        %1871 = vmatprep.subr.bf16.mxu0 %v1322
        %1872 = vmatpush1.bf16.msra.mxu0 %v1321
        %1873 = vmatprep.subr.bf16.mxu0 %v1326
        %1874 = vmatpush1.bf16.msra.mxu0 %v1325
        %1875 = vmatprep.subr.bf16.mxu0 %v1330
        %1876 = vmatpush1.bf16.msra.mxu0 %v1329
        %1877 = vmatprep.subr.bf16.mxu0 %v1334
        %1878 = vmatpush1.bf16.msra.mxu0 %v1333
        %1879 = vmatprep.subr.bf16.mxu0 %v1338
        %1880 = vmatpush1.bf16.msra.mxu0 %v1337
        %1881 = vmatprep.subr.bf16.mxu0 %v1342
        %1882 = vmatpush1.bf16.msra.mxu0 %v1341
        %1883 = vmatprep.subr.bf16.mxu0 %v1346
        %1884 = vmatpush1.bf16.msra.mxu0 %v1345
        %1885 = vmatprep.subr.bf16.mxu0 %v1350
        %1886 = vmatpush1.bf16.msra.mxu0 %v1349
        %1887 = vmatprep.subr.bf16.mxu0 %v1354
        %1888 = vmatpush1.bf16.msra.mxu0 %v1353
        %1889 = vmatprep.subr.bf16.mxu0 %v1358
        %1890 = vmatpush1.bf16.msra.mxu0 %v1357
        %1891 = vmatprep.subr.bf16.mxu0 %v1362
        %1892 = vmatpush1.bf16.msra.mxu0 %v1361
        %1893 = vmatprep.subr.bf16.mxu0 %v1366
        %1894 = vmatpush1.bf16.msra.mxu0 %v1365
        %1895 = vmatprep.mubr.bf16.mxu0 %v703
        %1896 = vmatmul.mubr.bf16.gmra.mrb[0].mxu0 %v702
        %v1897 = vpop.f32.mrb[0].mxu0
        %v1898 = vadd.f32 %v682, %v1897
        %v1899 = vpop.f32.mrb[0].mxu0
        %v1900 = vadd.f32 %v686, %v1899
        %v1901 = vpop.f32.mrb[0].mxu0
        %v1902 = vpop.f32.mrb[0].mxu0
        %1903 = vdwg.mxu0
        %1904 = vmatprep.subr.bf16.mxu0 %v1370
        %1905 = vmatpush1.bf16.msra.mxu0 %v1369
        %1906 = vmatprep.subr.bf16.mxu0 %v1374
        %1907 = vmatpush1.bf16.msra.mxu0 %v1373
        %1908 = vmatprep.subr.bf16.mxu0 %v1378
        %1909 = vmatpush1.bf16.msra.mxu0 %v1377
        %1910 = vmatprep.subr.bf16.mxu0 %v1382
        %1911 = vmatpush1.bf16.msra.mxu0 %v1381
        %1912 = vmatprep.subr.bf16.mxu0 %v1386
        %1913 = vmatpush1.bf16.msra.mxu0 %v1385
        %1914 = vmatprep.subr.bf16.mxu0 %v1390
        %1915 = vmatpush1.bf16.msra.mxu0 %v1389
        %1916 = vmatprep.subr.bf16.mxu0 %v1394
        %1917 = vmatpush1.bf16.msra.mxu0 %v1393
        %1918 = vmatprep.subr.bf16.mxu0 %v1398
        %1919 = vmatpush1.bf16.msra.mxu0 %v1397
        %1920 = vmatprep.subr.bf16.mxu0 %v1402
        %1921 = vmatpush1.bf16.msra.mxu0 %v1401
        %1922 = vmatprep.subr.bf16.mxu0 %v1406
        %1923 = vmatpush1.bf16.msra.mxu0 %v1405
        %1924 = vmatprep.subr.bf16.mxu0 %v1410
        %1925 = vmatpush1.bf16.msra.mxu0 %v1409
        %1926 = vmatprep.subr.bf16.mxu0 %v1414
        %1927 = vmatpush1.bf16.msra.mxu0 %v1413
        %1928 = vmatprep.subr.bf16.mxu0 %v1418
        %1929 = vmatpush1.bf16.msra.mxu0 %v1417
        %1930 = vmatprep.subr.bf16.mxu0 %v1422
        %1931 = vmatpush1.bf16.msra.mxu0 %v1421
        %1932 = vmatprep.subr.bf16.mxu0 %v1426
        %1933 = vmatpush1.bf16.msra.mxu0 %v1425
        %1934 = vmatprep.subr.bf16.mxu0 %v1430
        %1935 = vmatpush1.bf16.msra.mxu0 %v1429
        %1936 = vmatprep.mubr.bf16.mxu0 %v705
        %1937 = vmatmul.mubr.bf16.gmra.mrb[0].mxu0 %v704
        %v1938 = vpop.f32.mrb[0].mxu0
        %v1939 = vadd.f32 %v1898, %v1938
        %v1940 = vpop.f32.mrb[0].mxu0
        %v1941 = vadd.f32 %v1900, %v1940
        %v1942 = vpop.f32.mrb[0].mxu0
        %v1943 = vpop.f32.mrb[0].mxu0
        %1944 = vdwg.mxu0
        %1945 = vmatprep.subr.bf16.mxu0 %v1434
        %1946 = vmatpush1.bf16.msra.mxu0 %v1433
        %1947 = vmatprep.subr.bf16.mxu0 %v1438
        %1948 = vmatpush1.bf16.msra.mxu0 %v1437
        %1949 = vmatprep.subr.bf16.mxu0 %v1442
        %1950 = vmatpush1.bf16.msra.mxu0 %v1441
        %1951 = vmatprep.subr.bf16.mxu0 %v1446
        %1952 = vmatpush1.bf16.msra.mxu0 %v1445
        %1953 = vmatprep.subr.bf16.mxu0 %v1450
        %1954 = vmatpush1.bf16.msra.mxu0 %v1449
        %1955 = vmatprep.subr.bf16.mxu0 %v1454
        %1956 = vmatpush1.bf16.msra.mxu0 %v1453
        %1957 = vmatprep.subr.bf16.mxu0 %v1458
        %1958 = vmatpush1.bf16.msra.mxu0 %v1457
        %1959 = vmatprep.subr.bf16.mxu0 %v1462
        %1960 = vmatpush1.bf16.msra.mxu0 %v1461
        %1961 = vmatprep.subr.bf16.mxu0 %v1466
        %1962 = vmatpush1.bf16.msra.mxu0 %v1465
        %1963 = vmatprep.subr.bf16.mxu0 %v1470
        %1964 = vmatpush1.bf16.msra.mxu0 %v1469
        %1965 = vmatprep.subr.bf16.mxu0 %v1474
        %1966 = vmatpush1.bf16.msra.mxu0 %v1473
        %1967 = vmatprep.subr.bf16.mxu0 %v1478
        %1968 = vmatpush1.bf16.msra.mxu0 %v1477
        %1969 = vmatprep.subr.bf16.mxu0 %v1482
        %1970 = vmatpush1.bf16.msra.mxu0 %v1481
        %1971 = vmatprep.subr.bf16.mxu0 %v1486
        %1972 = vmatpush1.bf16.msra.mxu0 %v1485
        %1973 = vmatprep.subr.bf16.mxu0 %v1490
        %1974 = vmatpush1.bf16.msra.mxu0 %v1489
        %1975 = vmatprep.subr.bf16.mxu0 %v1494
        %1976 = vmatpush1.bf16.msra.mxu0 %v1493
        %1977 = vmatprep.mubr.bf16.mxu0 %v707
        %1978 = vmatmul.mubr.bf16.gmra.mrb[0].mxu0 %v706
        %v1979 = vpop.f32.mrb[0].mxu0
        %v1980 = vadd.f32 %v1939, %v1979
        %v1981 = vpop.f32.mrb[0].mxu0
        %v1982 = vadd.f32 %v1941, %v1981
        %v1983 = vpop.f32.mrb[0].mxu0
        %v1984 = vpop.f32.mrb[0].mxu0
        %1985 = vdwg.mxu0
        %1986 = vmatprep.subr.bf16.mxu0 %v1498
        %1987 = vmatpush1.bf16.msra.mxu0 %v1497
        %1988 = vmatprep.subr.bf16.mxu0 0
        %1989 = vmatpush1.bf16.msra.mxu0 0
        %1990 = vmatprep.subr.bf16.mxu0 0
        %1991 = vmatpush1.bf16.msra.mxu0 0
        %1992 = vmatprep.subr.bf16.mxu0 0
        %1993 = vmatpush1.bf16.msra.mxu0 0
        %1994 = vmatprep.subr.bf16.mxu0 0
        %1995 = vmatpush1.bf16.msra.mxu0 0
        %1996 = vmatprep.subr.bf16.mxu0 0
        %1997 = vmatpush1.bf16.msra.mxu0 0
        %1998 = vmatprep.subr.bf16.mxu0 0
        %1999 = vmatpush1.bf16.msra.mxu0 0
        %2000 = vmatprep.subr.bf16.mxu0 0
        %2001 = vmatpush1.bf16.msra.mxu0 0
        %2002 = vmatprep.subr.bf16.mxu0 0
        %2003 = vmatpush1.bf16.msra.mxu0 0
        %2004 = vmatprep.subr.bf16.mxu0 0
        %2005 = vmatpush1.bf16.msra.mxu0 0
        %2006 = vmatprep.subr.bf16.mxu0 0
        %2007 = vmatpush1.bf16.msra.mxu0 0
        %2008 = vmatprep.subr.bf16.mxu0 0
        %2009 = vmatpush1.bf16.msra.mxu0 0
        %2010 = vmatprep.subr.bf16.mxu0 0
        %2011 = vmatpush1.bf16.msra.mxu0 0
        %2012 = vmatprep.subr.bf16.mxu0 0
        %2013 = vmatpush1.bf16.msra.mxu0 0
        %2014 = vmatprep.subr.bf16.mxu0 0
        %2015 = vmatpush1.bf16.msra.mxu0 0
        %2016 = vmatprep.subr.bf16.mxu0 0
        %2017 = vmatpush1.bf16.msra.mxu0 0
        %2018 = vmatprep.mubr.bf16.mxu0 0
        %2019 = vmatmul.mubr.bf16.gmra.mrb[0].mxu0 %v1697
        %v2020 = vpop.f32.mrb[0].mxu0
        %v2021 = vadd.f32 %v1980, %v2020
        %v2022 = vpop.f32.mrb[0].mxu0
        %v2023 = vadd.f32 %v1982, %v2022
        %v2024 = vpop.f32.mrb[0].mxu0
        %v2025 = vpop.f32.mrb[0].mxu0
        %2026 = vdwg.mxu0
        %vm2027 = vcmp.ge.f32.partialorder %v1857, 0.0
        %vm2028 = vcmp.ge.f32.partialorder %v1859, 0.0
        %vm2029 = vcmp.ge.f32.partialorder %v2021, 0.0
        %vm2030 = vcmp.ge.f32.partialorder %v2023, 0.0
        %v2031 = vmul.f32 %v1857, 0.01
        %v2032 = vmul.f32 %v1859, 0.01
        %v2033 = vmul.f32 %v2021, 0.01
        %v2034 = vmul.f32 %v2023, 0.01
        %v2035 = vsel %vm2027, %v1857, %v2031
        %v2036 = vsel %vm2028, %v1859, %v2032
        %v2037 = vsel %vm2029, %v2021, %v2033
        %v2038 = vsel %vm2030, %v2023, %v2034
        %v2039 = vpack.c.bf16 %v2035, %v2035
        %v2040 = vpack.c.bf16 %v2036, %v2036
        %v2041 = vpack.c.bf16 %v2037, %v2037
        %v2042 = vpack.c.bf16 %v2038, %v2038
        %v2043 = vld [vmem:[%s4] sm:$0xf]
        %v2044 = vld [vmem:[%s4 + $0x4] sm:$0xf]
        %v2045 = vld [vmem:[%s4 + $0x8] sm:$0xf]
        %v2046 = vld [vmem:[%s4 + $0xc] sm:$0xf]
        %v2047 = vld [vmem:[%s4 + $0x10] sm:$0xf]
        %v2048 = vld [vmem:[%s4 + $0x14] sm:$0xf]
        %v2049 = vld [vmem:[%s4 + $0x18] sm:$0xf]
        %v2050 = vld [vmem:[%s4 + $0x1c] sm:$0xf]
        %v2051 = vld [vmem:[%s4 + $0x20] sm:$0xf]
        %v2052 = vld [vmem:[%s4 + $0x24] sm:$0xf]
        %v2053 = vld [vmem:[%s4 + $0x28] sm:$0xf]
        %v2054 = vld [vmem:[%s4 + $0x2c] sm:$0xf]
        %v2055 = vld [vmem:[%s4 + $0x30] sm:$0xf]
        %v2056 = vld [vmem:[%s4 + $0x34] sm:$0xf]
        %v2057 = vld [vmem:[%s4 + $0x38] sm:$0xf]
        %v2058 = vld [vmem:[%s4 + $0x3c] sm:$0xf]
        %v2059 = vld [vmem:[%s4 + $0x40] sm:$0xf]
        %v2060 = vld [vmem:[%s4 + $0x44] sm:$0xf]
        %v2061 = vld [vmem:[%s4 + $0x48] sm:$0xf]
        %v2062 = vld [vmem:[%s4 + $0x4c] sm:$0xf]
        %v2063 = vld [vmem:[%s4 + $0x50] sm:$0xf]
        %v2064 = vld [vmem:[%s4 + $0x54] sm:$0xf]
        %v2065 = vld [vmem:[%s4 + $0x58] sm:$0xf]
        %v2066 = vld [vmem:[%s4 + $0x5c] sm:$0xf]
        %v2067 = vld [vmem:[%s4 + $0x60] sm:$0xf]
        %v2068 = vld [vmem:[%s4 + $0x64] sm:$0xf]
        %v2069 = vld [vmem:[%s4 + $0x68] sm:$0xf]
        %v2070 = vld [vmem:[%s4 + $0x6c] sm:$0xf]
        %v2071 = vld [vmem:[%s4 + $0x70] sm:$0xf]
        %v2072 = vld [vmem:[%s4 + $0x74] sm:$0xf]
        %v2073 = vld [vmem:[%s4 + $0x78] sm:$0xf]
        %v2074 = vld [vmem:[%s4 + $0x7c] sm:$0xf]
        %v2075 = vld [vmem:[%s4 + $0x80] sm:$0xf]
        %v2076 = vld [vmem:[%s4 + $0x84] sm:$0xf]
        %v2077 = vld [vmem:[%s4 + $0x88] sm:$0xf]
        %v2078 = vld [vmem:[%s4 + $0x8c] sm:$0xf]
        %v2079 = vld [vmem:[%s4 + $0x90] sm:$0xf]
        %v2080 = vld [vmem:[%s4 + $0x94] sm:$0xf]
        %v2081 = vld [vmem:[%s4 + $0x98] sm:$0xf]
        %v2082 = vld [vmem:[%s4 + $0x9c] sm:$0xf]
        %v2083 = vld [vmem:[%s4 + $0xa0] sm:$0xf]
        %v2084 = vld [vmem:[%s4 + $0xa4] sm:$0xf]
        %v2085 = vld [vmem:[%s4 + $0xa8] sm:$0xf]
        %v2086 = vld [vmem:[%s4 + $0xac] sm:$0xf]
        %v2087 = vld [vmem:[%s4 + $0xb0] sm:$0xf]
        %v2088 = vld [vmem:[%s4 + $0xb4] sm:$0xf]
        %v2089 = vld [vmem:[%s4 + $0xb8] sm:$0xf]
        %v2090 = vld [vmem:[%s4 + $0xbc] sm:$0xf]
        %v2091 = vld [vmem:[%s4 + $0xc0] sm:$0xf]
        %v2092 = vld [vmem:[%s4 + $0xc4] sm:$0xf]
        %v2093 = vld [vmem:[%s5] sm:$0x1]
        %v2095 = vlaneseq
        %v2096 = vshrl.u32 %v2095, 7
        %v2097 = vsub.s32 0, %v2096
        %v2098 = vrot.slane %v2093, %v2097
        %v2150 = vunpack.c.l.b16 %v2043
        %v2151 = vunpack.c.l.b16 %v2044
        %v2152 = vunpack.c.l.b16 %v2045
        %v2153 = vunpack.c.l.b16 %v2046
        %v2154 = vunpack.c.l.b16 %v2047
        %v2155 = vunpack.c.l.b16 %v2048
        %v2156 = vunpack.c.l.b16 %v2049
        %v2157 = vunpack.c.l.b16 %v2050
        %v2158 = vunpack.c.l.b16 %v2051
        %v2159 = vunpack.c.l.b16 %v2052
        %v2160 = vunpack.c.l.b16 %v2053
        %v2161 = vunpack.c.l.b16 %v2054
        %v2162 = vunpack.c.l.b16 %v2055
        %v2163 = vunpack.c.l.b16 %v2056
        %v2164 = vunpack.c.l.b16 %v2057
        %v2165 = vunpack.c.l.b16 %v2058
        %v2166 = vunpack.c.l.b16 %v2059
        %v2167 = vunpack.c.l.b16 %v2060
        %v2168 = vunpack.c.l.b16 %v2061
        %v2169 = vunpack.c.l.b16 %v2062
        %v2170 = vunpack.c.l.b16 %v2063
        %v2171 = vunpack.c.l.b16 %v2064
        %v2172 = vunpack.c.l.b16 %v2065
        %v2173 = vunpack.c.l.b16 %v2066
        %v2174 = vunpack.c.l.b16 %v2067
        %v2175 = vunpack.c.l.b16 %v2068
        %v2176 = vunpack.c.l.b16 %v2069
        %v2177 = vunpack.c.l.b16 %v2070
        %v2178 = vunpack.c.l.b16 %v2071
        %v2179 = vunpack.c.l.b16 %v2072
        %v2180 = vunpack.c.l.b16 %v2073
        %v2181 = vunpack.c.l.b16 %v2074
        %v2182 = vunpack.c.l.b16 %v2075
        %v2183 = vunpack.c.l.b16 %v2076
        %v2184 = vunpack.c.l.b16 %v2077
        %v2185 = vunpack.c.l.b16 %v2078
        %v2186 = vunpack.c.l.b16 %v2079
        %v2187 = vunpack.c.l.b16 %v2080
        %v2188 = vunpack.c.l.b16 %v2081
        %v2189 = vunpack.c.l.b16 %v2082
        %v2190 = vunpack.c.l.b16 %v2083
        %v2191 = vunpack.c.l.b16 %v2084
        %v2192 = vunpack.c.l.b16 %v2085
        %v2193 = vunpack.c.l.b16 %v2086
        %v2194 = vunpack.c.l.b16 %v2087
        %v2195 = vunpack.c.l.b16 %v2088
        %v2196 = vunpack.c.l.b16 %v2089
        %v2197 = vunpack.c.l.b16 %v2090
        %v2198 = vunpack.c.l.b16 %v2091
        %v2199 = vunpack.c.l.b16 %v2092
        %v2200 = vpack.c.b16 %v2151, %v2150
        %v2201 = vpack.c.b16 %v2153, %v2152
        %v2202 = vpack.c.b16 %v2155, %v2154
        %v2203 = vpack.c.b16 %v2157, %v2156
        %v2204 = vpack.c.b16 %v2159, %v2158
        %v2205 = vpack.c.b16 %v2161, %v2160
        %v2206 = vpack.c.b16 %v2163, %v2162
        %v2207 = vpack.c.b16 %v2165, %v2164
        %v2208 = vpack.c.b16 %v2167, %v2166
        %v2209 = vpack.c.b16 %v2169, %v2168
        %v2210 = vpack.c.b16 %v2171, %v2170
        %v2211 = vpack.c.b16 %v2173, %v2172
        %v2212 = vpack.c.b16 %v2175, %v2174
        %v2213 = vpack.c.b16 %v2177, %v2176
        %v2214 = vpack.c.b16 %v2179, %v2178
        %v2215 = vpack.c.b16 %v2181, %v2180
        %v2216 = vpack.c.b16 %v2183, %v2182
        %v2217 = vpack.c.b16 %v2185, %v2184
        %v2218 = vpack.c.b16 %v2187, %v2186
        %v2219 = vpack.c.b16 %v2189, %v2188
        %v2220 = vpack.c.b16 %v2191, %v2190
        %v2221 = vpack.c.b16 %v2193, %v2192
        %v2222 = vpack.c.b16 %v2195, %v2194
        %v2223 = vpack.c.b16 %v2197, %v2196
        %v2224 = vpack.c.b16 %v2199, %v2198
        %v2251 = vsel %vm1695, %v2042, 0
        %2253 = vmatprep.subr.bf16.mxu0 0
        %2254 = vmatpush1.bf16.msra.mxu0 %v2200
        %2255 = vmatprep.subr.bf16.mxu0 0
        %2256 = vmatpush1.bf16.msra.mxu0 %v2201
        %2257 = vmatprep.subr.bf16.mxu0 0
        %2258 = vmatpush1.bf16.msra.mxu0 %v2202
        %2259 = vmatprep.subr.bf16.mxu0 0
        %2260 = vmatpush1.bf16.msra.mxu0 %v2203
        %2261 = vmatprep.subr.bf16.mxu0 0
        %2262 = vmatpush1.bf16.msra.mxu0 %v2204
        %2263 = vmatprep.subr.bf16.mxu0 0
        %2264 = vmatpush1.bf16.msra.mxu0 %v2205
        %2265 = vmatprep.subr.bf16.mxu0 0
        %2266 = vmatpush1.bf16.msra.mxu0 %v2206
        %2267 = vmatprep.subr.bf16.mxu0 0
        %2268 = vmatpush1.bf16.msra.mxu0 %v2207
        %2269 = vmatprep.subr.bf16.mxu0 0
        %2270 = vmatpush1.bf16.msra.mxu0 %v2208
        %2271 = vmatprep.subr.bf16.mxu0 0
        %2272 = vmatpush1.bf16.msra.mxu0 %v2209
        %2273 = vmatprep.subr.bf16.mxu0 0
        %2274 = vmatpush1.bf16.msra.mxu0 %v2210
        %2275 = vmatprep.subr.bf16.mxu0 0
        %2276 = vmatpush1.bf16.msra.mxu0 %v2211
        %2277 = vmatprep.subr.bf16.mxu0 0
        %2278 = vmatpush1.bf16.msra.mxu0 %v2212
        %2279 = vmatprep.subr.bf16.mxu0 0
        %2280 = vmatpush1.bf16.msra.mxu0 %v2213
        %2281 = vmatprep.subr.bf16.mxu0 0
        %2282 = vmatpush1.bf16.msra.mxu0 %v2214
        %2283 = vmatprep.subr.bf16.mxu0 0
        %2284 = vmatpush1.bf16.msra.mxu0 %v2215
        %2285 = vmatprep.mubr.bf16.mxu0 %v2040
        %2286 = vmatmul.mubr.bf16.gmra.mrb[0].mxu0 %v2039
        %v2287 = vpop.f32.mrb[0].mxu0
        %v2288 = vadd.f32 %v2098, %v2287
        %v2289 = vpop.f32.mrb[0].mxu0
        %v2290 = vpop.f32.mrb[0].mxu0
        %v2291 = vpop.f32.mrb[0].mxu0
        %2292 = vdwg.mxu0
        %2293 = vmatprep.subr.bf16.mxu0 0
        %2294 = vmatpush1.bf16.msra.mxu0 %v2216
        %2295 = vmatprep.subr.bf16.mxu0 0
        %2296 = vmatpush1.bf16.msra.mxu0 %v2217
        %2297 = vmatprep.subr.bf16.mxu0 0
        %2298 = vmatpush1.bf16.msra.mxu0 %v2218
        %2299 = vmatprep.subr.bf16.mxu0 0
        %2300 = vmatpush1.bf16.msra.mxu0 %v2219
        %2301 = vmatprep.subr.bf16.mxu0 0
        %2302 = vmatpush1.bf16.msra.mxu0 %v2220
        %2303 = vmatprep.subr.bf16.mxu0 0
        %2304 = vmatpush1.bf16.msra.mxu0 %v2221
        %2305 = vmatprep.subr.bf16.mxu0 0
        %2306 = vmatpush1.bf16.msra.mxu0 %v2222
        %2307 = vmatprep.subr.bf16.mxu0 0
        %2308 = vmatpush1.bf16.msra.mxu0 %v2223
        %2309 = vmatprep.subr.bf16.mxu0 0
        %2310 = vmatpush1.bf16.msra.mxu0 %v2224
        %2311 = vmatprep.subr.bf16.mxu0 0
        %2312 = vmatpush1.bf16.msra.mxu0 0
        %2313 = vmatprep.subr.bf16.mxu0 0
        %2314 = vmatpush1.bf16.msra.mxu0 0
        %2315 = vmatprep.subr.bf16.mxu0 0
        %2316 = vmatpush1.bf16.msra.mxu0 0
        %2317 = vmatprep.subr.bf16.mxu0 0
        %2318 = vmatpush1.bf16.msra.mxu0 0
        %2319 = vmatprep.subr.bf16.mxu0 0
        %2320 = vmatpush1.bf16.msra.mxu0 0
        %2321 = vmatprep.subr.bf16.mxu0 0
        %2322 = vmatpush1.bf16.msra.mxu0 0
        %2323 = vmatprep.subr.bf16.mxu0 0
        %2324 = vmatpush1.bf16.msra.mxu0 0
        %2325 = vmatprep.mubr.bf16.mxu0 %v2251
        %2326 = vmatmul.mubr.bf16.gmra.mrb[0].mxu0 %v2041
        %v2327 = vpop.f32.mrb[0].mxu0
        %v2328 = vadd.f32 %v2288, %v2327
        %v2329 = vpop.f32.mrb[0].mxu0
        %v2330 = vpop.f32.mrb[0].mxu0
        %v2331 = vpop.f32.mrb[0].mxu0
        %2332 = vdwg.mxu0
        %v2333 = vpack.c.bf16 %v2328, %v2328
        %2334 = vst [vmem:[%s466] sm:$0xf] %v2333
        %v2335 = vmul.f32 %v2328, 0.5
        %v2336 = vmul.f32 %v2335, 1.442695
        %v2337 = vpow.pop %v2336
        %2339 = vrot.lane.b32.xlu0 %v2337, 126
        %v2340 = vpop.permute.xlu0 %2339
        %v2342 = vmul.f32 %v472, %v2340
        %v2343 = vadd.f32 %v2328, %v2342
        %v2344 = vld [vmem:[%s6] sm:$0xf]
        %2346 = vset.pattern.permute.xlu0 0
        %2347 = vperm.xlu0 %2346, %v2343
        %v2348 = vpop.permute.xlu0 %2347
        %v2351 = vlaneseq
        %v2352 = vshrl.u32 %v2351, 7
        %v2353 = vsub.s32 0, %v2352
        %v2354 = vrot.slane %v2344, %v2353
        %v2355 = vlaneseq
        %v2356 = vshrl.u32 %v2355, 7
        %v2357 = vsub.s32 2, %v2356
        %v2358 = vrot.slane %v2344, %v2357
        %v2361 = vlaneseq
        %v2362 = vshrl.u32 %v2361, 7
        %v2363 = vsub.s32 0, %v2362
        %v2364 = vrot.slane %v2354, %v2363
        %v2365 = vlaneseq
        %v2366 = vshrl.u32 %v2365, 7
        %v2367 = vsub.s32 0, %v2366
        %v2368 = vrot.slane %v2358, %v2367
        %v2369 = vmul.f32 %v2348, %v2364
        %v2370 = vmul.f32 %v2348, %v2368
        %2371 = vset.pattern.permute.xlu0 1
        %2372 = vperm.xlu0 %2371, %v2343
        %v2373 = vpop.permute.xlu0 %2372
        %v2375 = vlaneseq
        %v2376 = vshrl.u32 %v2375, 7
        %v2377 = vsub.s32 1, %v2376
        %v2378 = vrot.slane %v2344, %v2377
        %v2379 = vlaneseq
        %v2380 = vshrl.u32 %v2379, 7
        %v2381 = vsub.s32 3, %v2380
        %v2382 = vrot.slane %v2344, %v2381
        %v2385 = vlaneseq
        %v2386 = vshrl.u32 %v2385, 7
        %v2387 = vsub.s32 1, %v2386
        %v2388 = vrot.slane %v2378, %v2387
        %v2389 = vlaneseq
        %v2390 = vshrl.u32 %v2389, 7
        %v2391 = vsub.s32 1, %v2390
        %v2392 = vrot.slane %v2382, %v2391
        %v2393 = vmul.f32 %v2373, %v2388
        %v2394 = vmul.f32 %v2373, %v2392
        %v2395 = vadd.f32 %v2369, %v2393
        %v2396 = vadd.f32 %v2370, %v2394
        %v2397 = vld [vmem:[%s7] sm:$0x3]
        %v2399 = vlaneseq
        %v2400 = vshrl.u32 %v2399, 7
        %v2401 = vsub.s32 0, %v2400
        %v2402 = vrot.slane %v2397, %v2401
        %v2403 = vlaneseq
        %v2404 = vshrl.u32 %v2403, 7
        %v2405 = vsub.s32 1, %v2404
        %v2406 = vrot.slane %v2397, %v2405
        %v2409 = vadd.f32 %v2395, %v2402
        %v2410 = vadd.f32 %v2396, %v2406
        %vm2411 = vcmp.ge.f32.partialorder %v2409, 0.0
        %vm2412 = vcmp.ge.f32.partialorder %v2410, 0.0
        %v2413 = vmul.f32 %v2409, 0.01
        %v2414 = vmul.f32 %v2410, 0.01
        %v2415 = vsel %vm2411, %v2409, %v2413
        %v2416 = vsel %vm2412, %v2410, %v2414
        %v2417 = vpack.c.bf16 %v2415, %v2415
        %v2418 = vpack.c.bf16 %v2416, %v2416
        %v2419 = vld [vmem:[%s8] sm:$0xff]
        %v2420 = vld [vmem:[%s8 + $0x8] sm:$0xff]
        %v2421 = vld [vmem:[%s8 + $0x10] sm:$0xff]
        %v2422 = vld [vmem:[%s8 + $0x18] sm:$0xff]
        %v2423 = vld [vmem:[%s8 + $0x20] sm:$0xff]
        %v2424 = vld [vmem:[%s8 + $0x28] sm:$0xff]
        %v2425 = vld [vmem:[%s8 + $0x30] sm:$0xff]
        %v2426 = vld [vmem:[%s8 + $0x38] sm:$0xff]
        %v2427 = vld [vmem:[%s8 + $0x40] sm:$0xff]
        %v2428 = vld [vmem:[%s8 + $0x48] sm:$0xff]
        %v2429 = vld [vmem:[%s8 + $0x50] sm:$0xff]
        %v2430 = vld [vmem:[%s8 + $0x58] sm:$0xff]
        %v2431 = vld [vmem:[%s8 + $0x60] sm:$0xff]
        %v2432 = vld [vmem:[%s8 + $0x68] sm:$0xff]
        %v2433 = vld [vmem:[%s8 + $0x70] sm:$0xff]
        %v2434 = vld [vmem:[%s8 + $0x78] sm:$0xff]
        %v2435 = vld [vmem:[%s8 + $0x80] sm:$0xff]
        %v2436 = vld [vmem:[%s8 + $0x88] sm:$0xff]
        %v2437 = vld [vmem:[%s8 + $0x90] sm:$0xff]
        %v2438 = vld [vmem:[%s8 + $0x98] sm:$0xff]
        %v2439 = vld [vmem:[%s8 + $0xa0] sm:$0xff]
        %v2440 = vld [vmem:[%s8 + $0xa8] sm:$0xff]
        %v2441 = vld [vmem:[%s8 + $0xb0] sm:$0xff]
        %v2442 = vld [vmem:[%s8 + $0xb8] sm:$0xff]
        %v2443 = vld [vmem:[%s8 + $0xc0] sm:$0xff]
        %v2444 = vld [vmem:[%s8 + $0xc8] sm:$0xff]
        %v2445 = vld [vmem:[%s8 + $0xd0] sm:$0xff]
        %v2446 = vld [vmem:[%s8 + $0xd8] sm:$0xff]
        %v2447 = vld [vmem:[%s8 + $0xe0] sm:$0xff]
        %v2448 = vld [vmem:[%s8 + $0xe8] sm:$0xff]
        %v2449 = vld [vmem:[%s8 + $0xf0] sm:$0xff]
        %v2450 = vld [vmem:[%s8 + $0xf8] sm:$0xff]
        %v2451 = vld [vmem:[%s8 + $0x100] sm:$0xff]
        %v2452 = vld [vmem:[%s8 + $0x108] sm:$0xff]
        %v2453 = vld [vmem:[%s8 + $0x110] sm:$0xff]
        %v2454 = vld [vmem:[%s8 + $0x118] sm:$0xff]
        %v2455 = vld [vmem:[%s8 + $0x120] sm:$0xff]
        %v2456 = vld [vmem:[%s8 + $0x128] sm:$0xff]
        %v2457 = vld [vmem:[%s8 + $0x130] sm:$0xff]
        %v2458 = vld [vmem:[%s8 + $0x138] sm:$0xff]
        %v2459 = vld [vmem:[%s8 + $0x140] sm:$0xff]
        %v2460 = vld [vmem:[%s8 + $0x148] sm:$0xff]
        %v2461 = vld [vmem:[%s8 + $0x150] sm:$0xff]
        %v2462 = vld [vmem:[%s8 + $0x158] sm:$0xff]
        %v2463 = vld [vmem:[%s8 + $0x160] sm:$0xff]
        %v2464 = vld [vmem:[%s8 + $0x168] sm:$0xff]
        %v2465 = vld [vmem:[%s8 + $0x170] sm:$0xff]
        %v2466 = vld [vmem:[%s8 + $0x178] sm:$0xff]
        %v2467 = vld [vmem:[%s8 + $0x180] sm:$0xff]
        %v2468 = vld [vmem:[%s8 + $0x188] sm:$0xff]
        %v2469 = vld [vmem:[%s9] sm:$0xf]
        %v2471 = vlaneseq
        %v2472 = vshrl.u32 %v2471, 7
        %v2473 = vsub.s32 0, %v2472
        %v2474 = vrot.slane %v2469, %v2473
        %v2475 = vlaneseq
        %v2476 = vshrl.u32 %v2475, 7
        %v2477 = vsub.s32 1, %v2476
        %v2478 = vrot.slane %v2469, %v2477
        %v2479 = vlaneseq
        %v2480 = vshrl.u32 %v2479, 7
        %v2481 = vsub.s32 2, %v2480
        %v2482 = vrot.slane %v2469, %v2481
        %v2483 = vlaneseq
        %v2484 = vshrl.u32 %v2483, 7
        %v2485 = vsub.s32 3, %v2484
        %v2486 = vrot.slane %v2469, %v2485
        %v2541 = vunpack.c.l.b16 %v2419
        %v2542 = vunpack.c.h.b16 %v2419
        %v2543 = vunpack.c.l.b16 %v2420
        %v2544 = vunpack.c.h.b16 %v2420
        %v2545 = vunpack.c.l.b16 %v2421
        %v2546 = vunpack.c.h.b16 %v2421
        %v2547 = vunpack.c.l.b16 %v2422
        %v2548 = vunpack.c.h.b16 %v2422
        %v2549 = vunpack.c.l.b16 %v2423
        %v2550 = vunpack.c.h.b16 %v2423
        %v2551 = vunpack.c.l.b16 %v2424
        %v2552 = vunpack.c.h.b16 %v2424
        %v2553 = vunpack.c.l.b16 %v2425
        %v2554 = vunpack.c.h.b16 %v2425
        %v2555 = vunpack.c.l.b16 %v2426
        %v2556 = vunpack.c.h.b16 %v2426
        %v2557 = vunpack.c.l.b16 %v2427
        %v2558 = vunpack.c.h.b16 %v2427
        %v2559 = vunpack.c.l.b16 %v2428
        %v2560 = vunpack.c.h.b16 %v2428
        %v2561 = vunpack.c.l.b16 %v2429
        %v2562 = vunpack.c.h.b16 %v2429
        %v2563 = vunpack.c.l.b16 %v2430
        %v2564 = vunpack.c.h.b16 %v2430
        %v2565 = vunpack.c.l.b16 %v2431
        %v2566 = vunpack.c.h.b16 %v2431
        %v2567 = vunpack.c.l.b16 %v2432
        %v2568 = vunpack.c.h.b16 %v2432
        %v2569 = vunpack.c.l.b16 %v2433
        %v2570 = vunpack.c.h.b16 %v2433
        %v2571 = vunpack.c.l.b16 %v2434
        %v2572 = vunpack.c.h.b16 %v2434
        %v2573 = vunpack.c.l.b16 %v2435
        %v2574 = vunpack.c.h.b16 %v2435
        %v2575 = vunpack.c.l.b16 %v2436
        %v2576 = vunpack.c.h.b16 %v2436
        %v2577 = vunpack.c.l.b16 %v2437
        %v2578 = vunpack.c.h.b16 %v2437
        %v2579 = vunpack.c.l.b16 %v2438
        %v2580 = vunpack.c.h.b16 %v2438
        %v2581 = vunpack.c.l.b16 %v2439
        %v2582 = vunpack.c.h.b16 %v2439
        %v2583 = vunpack.c.l.b16 %v2440
        %v2584 = vunpack.c.h.b16 %v2440
        %v2585 = vunpack.c.l.b16 %v2441
        %v2586 = vunpack.c.h.b16 %v2441
        %v2587 = vunpack.c.l.b16 %v2442
        %v2588 = vunpack.c.h.b16 %v2442
        %v2589 = vunpack.c.l.b16 %v2443
        %v2590 = vunpack.c.h.b16 %v2443
        %v2591 = vunpack.c.l.b16 %v2444
        %v2592 = vunpack.c.h.b16 %v2444
        %v2593 = vunpack.c.l.b16 %v2445
        %v2594 = vunpack.c.h.b16 %v2445
        %v2595 = vunpack.c.l.b16 %v2446
        %v2596 = vunpack.c.h.b16 %v2446
        %v2597 = vunpack.c.l.b16 %v2447
        %v2598 = vunpack.c.h.b16 %v2447
        %v2599 = vunpack.c.l.b16 %v2448
        %v2600 = vunpack.c.h.b16 %v2448
        %v2601 = vunpack.c.l.b16 %v2449
        %v2602 = vunpack.c.h.b16 %v2449
        %v2603 = vunpack.c.l.b16 %v2450
        %v2604 = vunpack.c.h.b16 %v2450
        %v2605 = vunpack.c.l.b16 %v2451
        %v2606 = vunpack.c.h.b16 %v2451
        %v2607 = vunpack.c.l.b16 %v2452
        %v2608 = vunpack.c.h.b16 %v2452
        %v2609 = vunpack.c.l.b16 %v2453
        %v2610 = vunpack.c.h.b16 %v2453
        %v2611 = vunpack.c.l.b16 %v2454
        %v2612 = vunpack.c.h.b16 %v2454
        %v2613 = vunpack.c.l.b16 %v2455
        %v2614 = vunpack.c.h.b16 %v2455
        %v2615 = vunpack.c.l.b16 %v2456
        %v2616 = vunpack.c.h.b16 %v2456
        %v2617 = vunpack.c.l.b16 %v2457
        %v2618 = vunpack.c.h.b16 %v2457
        %v2619 = vunpack.c.l.b16 %v2458
        %v2620 = vunpack.c.h.b16 %v2458
        %v2621 = vunpack.c.l.b16 %v2459
        %v2622 = vunpack.c.h.b16 %v2459
        %v2623 = vunpack.c.l.b16 %v2460
        %v2624 = vunpack.c.h.b16 %v2460
        %v2625 = vunpack.c.l.b16 %v2461
        %v2626 = vunpack.c.h.b16 %v2461
        %v2627 = vunpack.c.l.b16 %v2462
        %v2628 = vunpack.c.h.b16 %v2462
        %v2629 = vunpack.c.l.b16 %v2463
        %v2630 = vunpack.c.h.b16 %v2463
        %v2631 = vunpack.c.l.b16 %v2464
        %v2632 = vunpack.c.h.b16 %v2464
        %v2633 = vunpack.c.l.b16 %v2465
        %v2634 = vunpack.c.h.b16 %v2465
        %v2635 = vunpack.c.l.b16 %v2466
        %v2636 = vunpack.c.h.b16 %v2466
        %v2637 = vunpack.c.l.b16 %v2467
        %v2638 = vunpack.c.h.b16 %v2467
        %v2639 = vunpack.c.l.b16 %v2468
        %v2640 = vunpack.c.h.b16 %v2468
        %v2641 = vpack.c.b16 %v2545, %v2541
        %v2642 = vpack.c.b16 %v2546, %v2542
        %v2643 = vpack.c.b16 %v2547, %v2543
        %v2644 = vpack.c.b16 %v2548, %v2544
        %v2645 = vpack.c.b16 %v2553, %v2549
        %v2646 = vpack.c.b16 %v2554, %v2550
        %v2647 = vpack.c.b16 %v2555, %v2551
        %v2648 = vpack.c.b16 %v2556, %v2552
        %v2649 = vpack.c.b16 %v2561, %v2557
        %v2650 = vpack.c.b16 %v2562, %v2558
        %v2651 = vpack.c.b16 %v2563, %v2559
        %v2652 = vpack.c.b16 %v2564, %v2560
        %v2653 = vpack.c.b16 %v2569, %v2565
        %v2654 = vpack.c.b16 %v2570, %v2566
        %v2655 = vpack.c.b16 %v2571, %v2567
        %v2656 = vpack.c.b16 %v2572, %v2568
        %v2657 = vpack.c.b16 %v2577, %v2573
        %v2658 = vpack.c.b16 %v2578, %v2574
        %v2659 = vpack.c.b16 %v2579, %v2575
        %v2660 = vpack.c.b16 %v2580, %v2576
        %v2661 = vpack.c.b16 %v2585, %v2581
        %v2662 = vpack.c.b16 %v2586, %v2582
        %v2663 = vpack.c.b16 %v2587, %v2583
        %v2664 = vpack.c.b16 %v2588, %v2584
        %v2665 = vpack.c.b16 %v2593, %v2589
        %v2666 = vpack.c.b16 %v2594, %v2590
        %v2667 = vpack.c.b16 %v2595, %v2591
        %v2668 = vpack.c.b16 %v2596, %v2592
        %v2669 = vpack.c.b16 %v2601, %v2597
        %v2670 = vpack.c.b16 %v2602, %v2598
        %v2671 = vpack.c.b16 %v2603, %v2599
        %v2672 = vpack.c.b16 %v2604, %v2600
        %v2673 = vpack.c.b16 %v2609, %v2605
        %v2674 = vpack.c.b16 %v2610, %v2606
        %v2675 = vpack.c.b16 %v2611, %v2607
        %v2676 = vpack.c.b16 %v2612, %v2608
        %v2677 = vpack.c.b16 %v2617, %v2613
        %v2678 = vpack.c.b16 %v2618, %v2614
        %v2679 = vpack.c.b16 %v2619, %v2615
        %v2680 = vpack.c.b16 %v2620, %v2616
        %v2681 = vpack.c.b16 %v2625, %v2621
        %v2682 = vpack.c.b16 %v2626, %v2622
        %v2683 = vpack.c.b16 %v2627, %v2623
        %v2684 = vpack.c.b16 %v2628, %v2624
        %v2685 = vpack.c.b16 %v2633, %v2629
        %v2686 = vpack.c.b16 %v2634, %v2630
        %v2687 = vpack.c.b16 %v2635, %v2631
        %v2688 = vpack.c.b16 %v2636, %v2632
        %v2689 = vpack.c.b16 %v2637, %v2637
        %v2690 = vpack.c.b16 %v2638, %v2638
        %v2691 = vpack.c.b16 %v2639, %v2639
        %v2692 = vpack.c.b16 %v2640, %v2640
        %vm2741 = vcmask 588800
        %v2743 = vsel %vm2741, %v2418, 0
        %vm2745 = vcmask 1043456
        %v2747 = vsel %vm2745, %v2689, 0
        %v2750 = vsel %vm2745, %v2690, 0
        %v2753 = vsel %vm2745, %v2691, 0
        %v2756 = vsel %vm2745, %v2692, 0
        %2758 = vmatprep.subr.bf16.mxu0 %v2642
        %2759 = vmatpush1.bf16.msra.mxu0 %v2641
        %2760 = vmatprep.subr.bf16.mxu0 %v2646
        %2761 = vmatpush1.bf16.msra.mxu0 %v2645
        %2762 = vmatprep.subr.bf16.mxu0 %v2650
        %2763 = vmatpush1.bf16.msra.mxu0 %v2649
        %2764 = vmatprep.subr.bf16.mxu0 %v2654
        %2765 = vmatpush1.bf16.msra.mxu0 %v2653
        %2766 = vmatprep.subr.bf16.mxu0 %v2658
        %2767 = vmatpush1.bf16.msra.mxu0 %v2657
        %2768 = vmatprep.subr.bf16.mxu0 %v2662
        %2769 = vmatpush1.bf16.msra.mxu0 %v2661
        %2770 = vmatprep.subr.bf16.mxu0 %v2666
        %2771 = vmatpush1.bf16.msra.mxu0 %v2665
        %2772 = vmatprep.subr.bf16.mxu0 %v2670
        %2773 = vmatpush1.bf16.msra.mxu0 %v2669
        %2774 = vmatprep.subr.bf16.mxu0 %v2674
        %2775 = vmatpush1.bf16.msra.mxu0 %v2673
        %2776 = vmatprep.subr.bf16.mxu0 %v2678
        %2777 = vmatpush1.bf16.msra.mxu0 %v2677
        %2778 = vmatprep.subr.bf16.mxu0 %v2682
        %2779 = vmatpush1.bf16.msra.mxu0 %v2681
        %2780 = vmatprep.subr.bf16.mxu0 %v2686
        %2781 = vmatpush1.bf16.msra.mxu0 %v2685
        %2782 = vmatprep.subr.bf16.mxu0 %v2750
        %2783 = vmatpush1.bf16.msra.mxu0 %v2747
        %2784 = vmatprep.subr.bf16.mxu0 0
        %2785 = vmatpush1.bf16.msra.mxu0 0
        %2786 = vmatprep.subr.bf16.mxu0 0
        %2787 = vmatpush1.bf16.msra.mxu0 0
        %2788 = vmatprep.subr.bf16.mxu0 0
        %2789 = vmatpush1.bf16.msra.mxu0 0
        %2790 = vmatprep.mubr.bf16.mxu0 %v2743
        %2791 = vmatmul.mubr.bf16.gmra.mrb[0].mxu0 %v2417
        %v2792 = vpop.f32.mrb[0].mxu0
        %v2793 = vadd.f32 %v2474, %v2792
        %v2794 = vpop.f32.mrb[0].mxu0
        %v2795 = vadd.f32 %v2478, %v2794
        %v2796 = vpop.f32.mrb[0].mxu0
        %v2797 = vpop.f32.mrb[0].mxu0
        %2798 = vdwg.mxu0
        %2799 = vmatprep.subr.bf16.mxu0 %v2644
        %2800 = vmatpush1.bf16.msra.mxu0 %v2643
        %2801 = vmatprep.subr.bf16.mxu0 %v2648
        %2802 = vmatpush1.bf16.msra.mxu0 %v2647
        %2803 = vmatprep.subr.bf16.mxu0 %v2652
        %2804 = vmatpush1.bf16.msra.mxu0 %v2651
        %2805 = vmatprep.subr.bf16.mxu0 %v2656
        %2806 = vmatpush1.bf16.msra.mxu0 %v2655
        %2807 = vmatprep.subr.bf16.mxu0 %v2660
        %2808 = vmatpush1.bf16.msra.mxu0 %v2659
        %2809 = vmatprep.subr.bf16.mxu0 %v2664
        %2810 = vmatpush1.bf16.msra.mxu0 %v2663
        %2811 = vmatprep.subr.bf16.mxu0 %v2668
        %2812 = vmatpush1.bf16.msra.mxu0 %v2667
        %2813 = vmatprep.subr.bf16.mxu0 %v2672
        %2814 = vmatpush1.bf16.msra.mxu0 %v2671
        %2815 = vmatprep.subr.bf16.mxu0 %v2676
        %2816 = vmatpush1.bf16.msra.mxu0 %v2675
        %2817 = vmatprep.subr.bf16.mxu0 %v2680
        %2818 = vmatpush1.bf16.msra.mxu0 %v2679
        %2819 = vmatprep.subr.bf16.mxu0 %v2684
        %2820 = vmatpush1.bf16.msra.mxu0 %v2683
        %2821 = vmatprep.subr.bf16.mxu0 %v2688
        %2822 = vmatpush1.bf16.msra.mxu0 %v2687
        %2823 = vmatprep.subr.bf16.mxu0 %v2756
        %2824 = vmatpush1.bf16.msra.mxu0 %v2753
        %2825 = vmatprep.subr.bf16.mxu0 0
        %2826 = vmatpush1.bf16.msra.mxu0 0
        %2827 = vmatprep.subr.bf16.mxu0 0
        %2828 = vmatpush1.bf16.msra.mxu0 0
        %2829 = vmatprep.subr.bf16.mxu0 0
        %2830 = vmatpush1.bf16.msra.mxu0 0
        %2831 = vmatprep.mubr.bf16.mxu0 %v2743
        %2832 = vmatmul.mubr.bf16.gmra.mrb[0].mxu0 %v2417
        %v2833 = vpop.f32.mrb[0].mxu0
        %v2834 = vadd.f32 %v2482, %v2833
        %v2835 = vpop.f32.mrb[0].mxu0
        %v2836 = vadd.f32 %v2486, %v2835
        %v2837 = vpop.f32.mrb[0].mxu0
        %v2838 = vpop.f32.mrb[0].mxu0
        %2839 = vdwg.mxu0
        %vm2840 = vcmp.ge.f32.partialorder %v2793, 0.0
        %vm2841 = vcmp.ge.f32.partialorder %v2795, 0.0
        %vm2842 = vcmp.ge.f32.partialorder %v2834, 0.0
        %vm2843 = vcmp.ge.f32.partialorder %v2836, 0.0
        %v2844 = vmul.f32 %v2793, 0.01
        %v2845 = vmul.f32 %v2795, 0.01
        %v2846 = vmul.f32 %v2834, 0.01
        %v2847 = vmul.f32 %v2836, 0.01
        %v2848 = vsel %vm2840, %v2793, %v2844
        %v2849 = vsel %vm2841, %v2795, %v2845
        %v2850 = vsel %vm2842, %v2834, %v2846
        %v2851 = vsel %vm2843, %v2836, %v2847
        %v2852 = vpack.c.bf16 %v2848, %v2848
        %v2853 = vpack.c.bf16 %v2849, %v2849
        %v2854 = vpack.c.bf16 %v2850, %v2850
        %v2855 = vpack.c.bf16 %v2851, %v2851
        %v2856 = vld [vmem:[%s10] sm:$0xff]
        %v2857 = vld [vmem:[%s10 + $0x8] sm:$0xff]
        %v2858 = vld [vmem:[%s10 + $0x10] sm:$0xff]
        %v2859 = vld [vmem:[%s10 + $0x18] sm:$0xf]
        %v2860 = vld [vmem:[%s10 + $0x1c] sm:$0xff]
        %v2861 = vld [vmem:[%s10 + $0x24] sm:$0xff]
        %v2862 = vld [vmem:[%s10 + $0x2c] sm:$0xff]
        %v2863 = vld [vmem:[%s10 + $0x34] sm:$0xf]
        %v2864 = vld [vmem:[%s10 + $0x38] sm:$0xff]
        %v2865 = vld [vmem:[%s10 + $0x40] sm:$0xff]
        %v2866 = vld [vmem:[%s10 + $0x48] sm:$0xff]
        %v2867 = vld [vmem:[%s10 + $0x50] sm:$0xf]
        %v2868 = vld [vmem:[%s10 + $0x54] sm:$0xff]
        %v2869 = vld [vmem:[%s10 + $0x5c] sm:$0xff]
        %v2870 = vld [vmem:[%s10 + $0x64] sm:$0xff]
        %v2871 = vld [vmem:[%s10 + $0x6c] sm:$0xf]
        %v2872 = vld [vmem:[%s10 + $0x70] sm:$0xff]
        %v2873 = vld [vmem:[%s10 + $0x78] sm:$0xff]
        %v2874 = vld [vmem:[%s10 + $0x80] sm:$0xff]
        %v2875 = vld [vmem:[%s10 + $0x88] sm:$0xf]
        %v2876 = vld [vmem:[%s10 + $0x8c] sm:$0xff]
        %v2877 = vld [vmem:[%s10 + $0x94] sm:$0xff]
        %v2878 = vld [vmem:[%s10 + $0x9c] sm:$0xff]
        %v2879 = vld [vmem:[%s10 + $0xa4] sm:$0xf]
        %v2880 = vld [vmem:[%s10 + $0xa8] sm:$0xff]
        %v2881 = vld [vmem:[%s10 + $0xb0] sm:$0xff]
        %v2882 = vld [vmem:[%s10 + $0xb8] sm:$0xff]
        %v2883 = vld [vmem:[%s10 + $0xc0] sm:$0xf]
        %v2884 = vld [vmem:[%s10 + $0xc4] sm:$0xff]
        %v2885 = vld [vmem:[%s10 + $0xcc] sm:$0xff]
        %v2886 = vld [vmem:[%s10 + $0xd4] sm:$0xff]
        %v2887 = vld [vmem:[%s10 + $0xdc] sm:$0xf]
        %v2888 = vld [vmem:[%s10 + $0xe0] sm:$0xff]
        %v2889 = vld [vmem:[%s10 + $0xe8] sm:$0xff]
        %v2890 = vld [vmem:[%s10 + $0xf0] sm:$0xff]
        %v2891 = vld [vmem:[%s10 + $0xf8] sm:$0xf]
        %v2892 = vld [vmem:[%s10 + $0xfc] sm:$0xff]
        %v2893 = vld [vmem:[%s10 + $0x104] sm:$0xff]
        %v2894 = vld [vmem:[%s10 + $0x10c] sm:$0xff]
        %v2895 = vld [vmem:[%s10 + $0x114] sm:$0xf]
        %v2896 = vld [vmem:[%s10 + $0x118] sm:$0xff]
        %v2897 = vld [vmem:[%s10 + $0x120] sm:$0xff]
        %v2898 = vld [vmem:[%s10 + $0x128] sm:$0xff]
        %v2899 = vld [vmem:[%s10 + $0x130] sm:$0xf]
        %v2900 = vld [vmem:[%s10 + $0x134] sm:$0xff]
        %v2901 = vld [vmem:[%s10 + $0x13c] sm:$0xff]
        %v2902 = vld [vmem:[%s10 + $0x144] sm:$0xff]
        %v2903 = vld [vmem:[%s10 + $0x14c] sm:$0xf]
        %v2904 = vld [vmem:[%s10 + $0x150] sm:$0xff]
        %v2905 = vld [vmem:[%s10 + $0x158] sm:$0xff]
        %v2906 = vld [vmem:[%s10 + $0x160] sm:$0xff]
        %v2907 = vld [vmem:[%s10 + $0x168] sm:$0xf]
        %v2908 = vld [vmem:[%s10 + $0x16c] sm:$0xff]
        %v2909 = vld [vmem:[%s10 + $0x174] sm:$0xff]
        %v2910 = vld [vmem:[%s10 + $0x17c] sm:$0xff]
        %v2911 = vld [vmem:[%s10 + $0x184] sm:$0xf]
        %v2912 = vld [vmem:[%s10 + $0x188] sm:$0xff]
        %v2913 = vld [vmem:[%s10 + $0x190] sm:$0xff]
        %v2914 = vld [vmem:[%s10 + $0x198] sm:$0xff]
        %v2915 = vld [vmem:[%s10 + $0x1a0] sm:$0xf]
        %v2916 = vld [vmem:[%s10 + $0x1a4] sm:$0xff]
        %v2917 = vld [vmem:[%s10 + $0x1ac] sm:$0xff]
        %v2918 = vld [vmem:[%s10 + $0x1b4] sm:$0xff]
        %v2919 = vld [vmem:[%s10 + $0x1bc] sm:$0xf]
        %v2920 = vld [vmem:[%s10 + $0x1c0] sm:$0xff]
        %v2921 = vld [vmem:[%s10 + $0x1c8] sm:$0xff]
        %v2922 = vld [vmem:[%s10 + $0x1d0] sm:$0xff]
        %v2923 = vld [vmem:[%s10 + $0x1d8] sm:$0xf]
        %v2924 = vld [vmem:[%s10 + $0x1dc] sm:$0xff]
        %v2925 = vld [vmem:[%s10 + $0x1e4] sm:$0xff]
        %v2926 = vld [vmem:[%s10 + $0x1ec] sm:$0xff]
        %v2927 = vld [vmem:[%s10 + $0x1f4] sm:$0xf]
        %v2928 = vld [vmem:[%s10 + $0x1f8] sm:$0xff]
        %v2929 = vld [vmem:[%s10 + $0x200] sm:$0xff]
        %v2930 = vld [vmem:[%s10 + $0x208] sm:$0xff]
        %v2931 = vld [vmem:[%s10 + $0x210] sm:$0xf]
        %v2932 = vld [vmem:[%s10 + $0x214] sm:$0xff]
        %v2933 = vld [vmem:[%s10 + $0x21c] sm:$0xff]
        %v2934 = vld [vmem:[%s10 + $0x224] sm:$0xff]
        %v2935 = vld [vmem:[%s10 + $0x22c] sm:$0xf]
        %v2936 = vld [vmem:[%s10 + $0x230] sm:$0xff]
        %v2937 = vld [vmem:[%s10 + $0x238] sm:$0xff]
        %v2938 = vld [vmem:[%s10 + $0x240] sm:$0xff]
        %v2939 = vld [vmem:[%s10 + $0x248] sm:$0xf]
        %v2940 = vld [vmem:[%s10 + $0x24c] sm:$0xff]
        %v2941 = vld [vmem:[%s10 + $0x254] sm:$0xff]
        %v2942 = vld [vmem:[%s10 + $0x25c] sm:$0xff]
        %v2943 = vld [vmem:[%s10 + $0x264] sm:$0xf]
        %v2944 = vld [vmem:[%s10 + $0x268] sm:$0xff]
        %v2945 = vld [vmem:[%s10 + $0x270] sm:$0xff]
        %v2946 = vld [vmem:[%s10 + $0x278] sm:$0xff]
        %v2947 = vld [vmem:[%s10 + $0x280] sm:$0xf]
        %v2948 = vld [vmem:[%s10 + $0x284] sm:$0xff]
        %v2949 = vld [vmem:[%s10 + $0x28c] sm:$0xff]
        %v2950 = vld [vmem:[%s10 + $0x294] sm:$0xff]
        %v2951 = vld [vmem:[%s10 + $0x29c] sm:$0xf]
        %v2952 = vld [vmem:[%s10 + $0x2a0] sm:$0xff]
        %v2953 = vld [vmem:[%s10 + $0x2a8] sm:$0xff]
        %v2954 = vld [vmem:[%s10 + $0x2b0] sm:$0xff]
        %v2955 = vld [vmem:[%s10 + $0x2b8] sm:$0xf]
        %v2956 = vld [vmem:[%s10 + $0x2bc] sm:$0xff]
        %v2957 = vld [vmem:[%s10 + $0x2c4] sm:$0xff]
        %v2958 = vld [vmem:[%s10 + $0x2cc] sm:$0xff]
        %v2959 = vld [vmem:[%s10 + $0x2d4] sm:$0xf]
        %v2960 = vld [vmem:[%s10 + $0x2d8] sm:$0xff]
        %v2961 = vld [vmem:[%s10 + $0x2e0] sm:$0xff]
        %v2962 = vld [vmem:[%s10 + $0x2e8] sm:$0xff]
        %v2963 = vld [vmem:[%s10 + $0x2f0] sm:$0xf]
        %v2964 = vld [vmem:[%s10 + $0x2f4] sm:$0xff]
        %v2965 = vld [vmem:[%s10 + $0x2fc] sm:$0xff]
        %v2966 = vld [vmem:[%s10 + $0x304] sm:$0xff]
        %v2967 = vld [vmem:[%s10 + $0x30c] sm:$0xf]
        %v2968 = vld [vmem:[%s10 + $0x310] sm:$0xff]
        %v2969 = vld [vmem:[%s10 + $0x318] sm:$0xff]
        %v2970 = vld [vmem:[%s10 + $0x320] sm:$0xff]
        %v2971 = vld [vmem:[%s10 + $0x328] sm:$0xf]
        %v2972 = vld [vmem:[%s10 + $0x32c] sm:$0xff]
        %v2973 = vld [vmem:[%s10 + $0x334] sm:$0xff]
        %v2974 = vld [vmem:[%s10 + $0x33c] sm:$0xff]
        %v2975 = vld [vmem:[%s10 + $0x344] sm:$0xf]
        %v2976 = vld [vmem:[%s10 + $0x348] sm:$0xff]
        %v2977 = vld [vmem:[%s10 + $0x350] sm:$0xff]
        %v2978 = vld [vmem:[%s10 + $0x358] sm:$0xff]
        %v2979 = vld [vmem:[%s10 + $0x360] sm:$0xf]
        %v2980 = vld [vmem:[%s10 + $0x364] sm:$0xff]
        %v2981 = vld [vmem:[%s10 + $0x36c] sm:$0xff]
        %v2982 = vld [vmem:[%s10 + $0x374] sm:$0xff]
        %v2983 = vld [vmem:[%s10 + $0x37c] sm:$0xf]
        %v2984 = vld [vmem:[%s10 + $0x380] sm:$0xff]
        %v2985 = vld [vmem:[%s10 + $0x388] sm:$0xff]
        %v2986 = vld [vmem:[%s10 + $0x390] sm:$0xff]
        %v2987 = vld [vmem:[%s10 + $0x398] sm:$0xf]
        %v2988 = vld [vmem:[%s10 + $0x39c] sm:$0xff]
        %v2989 = vld [vmem:[%s10 + $0x3a4] sm:$0xff]
        %v2990 = vld [vmem:[%s10 + $0x3ac] sm:$0xff]
        %v2991 = vld [vmem:[%s10 + $0x3b4] sm:$0xf]
        %v2992 = vld [vmem:[%s10 + $0x3b8] sm:$0xff]
        %v2993 = vld [vmem:[%s10 + $0x3c0] sm:$0xff]
        %v2994 = vld [vmem:[%s10 + $0x3c8] sm:$0xff]
        %v2995 = vld [vmem:[%s10 + $0x3d0] sm:$0xf]
        %v2996 = vld [vmem:[%s10 + $0x3d4] sm:$0xff]
        %v2997 = vld [vmem:[%s10 + $0x3dc] sm:$0xff]
        %v2998 = vld [vmem:[%s10 + $0x3e4] sm:$0xff]
        %v2999 = vld [vmem:[%s10 + $0x3ec] sm:$0xf]
        %v3000 = vld [vmem:[%s10 + $0x3f0] sm:$0xff]
        %v3001 = vld [vmem:[%s10 + $0x3f8] sm:$0xff]
        %v3002 = vld [vmem:[%s10 + $0x400] sm:$0xff]
        %v3003 = vld [vmem:[%s10 + $0x408] sm:$0xf]
        %v3004 = vld [vmem:[%s10 + $0x40c] sm:$0xff]
        %v3005 = vld [vmem:[%s10 + $0x414] sm:$0xff]
        %v3006 = vld [vmem:[%s10 + $0x41c] sm:$0xff]
        %v3007 = vld [vmem:[%s10 + $0x424] sm:$0xf]
        %v3008 = vld [vmem:[%s10 + $0x428] sm:$0xff]
        %v3009 = vld [vmem:[%s10 + $0x430] sm:$0xff]
        %v3010 = vld [vmem:[%s10 + $0x438] sm:$0xff]
        %v3011 = vld [vmem:[%s10 + $0x440] sm:$0xf]
        %v3012 = vld [vmem:[%s10 + $0x444] sm:$0xff]
        %v3013 = vld [vmem:[%s10 + $0x44c] sm:$0xff]
        %v3014 = vld [vmem:[%s10 + $0x454] sm:$0xff]
        %v3015 = vld [vmem:[%s10 + $0x45c] sm:$0xf]
        %v3016 = vld [vmem:[%s10 + $0x460] sm:$0xff]
        %v3017 = vld [vmem:[%s10 + $0x468] sm:$0xff]
        %v3018 = vld [vmem:[%s10 + $0x470] sm:$0xff]
        %v3019 = vld [vmem:[%s10 + $0x478] sm:$0xf]
        %v3020 = vld [vmem:[%s10 + $0x47c] sm:$0xff]
        %v3021 = vld [vmem:[%s10 + $0x484] sm:$0xff]
        %v3022 = vld [vmem:[%s10 + $0x48c] sm:$0xff]
        %v3023 = vld [vmem:[%s10 + $0x494] sm:$0xf]
        %v3024 = vld [vmem:[%s10 + $0x498] sm:$0xff]
        %v3025 = vld [vmem:[%s10 + $0x4a0] sm:$0xff]
        %v3026 = vld [vmem:[%s10 + $0x4a8] sm:$0xff]
        %v3027 = vld [vmem:[%s10 + $0x4b0] sm:$0xf]
        %v3028 = vld [vmem:[%s10 + $0x4b4] sm:$0xff]
        %v3029 = vld [vmem:[%s10 + $0x4bc] sm:$0xff]
        %v3030 = vld [vmem:[%s10 + $0x4c4] sm:$0xff]
        %v3031 = vld [vmem:[%s10 + $0x4cc] sm:$0xf]
        %v3032 = vld [vmem:[%s10 + $0x4d0] sm:$0xff]
        %v3033 = vld [vmem:[%s10 + $0x4d8] sm:$0xff]
        %v3034 = vld [vmem:[%s10 + $0x4e0] sm:$0xff]
        %v3035 = vld [vmem:[%s10 + $0x4e8] sm:$0xf]
        %v3036 = vld [vmem:[%s10 + $0x4ec] sm:$0xff]
        %v3037 = vld [vmem:[%s10 + $0x4f4] sm:$0xff]
        %v3038 = vld [vmem:[%s10 + $0x4fc] sm:$0xff]
        %v3039 = vld [vmem:[%s10 + $0x504] sm:$0xf]
        %v3040 = vld [vmem:[%s10 + $0x508] sm:$0xff]
        %v3041 = vld [vmem:[%s10 + $0x510] sm:$0xff]
        %v3042 = vld [vmem:[%s10 + $0x518] sm:$0xff]
        %v3043 = vld [vmem:[%s10 + $0x520] sm:$0xf]
        %v3044 = vld [vmem:[%s10 + $0x524] sm:$0xff]
        %v3045 = vld [vmem:[%s10 + $0x52c] sm:$0xff]
        %v3046 = vld [vmem:[%s10 + $0x534] sm:$0xff]
        %v3047 = vld [vmem:[%s10 + $0x53c] sm:$0xf]
        %v3048 = vld [vmem:[%s10 + $0x540] sm:$0xff]
        %v3049 = vld [vmem:[%s10 + $0x548] sm:$0xff]
        %v3050 = vld [vmem:[%s10 + $0x550] sm:$0xff]
        %v3051 = vld [vmem:[%s10 + $0x558] sm:$0xf]
        %v3052 = vld [vmem:[%s10 + $0x55c] sm:$0xff]
        %v3053 = vld [vmem:[%s10 + $0x564] sm:$0xff]
        %v3054 = vld [vmem:[%s10 + $0x56c] sm:$0xff]
        %v3055 = vld [vmem:[%s10 + $0x574] sm:$0xf]
        %v3056 = vld [vmem:[%s11] sm:$0x7f]
        %v3058 = vlaneseq
        %v3059 = vshrl.u32 %v3058, 7
        %v3060 = vsub.s32 0, %v3059
        %v3061 = vrot.slane %v3056, %v3060
        %v3062 = vlaneseq
        %v3063 = vshrl.u32 %v3062, 7
        %v3064 = vsub.s32 1, %v3063
        %v3065 = vrot.slane %v3056, %v3064
        %v3066 = vlaneseq
        %v3067 = vshrl.u32 %v3066, 7
        %v3068 = vsub.s32 2, %v3067
        %v3069 = vrot.slane %v3056, %v3068
        %v3070 = vlaneseq
        %v3071 = vshrl.u32 %v3070, 7
        %v3072 = vsub.s32 3, %v3071
        %v3073 = vrot.slane %v3056, %v3072
        %v3074 = vlaneseq
        %v3075 = vshrl.u32 %v3074, 7
        %v3076 = vsub.s32 4, %v3075
        %v3077 = vrot.slane %v3056, %v3076
        %v3078 = vlaneseq
        %v3079 = vshrl.u32 %v3078, 7
        %v3080 = vsub.s32 5, %v3079
        %v3081 = vrot.slane %v3056, %v3080
        %v3082 = vlaneseq
        %v3083 = vshrl.u32 %v3082, 7
        %v3084 = vsub.s32 6, %v3083
        %v3085 = vrot.slane %v3056, %v3084
        %v3293 = vunpack.c.l.b16 %v2856
        %v3294 = vunpack.c.h.b16 %v2856
        %v3295 = vunpack.c.l.b16 %v2857
        %v3296 = vunpack.c.h.b16 %v2857
        %v3297 = vunpack.c.l.b16 %v2858
        %v3298 = vunpack.c.h.b16 %v2858
        %v3299 = vunpack.c.l.b16 %v2859
        %v3300 = vunpack.c.l.b16 %v2860
        %v3301 = vunpack.c.h.b16 %v2860
        %v3302 = vunpack.c.l.b16 %v2861
        %v3303 = vunpack.c.h.b16 %v2861
        %v3304 = vunpack.c.l.b16 %v2862
        %v3305 = vunpack.c.h.b16 %v2862
        %v3306 = vunpack.c.l.b16 %v2863
        %v3307 = vunpack.c.l.b16 %v2864
        %v3308 = vunpack.c.h.b16 %v2864
        %v3309 = vunpack.c.l.b16 %v2865
        %v3310 = vunpack.c.h.b16 %v2865
        %v3311 = vunpack.c.l.b16 %v2866
        %v3312 = vunpack.c.h.b16 %v2866
        %v3313 = vunpack.c.l.b16 %v2867
        %v3314 = vunpack.c.l.b16 %v2868
        %v3315 = vunpack.c.h.b16 %v2868
        %v3316 = vunpack.c.l.b16 %v2869
        %v3317 = vunpack.c.h.b16 %v2869
        %v3318 = vunpack.c.l.b16 %v2870
        %v3319 = vunpack.c.h.b16 %v2870
        %v3320 = vunpack.c.l.b16 %v2871
        %v3321 = vunpack.c.l.b16 %v2872
        %v3322 = vunpack.c.h.b16 %v2872
        %v3323 = vunpack.c.l.b16 %v2873
        %v3324 = vunpack.c.h.b16 %v2873
        %v3325 = vunpack.c.l.b16 %v2874
        %v3326 = vunpack.c.h.b16 %v2874
        %v3327 = vunpack.c.l.b16 %v2875
        %v3328 = vunpack.c.l.b16 %v2876
        %v3329 = vunpack.c.h.b16 %v2876
        %v3330 = vunpack.c.l.b16 %v2877
        %v3331 = vunpack.c.h.b16 %v2877
        %v3332 = vunpack.c.l.b16 %v2878
        %v3333 = vunpack.c.h.b16 %v2878
        %v3334 = vunpack.c.l.b16 %v2879
        %v3335 = vunpack.c.l.b16 %v2880
        %v3336 = vunpack.c.h.b16 %v2880
        %v3337 = vunpack.c.l.b16 %v2881
        %v3338 = vunpack.c.h.b16 %v2881
        %v3339 = vunpack.c.l.b16 %v2882
        %v3340 = vunpack.c.h.b16 %v2882
        %v3341 = vunpack.c.l.b16 %v2883
        %v3342 = vunpack.c.l.b16 %v2884
        %v3343 = vunpack.c.h.b16 %v2884
        %v3344 = vunpack.c.l.b16 %v2885
        %v3345 = vunpack.c.h.b16 %v2885
        %v3346 = vunpack.c.l.b16 %v2886
        %v3347 = vunpack.c.h.b16 %v2886
        %v3348 = vunpack.c.l.b16 %v2887
        %v3349 = vunpack.c.l.b16 %v2888
        %v3350 = vunpack.c.h.b16 %v2888
        %v3351 = vunpack.c.l.b16 %v2889
        %v3352 = vunpack.c.h.b16 %v2889
        %v3353 = vunpack.c.l.b16 %v2890
        %v3354 = vunpack.c.h.b16 %v2890
        %v3355 = vunpack.c.l.b16 %v2891
        %v3356 = vunpack.c.l.b16 %v2892
        %v3357 = vunpack.c.h.b16 %v2892
        %v3358 = vunpack.c.l.b16 %v2893
        %v3359 = vunpack.c.h.b16 %v2893
        %v3360 = vunpack.c.l.b16 %v2894
        %v3361 = vunpack.c.h.b16 %v2894
        %v3362 = vunpack.c.l.b16 %v2895
        %v3363 = vunpack.c.l.b16 %v2896
        %v3364 = vunpack.c.h.b16 %v2896
        %v3365 = vunpack.c.l.b16 %v2897
        %v3366 = vunpack.c.h.b16 %v2897
        %v3367 = vunpack.c.l.b16 %v2898
        %v3368 = vunpack.c.h.b16 %v2898
        %v3369 = vunpack.c.l.b16 %v2899
        %v3370 = vunpack.c.l.b16 %v2900
        %v3371 = vunpack.c.h.b16 %v2900
        %v3372 = vunpack.c.l.b16 %v2901
        %v3373 = vunpack.c.h.b16 %v2901
        %v3374 = vunpack.c.l.b16 %v2902
        %v3375 = vunpack.c.h.b16 %v2902
        %v3376 = vunpack.c.l.b16 %v2903
        %v3377 = vunpack.c.l.b16 %v2904
        %v3378 = vunpack.c.h.b16 %v2904
        %v3379 = vunpack.c.l.b16 %v2905
        %v3380 = vunpack.c.h.b16 %v2905
        %v3381 = vunpack.c.l.b16 %v2906
        %v3382 = vunpack.c.h.b16 %v2906
        %v3383 = vunpack.c.l.b16 %v2907
        %v3384 = vunpack.c.l.b16 %v2908
        %v3385 = vunpack.c.h.b16 %v2908
        %v3386 = vunpack.c.l.b16 %v2909
        %v3387 = vunpack.c.h.b16 %v2909
        %v3388 = vunpack.c.l.b16 %v2910
        %v3389 = vunpack.c.h.b16 %v2910
        %v3390 = vunpack.c.l.b16 %v2911
        %v3391 = vunpack.c.l.b16 %v2912
        %v3392 = vunpack.c.h.b16 %v2912
        %v3393 = vunpack.c.l.b16 %v2913
        %v3394 = vunpack.c.h.b16 %v2913
        %v3395 = vunpack.c.l.b16 %v2914
        %v3396 = vunpack.c.h.b16 %v2914
        %v3397 = vunpack.c.l.b16 %v2915
        %v3398 = vunpack.c.l.b16 %v2916
        %v3399 = vunpack.c.h.b16 %v2916
        %v3400 = vunpack.c.l.b16 %v2917
        %v3401 = vunpack.c.h.b16 %v2917
        %v3402 = vunpack.c.l.b16 %v2918
        %v3403 = vunpack.c.h.b16 %v2918
        %v3404 = vunpack.c.l.b16 %v2919
        %v3405 = vunpack.c.l.b16 %v2920
        %v3406 = vunpack.c.h.b16 %v2920
        %v3407 = vunpack.c.l.b16 %v2921
        %v3408 = vunpack.c.h.b16 %v2921
        %v3409 = vunpack.c.l.b16 %v2922
        %v3410 = vunpack.c.h.b16 %v2922
        %v3411 = vunpack.c.l.b16 %v2923
        %v3412 = vunpack.c.l.b16 %v2924
        %v3413 = vunpack.c.h.b16 %v2924
        %v3414 = vunpack.c.l.b16 %v2925
        %v3415 = vunpack.c.h.b16 %v2925
        %v3416 = vunpack.c.l.b16 %v2926
        %v3417 = vunpack.c.h.b16 %v2926
        %v3418 = vunpack.c.l.b16 %v2927
        %v3419 = vunpack.c.l.b16 %v2928
        %v3420 = vunpack.c.h.b16 %v2928
        %v3421 = vunpack.c.l.b16 %v2929
        %v3422 = vunpack.c.h.b16 %v2929
        %v3423 = vunpack.c.l.b16 %v2930
        %v3424 = vunpack.c.h.b16 %v2930
        %v3425 = vunpack.c.l.b16 %v2931
        %v3426 = vunpack.c.l.b16 %v2932
        %v3427 = vunpack.c.h.b16 %v2932
        %v3428 = vunpack.c.l.b16 %v2933
        %v3429 = vunpack.c.h.b16 %v2933
        %v3430 = vunpack.c.l.b16 %v2934
        %v3431 = vunpack.c.h.b16 %v2934
        %v3432 = vunpack.c.l.b16 %v2935
        %v3433 = vunpack.c.l.b16 %v2936
        %v3434 = vunpack.c.h.b16 %v2936
        %v3435 = vunpack.c.l.b16 %v2937
        %v3436 = vunpack.c.h.b16 %v2937
        %v3437 = vunpack.c.l.b16 %v2938
        %v3438 = vunpack.c.h.b16 %v2938
        %v3439 = vunpack.c.l.b16 %v2939
        %v3440 = vunpack.c.l.b16 %v2940
        %v3441 = vunpack.c.h.b16 %v2940
        %v3442 = vunpack.c.l.b16 %v2941
        %v3443 = vunpack.c.h.b16 %v2941
        %v3444 = vunpack.c.l.b16 %v2942
        %v3445 = vunpack.c.h.b16 %v2942
        %v3446 = vunpack.c.l.b16 %v2943
        %v3447 = vunpack.c.l.b16 %v2944
        %v3448 = vunpack.c.h.b16 %v2944
        %v3449 = vunpack.c.l.b16 %v2945
        %v3450 = vunpack.c.h.b16 %v2945
        %v3451 = vunpack.c.l.b16 %v2946
        %v3452 = vunpack.c.h.b16 %v2946
        %v3453 = vunpack.c.l.b16 %v2947
        %v3454 = vunpack.c.l.b16 %v2948
        %v3455 = vunpack.c.h.b16 %v2948
        %v3456 = vunpack.c.l.b16 %v2949
        %v3457 = vunpack.c.h.b16 %v2949
        %v3458 = vunpack.c.l.b16 %v2950
        %v3459 = vunpack.c.h.b16 %v2950
        %v3460 = vunpack.c.l.b16 %v2951
        %v3461 = vunpack.c.l.b16 %v2952
        %v3462 = vunpack.c.h.b16 %v2952
        %v3463 = vunpack.c.l.b16 %v2953
        %v3464 = vunpack.c.h.b16 %v2953
        %v3465 = vunpack.c.l.b16 %v2954
        %v3466 = vunpack.c.h.b16 %v2954
        %v3467 = vunpack.c.l.b16 %v2955
        %v3468 = vunpack.c.l.b16 %v2956
        %v3469 = vunpack.c.h.b16 %v2956
        %v3470 = vunpack.c.l.b16 %v2957
        %v3471 = vunpack.c.h.b16 %v2957
        %v3472 = vunpack.c.l.b16 %v2958
        %v3473 = vunpack.c.h.b16 %v2958
        %v3474 = vunpack.c.l.b16 %v2959
        %v3475 = vunpack.c.l.b16 %v2960
        %v3476 = vunpack.c.h.b16 %v2960
        %v3477 = vunpack.c.l.b16 %v2961
        %v3478 = vunpack.c.h.b16 %v2961
        %v3479 = vunpack.c.l.b16 %v2962
        %v3480 = vunpack.c.h.b16 %v2962
        %v3481 = vunpack.c.l.b16 %v2963
        %v3482 = vunpack.c.l.b16 %v2964
        %v3483 = vunpack.c.h.b16 %v2964
        %v3484 = vunpack.c.l.b16 %v2965
        %v3485 = vunpack.c.h.b16 %v2965
        %v3486 = vunpack.c.l.b16 %v2966
        %v3487 = vunpack.c.h.b16 %v2966
        %v3488 = vunpack.c.l.b16 %v2967
        %v3489 = vunpack.c.l.b16 %v2968
        %v3490 = vunpack.c.h.b16 %v2968
        %v3491 = vunpack.c.l.b16 %v2969
        %v3492 = vunpack.c.h.b16 %v2969
        %v3493 = vunpack.c.l.b16 %v2970
        %v3494 = vunpack.c.h.b16 %v2970
        %v3495 = vunpack.c.l.b16 %v2971
        %v3496 = vunpack.c.l.b16 %v2972
        %v3497 = vunpack.c.h.b16 %v2972
        %v3498 = vunpack.c.l.b16 %v2973
        %v3499 = vunpack.c.h.b16 %v2973
        %v3500 = vunpack.c.l.b16 %v2974
        %v3501 = vunpack.c.h.b16 %v2974
        %v3502 = vunpack.c.l.b16 %v2975
        %v3503 = vunpack.c.l.b16 %v2976
        %v3504 = vunpack.c.h.b16 %v2976
        %v3505 = vunpack.c.l.b16 %v2977
        %v3506 = vunpack.c.h.b16 %v2977
        %v3507 = vunpack.c.l.b16 %v2978
        %v3508 = vunpack.c.h.b16 %v2978
        %v3509 = vunpack.c.l.b16 %v2979
        %v3510 = vunpack.c.l.b16 %v2980
        %v3511 = vunpack.c.h.b16 %v2980
        %v3512 = vunpack.c.l.b16 %v2981
        %v3513 = vunpack.c.h.b16 %v2981
        %v3514 = vunpack.c.l.b16 %v2982
        %v3515 = vunpack.c.h.b16 %v2982
        %v3516 = vunpack.c.l.b16 %v2983
        %v3517 = vunpack.c.l.b16 %v2984
        %v3518 = vunpack.c.h.b16 %v2984
        %v3519 = vunpack.c.l.b16 %v2985
        %v3520 = vunpack.c.h.b16 %v2985
        %v3521 = vunpack.c.l.b16 %v2986
        %v3522 = vunpack.c.h.b16 %v2986
        %v3523 = vunpack.c.l.b16 %v2987
        %v3524 = vunpack.c.l.b16 %v2988
        %v3525 = vunpack.c.h.b16 %v2988
        %v3526 = vunpack.c.l.b16 %v2989
        %v3527 = vunpack.c.h.b16 %v2989
        %v3528 = vunpack.c.l.b16 %v2990
        %v3529 = vunpack.c.h.b16 %v2990
        %v3530 = vunpack.c.l.b16 %v2991
        %v3531 = vunpack.c.l.b16 %v2992
        %v3532 = vunpack.c.h.b16 %v2992
        %v3533 = vunpack.c.l.b16 %v2993
        %v3534 = vunpack.c.h.b16 %v2993
        %v3535 = vunpack.c.l.b16 %v2994
        %v3536 = vunpack.c.h.b16 %v2994
        %v3537 = vunpack.c.l.b16 %v2995
        %v3538 = vunpack.c.l.b16 %v2996
        %v3539 = vunpack.c.h.b16 %v2996
        %v3540 = vunpack.c.l.b16 %v2997
        %v3541 = vunpack.c.h.b16 %v2997
        %v3542 = vunpack.c.l.b16 %v2998
        %v3543 = vunpack.c.h.b16 %v2998
        %v3544 = vunpack.c.l.b16 %v2999
        %v3545 = vunpack.c.l.b16 %v3000
        %v3546 = vunpack.c.h.b16 %v3000
        %v3547 = vunpack.c.l.b16 %v3001
        %v3548 = vunpack.c.h.b16 %v3001
        %v3549 = vunpack.c.l.b16 %v3002
        %v3550 = vunpack.c.h.b16 %v3002
        %v3551 = vunpack.c.l.b16 %v3003
        %v3552 = vunpack.c.l.b16 %v3004
        %v3553 = vunpack.c.h.b16 %v3004
        %v3554 = vunpack.c.l.b16 %v3005
        %v3555 = vunpack.c.h.b16 %v3005
        %v3556 = vunpack.c.l.b16 %v3006
        %v3557 = vunpack.c.h.b16 %v3006
        %v3558 = vunpack.c.l.b16 %v3007
        %v3559 = vunpack.c.l.b16 %v3008
        %v3560 = vunpack.c.h.b16 %v3008
        %v3561 = vunpack.c.l.b16 %v3009
        %v3562 = vunpack.c.h.b16 %v3009
        %v3563 = vunpack.c.l.b16 %v3010
        %v3564 = vunpack.c.h.b16 %v3010
        %v3565 = vunpack.c.l.b16 %v3011
        %v3566 = vunpack.c.l.b16 %v3012
        %v3567 = vunpack.c.h.b16 %v3012
        %v3568 = vunpack.c.l.b16 %v3013
        %v3569 = vunpack.c.h.b16 %v3013
        %v3570 = vunpack.c.l.b16 %v3014
        %v3571 = vunpack.c.h.b16 %v3014
        %v3572 = vunpack.c.l.b16 %v3015
        %v3573 = vunpack.c.l.b16 %v3016
        %v3574 = vunpack.c.h.b16 %v3016
        %v3575 = vunpack.c.l.b16 %v3017
        %v3576 = vunpack.c.h.b16 %v3017
        %v3577 = vunpack.c.l.b16 %v3018
        %v3578 = vunpack.c.h.b16 %v3018
        %v3579 = vunpack.c.l.b16 %v3019
        %v3580 = vunpack.c.l.b16 %v3020
        %v3581 = vunpack.c.h.b16 %v3020
        %v3582 = vunpack.c.l.b16 %v3021
        %v3583 = vunpack.c.h.b16 %v3021
        %v3584 = vunpack.c.l.b16 %v3022
        %v3585 = vunpack.c.h.b16 %v3022
        %v3586 = vunpack.c.l.b16 %v3023
        %v3587 = vunpack.c.l.b16 %v3024
        %v3588 = vunpack.c.h.b16 %v3024
        %v3589 = vunpack.c.l.b16 %v3025
        %v3590 = vunpack.c.h.b16 %v3025
        %v3591 = vunpack.c.l.b16 %v3026
        %v3592 = vunpack.c.h.b16 %v3026
        %v3593 = vunpack.c.l.b16 %v3027
        %v3594 = vunpack.c.l.b16 %v3028
        %v3595 = vunpack.c.h.b16 %v3028
        %v3596 = vunpack.c.l.b16 %v3029
        %v3597 = vunpack.c.h.b16 %v3029
        %v3598 = vunpack.c.l.b16 %v3030
        %v3599 = vunpack.c.h.b16 %v3030
        %v3600 = vunpack.c.l.b16 %v3031
        %v3601 = vunpack.c.l.b16 %v3032
        %v3602 = vunpack.c.h.b16 %v3032
        %v3603 = vunpack.c.l.b16 %v3033
        %v3604 = vunpack.c.h.b16 %v3033
        %v3605 = vunpack.c.l.b16 %v3034
        %v3606 = vunpack.c.h.b16 %v3034
        %v3607 = vunpack.c.l.b16 %v3035
        %v3608 = vunpack.c.l.b16 %v3036
        %v3609 = vunpack.c.h.b16 %v3036
        %v3610 = vunpack.c.l.b16 %v3037
        %v3611 = vunpack.c.h.b16 %v3037
        %v3612 = vunpack.c.l.b16 %v3038
        %v3613 = vunpack.c.h.b16 %v3038
        %v3614 = vunpack.c.l.b16 %v3039
        %v3615 = vunpack.c.l.b16 %v3040
        %v3616 = vunpack.c.h.b16 %v3040
        %v3617 = vunpack.c.l.b16 %v3041
        %v3618 = vunpack.c.h.b16 %v3041
        %v3619 = vunpack.c.l.b16 %v3042
        %v3620 = vunpack.c.h.b16 %v3042
        %v3621 = vunpack.c.l.b16 %v3043
        %v3622 = vunpack.c.l.b16 %v3044
        %v3623 = vunpack.c.h.b16 %v3044
        %v3624 = vunpack.c.l.b16 %v3045
        %v3625 = vunpack.c.h.b16 %v3045
        %v3626 = vunpack.c.l.b16 %v3046
        %v3627 = vunpack.c.h.b16 %v3046
        %v3628 = vunpack.c.l.b16 %v3047
        %v3629 = vunpack.c.l.b16 %v3048
        %v3630 = vunpack.c.h.b16 %v3048
        %v3631 = vunpack.c.l.b16 %v3049
        %v3632 = vunpack.c.h.b16 %v3049
        %v3633 = vunpack.c.l.b16 %v3050
        %v3634 = vunpack.c.h.b16 %v3050
        %v3635 = vunpack.c.l.b16 %v3051
        %v3636 = vunpack.c.l.b16 %v3052
        %v3637 = vunpack.c.h.b16 %v3052
        %v3638 = vunpack.c.l.b16 %v3053
        %v3639 = vunpack.c.h.b16 %v3053
        %v3640 = vunpack.c.l.b16 %v3054
        %v3641 = vunpack.c.h.b16 %v3054
        %v3642 = vunpack.c.l.b16 %v3055
        %v3643 = vpack.c.b16 %v3300, %v3293
        %v3644 = vpack.c.b16 %v3301, %v3294
        %v3645 = vpack.c.b16 %v3302, %v3295
        %v3646 = vpack.c.b16 %v3303, %v3296
        %v3647 = vpack.c.b16 %v3304, %v3297
        %v3648 = vpack.c.b16 %v3305, %v3298
        %v3649 = vpack.c.b16 %v3306, %v3299
        %v3650 = vpack.c.b16 %v3314, %v3307
        %v3651 = vpack.c.b16 %v3315, %v3308
        %v3652 = vpack.c.b16 %v3316, %v3309
        %v3653 = vpack.c.b16 %v3317, %v3310
        %v3654 = vpack.c.b16 %v3318, %v3311
        %v3655 = vpack.c.b16 %v3319, %v3312
        %v3656 = vpack.c.b16 %v3320, %v3313
        %v3657 = vpack.c.b16 %v3328, %v3321
        %v3658 = vpack.c.b16 %v3329, %v3322
        %v3659 = vpack.c.b16 %v3330, %v3323
        %v3660 = vpack.c.b16 %v3331, %v3324
        %v3661 = vpack.c.b16 %v3332, %v3325
        %v3662 = vpack.c.b16 %v3333, %v3326
        %v3663 = vpack.c.b16 %v3334, %v3327
        %v3664 = vpack.c.b16 %v3342, %v3335
        %v3665 = vpack.c.b16 %v3343, %v3336
        %v3666 = vpack.c.b16 %v3344, %v3337
        %v3667 = vpack.c.b16 %v3345, %v3338
        %v3668 = vpack.c.b16 %v3346, %v3339
        %v3669 = vpack.c.b16 %v3347, %v3340
        %v3670 = vpack.c.b16 %v3348, %v3341
        %v3671 = vpack.c.b16 %v3356, %v3349
        %v3672 = vpack.c.b16 %v3357, %v3350
        %v3673 = vpack.c.b16 %v3358, %v3351
        %v3674 = vpack.c.b16 %v3359, %v3352
        %v3675 = vpack.c.b16 %v3360, %v3353
        %v3676 = vpack.c.b16 %v3361, %v3354
        %v3677 = vpack.c.b16 %v3362, %v3355
        %v3678 = vpack.c.b16 %v3370, %v3363
        %v3679 = vpack.c.b16 %v3371, %v3364
        %v3680 = vpack.c.b16 %v3372, %v3365
        %v3681 = vpack.c.b16 %v3373, %v3366
        %v3682 = vpack.c.b16 %v3374, %v3367
        %v3683 = vpack.c.b16 %v3375, %v3368
        %v3684 = vpack.c.b16 %v3376, %v3369
        %v3685 = vpack.c.b16 %v3384, %v3377
        %v3686 = vpack.c.b16 %v3385, %v3378
        %v3687 = vpack.c.b16 %v3386, %v3379
        %v3688 = vpack.c.b16 %v3387, %v3380
        %v3689 = vpack.c.b16 %v3388, %v3381
        %v3690 = vpack.c.b16 %v3389, %v3382
        %v3691 = vpack.c.b16 %v3390, %v3383
        %v3692 = vpack.c.b16 %v3398, %v3391
        %v3693 = vpack.c.b16 %v3399, %v3392
        %v3694 = vpack.c.b16 %v3400, %v3393
        %v3695 = vpack.c.b16 %v3401, %v3394
        %v3696 = vpack.c.b16 %v3402, %v3395
        %v3697 = vpack.c.b16 %v3403, %v3396
        %v3698 = vpack.c.b16 %v3404, %v3397
        %v3699 = vpack.c.b16 %v3412, %v3405
        %v3700 = vpack.c.b16 %v3413, %v3406
        %v3701 = vpack.c.b16 %v3414, %v3407
        %v3702 = vpack.c.b16 %v3415, %v3408
        %v3703 = vpack.c.b16 %v3416, %v3409
        %v3704 = vpack.c.b16 %v3417, %v3410
        %v3705 = vpack.c.b16 %v3418, %v3411
        %v3706 = vpack.c.b16 %v3426, %v3419
        %v3707 = vpack.c.b16 %v3427, %v3420
        %v3708 = vpack.c.b16 %v3428, %v3421
        %v3709 = vpack.c.b16 %v3429, %v3422
        %v3710 = vpack.c.b16 %v3430, %v3423
        %v3711 = vpack.c.b16 %v3431, %v3424
        %v3712 = vpack.c.b16 %v3432, %v3425
        %v3713 = vpack.c.b16 %v3440, %v3433
        %v3714 = vpack.c.b16 %v3441, %v3434
        %v3715 = vpack.c.b16 %v3442, %v3435
        %v3716 = vpack.c.b16 %v3443, %v3436
        %v3717 = vpack.c.b16 %v3444, %v3437
        %v3718 = vpack.c.b16 %v3445, %v3438
        %v3719 = vpack.c.b16 %v3446, %v3439
        %v3720 = vpack.c.b16 %v3454, %v3447
        %v3721 = vpack.c.b16 %v3455, %v3448
        %v3722 = vpack.c.b16 %v3456, %v3449
        %v3723 = vpack.c.b16 %v3457, %v3450
        %v3724 = vpack.c.b16 %v3458, %v3451
        %v3725 = vpack.c.b16 %v3459, %v3452
        %v3726 = vpack.c.b16 %v3460, %v3453
        %v3727 = vpack.c.b16 %v3468, %v3461
        %v3728 = vpack.c.b16 %v3469, %v3462
        %v3729 = vpack.c.b16 %v3470, %v3463
        %v3730 = vpack.c.b16 %v3471, %v3464
        %v3731 = vpack.c.b16 %v3472, %v3465
        %v3732 = vpack.c.b16 %v3473, %v3466
        %v3733 = vpack.c.b16 %v3474, %v3467
        %v3734 = vpack.c.b16 %v3482, %v3475
        %v3735 = vpack.c.b16 %v3483, %v3476
        %v3736 = vpack.c.b16 %v3484, %v3477
        %v3737 = vpack.c.b16 %v3485, %v3478
        %v3738 = vpack.c.b16 %v3486, %v3479
        %v3739 = vpack.c.b16 %v3487, %v3480
        %v3740 = vpack.c.b16 %v3488, %v3481
        %v3741 = vpack.c.b16 %v3496, %v3489
        %v3742 = vpack.c.b16 %v3497, %v3490
        %v3743 = vpack.c.b16 %v3498, %v3491
        %v3744 = vpack.c.b16 %v3499, %v3492
        %v3745 = vpack.c.b16 %v3500, %v3493
        %v3746 = vpack.c.b16 %v3501, %v3494
        %v3747 = vpack.c.b16 %v3502, %v3495
        %v3748 = vpack.c.b16 %v3510, %v3503
        %v3749 = vpack.c.b16 %v3511, %v3504
        %v3750 = vpack.c.b16 %v3512, %v3505
        %v3751 = vpack.c.b16 %v3513, %v3506
        %v3752 = vpack.c.b16 %v3514, %v3507
        %v3753 = vpack.c.b16 %v3515, %v3508
        %v3754 = vpack.c.b16 %v3516, %v3509
        %v3755 = vpack.c.b16 %v3524, %v3517
        %v3756 = vpack.c.b16 %v3525, %v3518
        %v3757 = vpack.c.b16 %v3526, %v3519
        %v3758 = vpack.c.b16 %v3527, %v3520
        %v3759 = vpack.c.b16 %v3528, %v3521
        %v3760 = vpack.c.b16 %v3529, %v3522
        %v3761 = vpack.c.b16 %v3530, %v3523
        %v3762 = vpack.c.b16 %v3538, %v3531
        %v3763 = vpack.c.b16 %v3539, %v3532
        %v3764 = vpack.c.b16 %v3540, %v3533
        %v3765 = vpack.c.b16 %v3541, %v3534
        %v3766 = vpack.c.b16 %v3542, %v3535
        %v3767 = vpack.c.b16 %v3543, %v3536
        %v3768 = vpack.c.b16 %v3544, %v3537
        %v3769 = vpack.c.b16 %v3552, %v3545
        %v3770 = vpack.c.b16 %v3553, %v3546
        %v3771 = vpack.c.b16 %v3554, %v3547
        %v3772 = vpack.c.b16 %v3555, %v3548
        %v3773 = vpack.c.b16 %v3556, %v3549
        %v3774 = vpack.c.b16 %v3557, %v3550
        %v3775 = vpack.c.b16 %v3558, %v3551
        %v3776 = vpack.c.b16 %v3566, %v3559
        %v3777 = vpack.c.b16 %v3567, %v3560
        %v3778 = vpack.c.b16 %v3568, %v3561
        %v3779 = vpack.c.b16 %v3569, %v3562
        %v3780 = vpack.c.b16 %v3570, %v3563
        %v3781 = vpack.c.b16 %v3571, %v3564
        %v3782 = vpack.c.b16 %v3572, %v3565
        %v3783 = vpack.c.b16 %v3580, %v3573
        %v3784 = vpack.c.b16 %v3581, %v3574
        %v3785 = vpack.c.b16 %v3582, %v3575
        %v3786 = vpack.c.b16 %v3583, %v3576
        %v3787 = vpack.c.b16 %v3584, %v3577
        %v3788 = vpack.c.b16 %v3585, %v3578
        %v3789 = vpack.c.b16 %v3586, %v3579
        %v3790 = vpack.c.b16 %v3594, %v3587
        %v3791 = vpack.c.b16 %v3595, %v3588
        %v3792 = vpack.c.b16 %v3596, %v3589
        %v3793 = vpack.c.b16 %v3597, %v3590
        %v3794 = vpack.c.b16 %v3598, %v3591
        %v3795 = vpack.c.b16 %v3599, %v3592
        %v3796 = vpack.c.b16 %v3600, %v3593
        %v3797 = vpack.c.b16 %v3608, %v3601
        %v3798 = vpack.c.b16 %v3609, %v3602
        %v3799 = vpack.c.b16 %v3610, %v3603
        %v3800 = vpack.c.b16 %v3611, %v3604
        %v3801 = vpack.c.b16 %v3612, %v3605
        %v3802 = vpack.c.b16 %v3613, %v3606
        %v3803 = vpack.c.b16 %v3614, %v3607
        %v3804 = vpack.c.b16 %v3622, %v3615
        %v3805 = vpack.c.b16 %v3623, %v3616
        %v3806 = vpack.c.b16 %v3624, %v3617
        %v3807 = vpack.c.b16 %v3625, %v3618
        %v3808 = vpack.c.b16 %v3626, %v3619
        %v3809 = vpack.c.b16 %v3627, %v3620
        %v3810 = vpack.c.b16 %v3628, %v3621
        %v3811 = vpack.c.b16 %v3636, %v3629
        %v3812 = vpack.c.b16 %v3637, %v3630
        %v3813 = vpack.c.b16 %v3638, %v3631
        %v3814 = vpack.c.b16 %v3639, %v3632
        %v3815 = vpack.c.b16 %v3640, %v3633
        %v3816 = vpack.c.b16 %v3641, %v3634
        %v3817 = vpack.c.b16 %v3642, %v3635
        %v3994 = vsel %vm1695, %v2855, 0
        %3996 = vmatprep.subr.bf16.mxu0 %v3644
        %3997 = vmatpush1.bf16.msra.mxu0 %v3643
        %3998 = vmatprep.subr.bf16.mxu0 %v3651
        %3999 = vmatpush1.bf16.msra.mxu0 %v3650
        %4000 = vmatprep.subr.bf16.mxu0 %v3658
        %4001 = vmatpush1.bf16.msra.mxu0 %v3657
        %4002 = vmatprep.subr.bf16.mxu0 %v3665
        %4003 = vmatpush1.bf16.msra.mxu0 %v3664
        %4004 = vmatprep.subr.bf16.mxu0 %v3672
        %4005 = vmatpush1.bf16.msra.mxu0 %v3671
        %4006 = vmatprep.subr.bf16.mxu0 %v3679
        %4007 = vmatpush1.bf16.msra.mxu0 %v3678
        %4008 = vmatprep.subr.bf16.mxu0 %v3686
        %4009 = vmatpush1.bf16.msra.mxu0 %v3685
        %4010 = vmatprep.subr.bf16.mxu0 %v3693
        %4011 = vmatpush1.bf16.msra.mxu0 %v3692
        %4012 = vmatprep.subr.bf16.mxu0 %v3700
        %4013 = vmatpush1.bf16.msra.mxu0 %v3699
        %4014 = vmatprep.subr.bf16.mxu0 %v3707
        %4015 = vmatpush1.bf16.msra.mxu0 %v3706
        %4016 = vmatprep.subr.bf16.mxu0 %v3714
        %4017 = vmatpush1.bf16.msra.mxu0 %v3713
        %4018 = vmatprep.subr.bf16.mxu0 %v3721
        %4019 = vmatpush1.bf16.msra.mxu0 %v3720
        %4020 = vmatprep.subr.bf16.mxu0 %v3728
        %4021 = vmatpush1.bf16.msra.mxu0 %v3727
        %4022 = vmatprep.subr.bf16.mxu0 %v3735
        %4023 = vmatpush1.bf16.msra.mxu0 %v3734
        %4024 = vmatprep.subr.bf16.mxu0 %v3742
        %4025 = vmatpush1.bf16.msra.mxu0 %v3741
        %4026 = vmatprep.subr.bf16.mxu0 %v3749
        %4027 = vmatpush1.bf16.msra.mxu0 %v3748
        %4028 = vmatprep.mubr.bf16.mxu0 %v2853
        %4029 = vmatmul.mubr.bf16.gmra.mrb[0].mxu0 %v2852
        %v4030 = vpop.f32.mrb[0].mxu0
        %v4031 = vadd.f32 %v3061, %v4030
        %v4032 = vpop.f32.mrb[0].mxu0
        %v4033 = vadd.f32 %v3065, %v4032
        %v4034 = vpop.f32.mrb[0].mxu0
        %v4035 = vpop.f32.mrb[0].mxu0
        %4036 = vdwg.mxu0
        %4037 = vmatprep.subr.bf16.mxu0 %v3756
        %4038 = vmatpush1.bf16.msra.mxu0 %v3755
        %4039 = vmatprep.subr.bf16.mxu0 %v3763
        %4040 = vmatpush1.bf16.msra.mxu0 %v3762
        %4041 = vmatprep.subr.bf16.mxu0 %v3770
        %4042 = vmatpush1.bf16.msra.mxu0 %v3769
        %4043 = vmatprep.subr.bf16.mxu0 %v3777
        %4044 = vmatpush1.bf16.msra.mxu0 %v3776
        %4045 = vmatprep.subr.bf16.mxu0 %v3784
        %4046 = vmatpush1.bf16.msra.mxu0 %v3783
        %4047 = vmatprep.subr.bf16.mxu0 %v3791
        %4048 = vmatpush1.bf16.msra.mxu0 %v3790
        %4049 = vmatprep.subr.bf16.mxu0 %v3798
        %4050 = vmatpush1.bf16.msra.mxu0 %v3797
        %4051 = vmatprep.subr.bf16.mxu0 %v3805
        %4052 = vmatpush1.bf16.msra.mxu0 %v3804
        %4053 = vmatprep.subr.bf16.mxu0 %v3812
        %4054 = vmatpush1.bf16.msra.mxu0 %v3811
        %4055 = vmatprep.subr.bf16.mxu0 0
        %4056 = vmatpush1.bf16.msra.mxu0 0
        %4057 = vmatprep.subr.bf16.mxu0 0
        %4058 = vmatpush1.bf16.msra.mxu0 0
        %4059 = vmatprep.subr.bf16.mxu0 0
        %4060 = vmatpush1.bf16.msra.mxu0 0
        %4061 = vmatprep.subr.bf16.mxu0 0
        %4062 = vmatpush1.bf16.msra.mxu0 0
        %4063 = vmatprep.subr.bf16.mxu0 0
        %4064 = vmatpush1.bf16.msra.mxu0 0
        %4065 = vmatprep.subr.bf16.mxu0 0
        %4066 = vmatpush1.bf16.msra.mxu0 0
        %4067 = vmatprep.subr.bf16.mxu0 0
        %4068 = vmatpush1.bf16.msra.mxu0 0
        %4069 = vmatprep.mubr.bf16.mxu0 %v3994
        %4070 = vmatmul.mubr.bf16.gmra.mrb[0].mxu0 %v2854
        %v4071 = vpop.f32.mrb[0].mxu0
        %v4072 = vadd.f32 %v4031, %v4071
        %v4073 = vpop.f32.mrb[0].mxu0
        %v4074 = vadd.f32 %v4033, %v4073
        %v4075 = vpop.f32.mrb[0].mxu0
        %v4076 = vpop.f32.mrb[0].mxu0
        %4077 = vdwg.mxu0
        %4078 = vmatprep.subr.bf16.mxu0 %v3646
        %4079 = vmatpush1.bf16.msra.mxu0 %v3645
        %4080 = vmatprep.subr.bf16.mxu0 %v3653
        %4081 = vmatpush1.bf16.msra.mxu0 %v3652
        %4082 = vmatprep.subr.bf16.mxu0 %v3660
        %4083 = vmatpush1.bf16.msra.mxu0 %v3659
        %4084 = vmatprep.subr.bf16.mxu0 %v3667
        %4085 = vmatpush1.bf16.msra.mxu0 %v3666
        %4086 = vmatprep.subr.bf16.mxu0 %v3674
        %4087 = vmatpush1.bf16.msra.mxu0 %v3673
        %4088 = vmatprep.subr.bf16.mxu0 %v3681
        %4089 = vmatpush1.bf16.msra.mxu0 %v3680
        %4090 = vmatprep.subr.bf16.mxu0 %v3688
        %4091 = vmatpush1.bf16.msra.mxu0 %v3687
        %4092 = vmatprep.subr.bf16.mxu0 %v3695
        %4093 = vmatpush1.bf16.msra.mxu0 %v3694
        %4094 = vmatprep.subr.bf16.mxu0 %v3702
        %4095 = vmatpush1.bf16.msra.mxu0 %v3701
        %4096 = vmatprep.subr.bf16.mxu0 %v3709
        %4097 = vmatpush1.bf16.msra.mxu0 %v3708
        %4098 = vmatprep.subr.bf16.mxu0 %v3716
        %4099 = vmatpush1.bf16.msra.mxu0 %v3715
        %4100 = vmatprep.subr.bf16.mxu0 %v3723
        %4101 = vmatpush1.bf16.msra.mxu0 %v3722
        %4102 = vmatprep.subr.bf16.mxu0 %v3730
        %4103 = vmatpush1.bf16.msra.mxu0 %v3729
        %4104 = vmatprep.subr.bf16.mxu0 %v3737
        %4105 = vmatpush1.bf16.msra.mxu0 %v3736
        %4106 = vmatprep.subr.bf16.mxu0 %v3744
        %4107 = vmatpush1.bf16.msra.mxu0 %v3743
        %4108 = vmatprep.subr.bf16.mxu0 %v3751
        %4109 = vmatpush1.bf16.msra.mxu0 %v3750
        %4110 = vmatprep.mubr.bf16.mxu0 %v2853
        %4111 = vmatmul.mubr.bf16.gmra.mrb[0].mxu0 %v2852
        %v4112 = vpop.f32.mrb[0].mxu0
        %v4113 = vadd.f32 %v3069, %v4112
        %v4114 = vpop.f32.mrb[0].mxu0
        %v4115 = vadd.f32 %v3073, %v4114
        %v4116 = vpop.f32.mrb[0].mxu0
        %v4117 = vpop.f32.mrb[0].mxu0
        %4118 = vdwg.mxu0
        %4119 = vmatprep.subr.bf16.mxu0 %v3758
        %4120 = vmatpush1.bf16.msra.mxu0 %v3757
        %4121 = vmatprep.subr.bf16.mxu0 %v3765
        %4122 = vmatpush1.bf16.msra.mxu0 %v3764
        %4123 = vmatprep.subr.bf16.mxu0 %v3772
        %4124 = vmatpush1.bf16.msra.mxu0 %v3771
        %4125 = vmatprep.subr.bf16.mxu0 %v3779
        %4126 = vmatpush1.bf16.msra.mxu0 %v3778
        %4127 = vmatprep.subr.bf16.mxu0 %v3786
        %4128 = vmatpush1.bf16.msra.mxu0 %v3785
        %4129 = vmatprep.subr.bf16.mxu0 %v3793
        %4130 = vmatpush1.bf16.msra.mxu0 %v3792
        %4131 = vmatprep.subr.bf16.mxu0 %v3800
        %4132 = vmatpush1.bf16.msra.mxu0 %v3799
        %4133 = vmatprep.subr.bf16.mxu0 %v3807
        %4134 = vmatpush1.bf16.msra.mxu0 %v3806
        %4135 = vmatprep.subr.bf16.mxu0 %v3814
        %4136 = vmatpush1.bf16.msra.mxu0 %v3813
        %4137 = vmatprep.subr.bf16.mxu0 0
        %4138 = vmatpush1.bf16.msra.mxu0 0
        %4139 = vmatprep.subr.bf16.mxu0 0
        %4140 = vmatpush1.bf16.msra.mxu0 0
        %4141 = vmatprep.subr.bf16.mxu0 0
        %4142 = vmatpush1.bf16.msra.mxu0 0
        %4143 = vmatprep.subr.bf16.mxu0 0
        %4144 = vmatpush1.bf16.msra.mxu0 0
        %4145 = vmatprep.subr.bf16.mxu0 0
        %4146 = vmatpush1.bf16.msra.mxu0 0
        %4147 = vmatprep.subr.bf16.mxu0 0
        %4148 = vmatpush1.bf16.msra.mxu0 0
        %4149 = vmatprep.subr.bf16.mxu0 0
        %4150 = vmatpush1.bf16.msra.mxu0 0
        %4151 = vmatprep.mubr.bf16.mxu0 %v3994
        %4152 = vmatmul.mubr.bf16.gmra.mrb[0].mxu0 %v2854
        %v4153 = vpop.f32.mrb[0].mxu0
        %v4154 = vadd.f32 %v4113, %v4153
        %v4155 = vpop.f32.mrb[0].mxu0
        %v4156 = vadd.f32 %v4115, %v4155
        %v4157 = vpop.f32.mrb[0].mxu0
        %v4158 = vpop.f32.mrb[0].mxu0
        %4159 = vdwg.mxu0
        %4160 = vmatprep.subr.bf16.mxu0 %v3648
        %4161 = vmatpush1.bf16.msra.mxu0 %v3647
        %4162 = vmatprep.subr.bf16.mxu0 %v3655
        %4163 = vmatpush1.bf16.msra.mxu0 %v3654
        %4164 = vmatprep.subr.bf16.mxu0 %v3662
        %4165 = vmatpush1.bf16.msra.mxu0 %v3661
        %4166 = vmatprep.subr.bf16.mxu0 %v3669
        %4167 = vmatpush1.bf16.msra.mxu0 %v3668
        %4168 = vmatprep.subr.bf16.mxu0 %v3676
        %4169 = vmatpush1.bf16.msra.mxu0 %v3675
        %4170 = vmatprep.subr.bf16.mxu0 %v3683
        %4171 = vmatpush1.bf16.msra.mxu0 %v3682
        %4172 = vmatprep.subr.bf16.mxu0 %v3690
        %4173 = vmatpush1.bf16.msra.mxu0 %v3689
        %4174 = vmatprep.subr.bf16.mxu0 %v3697
        %4175 = vmatpush1.bf16.msra.mxu0 %v3696
        %4176 = vmatprep.subr.bf16.mxu0 %v3704
        %4177 = vmatpush1.bf16.msra.mxu0 %v3703
        %4178 = vmatprep.subr.bf16.mxu0 %v3711
        %4179 = vmatpush1.bf16.msra.mxu0 %v3710
        %4180 = vmatprep.subr.bf16.mxu0 %v3718
        %4181 = vmatpush1.bf16.msra.mxu0 %v3717
        %4182 = vmatprep.subr.bf16.mxu0 %v3725
        %4183 = vmatpush1.bf16.msra.mxu0 %v3724
        %4184 = vmatprep.subr.bf16.mxu0 %v3732
        %4185 = vmatpush1.bf16.msra.mxu0 %v3731
        %4186 = vmatprep.subr.bf16.mxu0 %v3739
        %4187 = vmatpush1.bf16.msra.mxu0 %v3738
        %4188 = vmatprep.subr.bf16.mxu0 %v3746
        %4189 = vmatpush1.bf16.msra.mxu0 %v3745
        %4190 = vmatprep.subr.bf16.mxu0 %v3753
        %4191 = vmatpush1.bf16.msra.mxu0 %v3752
        %4192 = vmatprep.mubr.bf16.mxu0 %v2853
        %4193 = vmatmul.mubr.bf16.gmra.mrb[0].mxu0 %v2852
        %v4194 = vpop.f32.mrb[0].mxu0
        %v4195 = vadd.f32 %v3077, %v4194
        %v4196 = vpop.f32.mrb[0].mxu0
        %v4197 = vadd.f32 %v3081, %v4196
        %v4198 = vpop.f32.mrb[0].mxu0
        %v4199 = vpop.f32.mrb[0].mxu0
        %4200 = vdwg.mxu0
        %4201 = vmatprep.subr.bf16.mxu0 %v3760
        %4202 = vmatpush1.bf16.msra.mxu0 %v3759
        %4203 = vmatprep.subr.bf16.mxu0 %v3767
        %4204 = vmatpush1.bf16.msra.mxu0 %v3766
        %4205 = vmatprep.subr.bf16.mxu0 %v3774
        %4206 = vmatpush1.bf16.msra.mxu0 %v3773
        %4207 = vmatprep.subr.bf16.mxu0 %v3781
        %4208 = vmatpush1.bf16.msra.mxu0 %v3780
        %4209 = vmatprep.subr.bf16.mxu0 %v3788
        %4210 = vmatpush1.bf16.msra.mxu0 %v3787
        %4211 = vmatprep.subr.bf16.mxu0 %v3795
        %4212 = vmatpush1.bf16.msra.mxu0 %v3794
        %4213 = vmatprep.subr.bf16.mxu0 %v3802
        %4214 = vmatpush1.bf16.msra.mxu0 %v3801
        %4215 = vmatprep.subr.bf16.mxu0 %v3809
        %4216 = vmatpush1.bf16.msra.mxu0 %v3808
        %4217 = vmatprep.subr.bf16.mxu0 %v3816
        %4218 = vmatpush1.bf16.msra.mxu0 %v3815
        %4219 = vmatprep.subr.bf16.mxu0 0
        %4220 = vmatpush1.bf16.msra.mxu0 0
        %4221 = vmatprep.subr.bf16.mxu0 0
        %4222 = vmatpush1.bf16.msra.mxu0 0
        %4223 = vmatprep.subr.bf16.mxu0 0
        %4224 = vmatpush1.bf16.msra.mxu0 0
        %4225 = vmatprep.subr.bf16.mxu0 0
        %4226 = vmatpush1.bf16.msra.mxu0 0
        %4227 = vmatprep.subr.bf16.mxu0 0
        %4228 = vmatpush1.bf16.msra.mxu0 0
        %4229 = vmatprep.subr.bf16.mxu0 0
        %4230 = vmatpush1.bf16.msra.mxu0 0
        %4231 = vmatprep.subr.bf16.mxu0 0
        %4232 = vmatpush1.bf16.msra.mxu0 0
        %4233 = vmatprep.mubr.bf16.mxu0 %v3994
        %4234 = vmatmul.mubr.bf16.gmra.mrb[0].mxu0 %v2854
        %v4235 = vpop.f32.mrb[0].mxu0
        %v4236 = vadd.f32 %v4195, %v4235
        %v4237 = vpop.f32.mrb[0].mxu0
        %v4238 = vadd.f32 %v4197, %v4237
        %v4239 = vpop.f32.mrb[0].mxu0
        %v4240 = vpop.f32.mrb[0].mxu0
        %4241 = vdwg.mxu0
        %4242 = vmatprep.subr.bf16.mxu0 0
        %4243 = vmatpush1.bf16.msra.mxu0 %v3649
        %4244 = vmatprep.subr.bf16.mxu0 0
        %4245 = vmatpush1.bf16.msra.mxu0 %v3656
        %4246 = vmatprep.subr.bf16.mxu0 0
        %4247 = vmatpush1.bf16.msra.mxu0 %v3663
        %4248 = vmatprep.subr.bf16.mxu0 0
        %4249 = vmatpush1.bf16.msra.mxu0 %v3670
        %4250 = vmatprep.subr.bf16.mxu0 0
        %4251 = vmatpush1.bf16.msra.mxu0 %v3677
        %4252 = vmatprep.subr.bf16.mxu0 0
        %4253 = vmatpush1.bf16.msra.mxu0 %v3684
        %4254 = vmatprep.subr.bf16.mxu0 0
        %4255 = vmatpush1.bf16.msra.mxu0 %v3691
        %4256 = vmatprep.subr.bf16.mxu0 0
        %4257 = vmatpush1.bf16.msra.mxu0 %v3698
        %4258 = vmatprep.subr.bf16.mxu0 0
        %4259 = vmatpush1.bf16.msra.mxu0 %v3705
        %4260 = vmatprep.subr.bf16.mxu0 0
        %4261 = vmatpush1.bf16.msra.mxu0 %v3712
        %4262 = vmatprep.subr.bf16.mxu0 0
        %4263 = vmatpush1.bf16.msra.mxu0 %v3719
        %4264 = vmatprep.subr.bf16.mxu0 0
        %4265 = vmatpush1.bf16.msra.mxu0 %v3726
        %4266 = vmatprep.subr.bf16.mxu0 0
        %4267 = vmatpush1.bf16.msra.mxu0 %v3733
        %4268 = vmatprep.subr.bf16.mxu0 0
        %4269 = vmatpush1.bf16.msra.mxu0 %v3740
        %4270 = vmatprep.subr.bf16.mxu0 0
        %4271 = vmatpush1.bf16.msra.mxu0 %v3747
        %4272 = vmatprep.subr.bf16.mxu0 0
        %4273 = vmatpush1.bf16.msra.mxu0 %v3754
        %4274 = vmatprep.mubr.bf16.mxu0 %v2853
        %4275 = vmatmul.mubr.bf16.gmra.mrb[0].mxu0 %v2852
        %v4276 = vpop.f32.mrb[0].mxu0
        %v4277 = vadd.f32 %v3085, %v4276
        %v4278 = vpop.f32.mrb[0].mxu0
        %v4279 = vpop.f32.mrb[0].mxu0
        %v4280 = vpop.f32.mrb[0].mxu0
        %4281 = vdwg.mxu0
        %4282 = vmatprep.subr.bf16.mxu0 0
        %4283 = vmatpush1.bf16.msra.mxu0 %v3761
        %4284 = vmatprep.subr.bf16.mxu0 0
        %4285 = vmatpush1.bf16.msra.mxu0 %v3768
        %4286 = vmatprep.subr.bf16.mxu0 0
        %4287 = vmatpush1.bf16.msra.mxu0 %v3775
        %4288 = vmatprep.subr.bf16.mxu0 0
        %4289 = vmatpush1.bf16.msra.mxu0 %v3782
        %4290 = vmatprep.subr.bf16.mxu0 0
        %4291 = vmatpush1.bf16.msra.mxu0 %v3789
        %4292 = vmatprep.subr.bf16.mxu0 0
        %4293 = vmatpush1.bf16.msra.mxu0 %v3796
        %4294 = vmatprep.subr.bf16.mxu0 0
        %4295 = vmatpush1.bf16.msra.mxu0 %v3803
        %4296 = vmatprep.subr.bf16.mxu0 0
        %4297 = vmatpush1.bf16.msra.mxu0 %v3810
        %4298 = vmatprep.subr.bf16.mxu0 0
        %4299 = vmatpush1.bf16.msra.mxu0 %v3817
        %4300 = vmatprep.subr.bf16.mxu0 0
        %4301 = vmatpush1.bf16.msra.mxu0 0
        %4302 = vmatprep.subr.bf16.mxu0 0
        %4303 = vmatpush1.bf16.msra.mxu0 0
        %4304 = vmatprep.subr.bf16.mxu0 0
        %4305 = vmatpush1.bf16.msra.mxu0 0
        %4306 = vmatprep.subr.bf16.mxu0 0
        %4307 = vmatpush1.bf16.msra.mxu0 0
        %4308 = vmatprep.subr.bf16.mxu0 0
        %4309 = vmatpush1.bf16.msra.mxu0 0
        %4310 = vmatprep.subr.bf16.mxu0 0
        %4311 = vmatpush1.bf16.msra.mxu0 0
        %4312 = vmatprep.subr.bf16.mxu0 0
        %4313 = vmatpush1.bf16.msra.mxu0 0
        %4314 = vmatprep.mubr.bf16.mxu0 %v3994
        %4315 = vmatmul.mubr.bf16.gmra.mrb[0].mxu0 %v2854
        %v4316 = vpop.f32.mrb[0].mxu0
        %v4317 = vadd.f32 %v4277, %v4316
        %v4318 = vpop.f32.mrb[0].mxu0
        %v4319 = vpop.f32.mrb[0].mxu0
        %v4320 = vpop.f32.mrb[0].mxu0
        %4321 = vdwg.mxu0
        %v4322 = vsub.f32 0.0, %v4072
        %v4323 = vsub.f32 0.0, %v4074
        %v4324 = vsub.f32 0.0, %v4154
        %v4325 = vsub.f32 0.0, %v4156
        %v4326 = vsub.f32 0.0, %v4236
        %v4327 = vsub.f32 0.0, %v4238
        %v4328 = vsub.f32 0.0, %v4317
        %v4329 = vmul.f32 %v4322, 1.442695
        %v4330 = vpow.pop %v4329
        %v4331 = vmul.f32 %v4323, 1.442695
        %v4332 = vpow.pop %v4331
        %v4333 = vmul.f32 %v4324, 1.442695
        %v4334 = vpow.pop %v4333
        %v4335 = vmul.f32 %v4325, 1.442695
        %v4336 = vpow.pop %v4335
        %v4337 = vmul.f32 %v4326, 1.442695
        %v4338 = vpow.pop %v4337
        %v4339 = vmul.f32 %v4327, 1.442695
        %v4340 = vpow.pop %v4339
        %v4341 = vmul.f32 %v4328, 1.442695
        %v4342 = vpow.pop %v4341
        %v4343 = vadd.f32 %v4330, 1.0
        %v4344 = vadd.f32 %v4332, 1.0
        %v4345 = vadd.f32 %v4334, 1.0
        %v4346 = vadd.f32 %v4336, 1.0
        %v4347 = vadd.f32 %v4338, 1.0
        %v4348 = vadd.f32 %v4340, 1.0
        %v4349 = vadd.f32 %v4342, 1.0
        %v4350 = vrcp.pop %v4343
        %v4351 = vrcp.pop %v4344
        %v4352 = vrcp.pop %v4345
        %v4353 = vrcp.pop %v4346
        %v4354 = vrcp.pop %v4347
        %v4355 = vrcp.pop %v4348
        %v4356 = vrcp.pop %v4349
        %v4357 = vmin.f32 %v4350, 1.0
        %v4358 = vmin.f32 %v4351, 1.0
        %v4359 = vmin.f32 %v4352, 1.0
        %v4360 = vmin.f32 %v4353, 1.0
        %v4361 = vmin.f32 %v4354, 1.0
        %v4362 = vmin.f32 %v4355, 1.0
        %v4363 = vmin.f32 %v4356, 1.0
        %v4364 = vpack.c.bf16 %v4357, %v4357
        %v4365 = vpack.c.bf16 %v4358, %v4358
        %v4366 = vpack.c.bf16 %v4359, %v4359
        %v4367 = vpack.c.bf16 %v4360, %v4360
        %v4368 = vpack.c.bf16 %v4361, %v4361
        %v4369 = vpack.c.bf16 %v4362, %v4362
        %v4370 = vpack.c.bf16 %v4363, %v4363
        %v4378 = vunpack.c.l.b16 %v4364
        %v4379 = vunpack.c.l.b16 %v4365
        %v4380 = vunpack.c.l.b16 %v4366
        %v4381 = vunpack.c.l.b16 %v4367
        %v4382 = vunpack.c.l.b16 %v4368
        %v4383 = vunpack.c.l.b16 %v4369
        %v4384 = vunpack.c.l.b16 %v4370
        %v4385 = vpack.c.b16 %v4379, %v4378
        %v4386 = vpack.c.b16 %v4381, %v4380
        %v4387 = vpack.c.b16 %v4383, %v4382
        %v4388 = vpack.c.b16 %v4384, %v4384
        %4393 = vst [vmem:[%s447] sm:$0xff] %v4385
        %4394 = vst [vmem:[%s447 + $0x8] sm:$0xff] %v4386
        %4395 = vst [vmem:[%s447 + $0x10] sm:$0xff] %v4387
        %vm4396 = vcmask 125952
        %4397 = vst.msk [vmem:[%s447 + $0x18] sm:$0xf] %vm4396, %v4388
        %s4398 = sand.u32 %s298, 1
        %s4399 = scalar_lea.sflag [#allocation3], %s4398
        %s4400 = sand.u32 %s298, 1
        %s4401 = smul.addr %s4400, 28
        %s4402 = scalar_lea.vmem [#allocation2], %s4401
        %p4403 = scmp.lt.s32.totalorder %s28, 1
        %s4404 = scalar_select %p4403, %s28, 1
        %s4405 = smul.addr %s4404, 4
        %s4406 = scalar_lea.vmem %s13, %s4405
        // Predicated region
        $region69: #{vae_forward.1} parent=67 // pred_check
          %p4407 = pneg %p308
        $region70: #{vae_forward.1} parent=67 // pred_check_branch
          %4409 = sbr.rel (%p4407) target = $region72
        $region71: #{vae_forward.1} parent=67 // pred_region
          %s4411 = ssub.s32 448, 448
          %4412 = vsyncadd %s4399, %s4411
          %s4413 = smul.addr %s28, 7
          %s4414 = smul.addr %s4413, 64
          %s4415 = scalar_lea.hbm %s12, %s4414
          %s4417 = sshll.u32 %s4402, 4
          %s4418 = int_to_ptr.vmem [resolvable:$true] %s4417
          %4420 = dma.vmem_to_hbm [thread:$0]  %s4418, 448, %s4415, %s4399
        $region72: #{vae_forward.1} parent=67 // pred_fallthru
          _
        // Predicated region
        $region73: #{vae_forward.1} parent=67 // pred_check
          %p4421 = pneg %p334
        $region74: #{vae_forward.1} parent=67 // pred_check_branch
          %4423 = sbr.rel (%p4421) target = $region76
        $region75: #{vae_forward.1} parent=67 // pred_region
          _
        $region76: #{vae_forward.1} parent=67 // pred_fallthru
          _
      $region68: #{vae_forward.1} parent=5 // pred_fallthru
        _
      %p4424 = scmp.le.s32.totalorder 2, %s23
      // Predicated region
      $region77: #{vae_forward.1} parent=5 // pred_check
        %p4425 = pneg %p4424
      $region78: #{vae_forward.1} parent=5 // pred_check_branch
        %4427 = sbr.rel (%p4425) target = $region80
      $region79: #{vae_forward.1} parent=5 // pred_region
        %s4428 = ssub.s32 %s23, 2
        // Predicated region
        $region81: #{vae_forward.1} parent=79 // pred_check
          %p4429 = pneg %p314
        $region82: #{vae_forward.1} parent=79 // pred_check_branch
          %4431 = sbr.rel (%p4429) target = $region84
        $region83: #{vae_forward.1} parent=79 // pred_region
          %s4432 = sand.u32 %s299, 1
          %s4433 = scalar_lea.sflag [#allocation3], %s4432
          %s4434 = sand.u32 %s299, 1
          %s4435 = smul.addr %s4434, 28
          %s4436 = scalar_lea.vmem [#allocation2], %s4435
          %4437 = dma.done %s4433, 448
        $region84: #{vae_forward.1} parent=79 // pred_fallthru
          _
        // Predicated region
        $region85: #{vae_forward.1} parent=79 // pred_check
          %p4438 = pneg %p340
        $region86: #{vae_forward.1} parent=79 // pred_check_branch
          %4440 = sbr.rel (%p4438) target = $region88
        $region87: #{vae_forward.1} parent=79 // pred_region
          %p4441 = scmp.lt.s32.totalorder %s29, 1
          %s4442 = scalar_select %p4441, %s29, 1
          %s4443 = smul.addr %s4442, 4
          %s4444 = scalar_lea.vmem %s13, %s4443
        $region88: #{vae_forward.1} parent=79 // pred_fallthru
          _
      $region80: #{vae_forward.1} parent=5 // pred_fallthru
        _
    $region6: #{vae_forward.1} parent=1 // loop_footer
      %s27 = sadd.s32 1, %s23
    $region7: #{vae_forward.1} parent=1 // loop_footer_branch
      %22 = sbr.rel target = $region3
    $region8: #{vae_forward.1} parent=1 // loop_exit
      _
    %4445 = vsyncpa [#allocation3], 1
    %s4446 = scalar_lea.sflag [#allocation3], 1
    %4447 = vsyncpa %s4446, 1

</llo_original>
